<compile_context>
chip_gen: v7x
topology: tpu7x:2x2x1
jax: 0.10.0
libtpu: 0.0.40
codegen_flags: <defaults>
</compile_context>

<pallas_src>
import functools

import jax
import jax.numpy as jnp
from jax.experimental import pallas as pl
from jax.experimental.pallas import tpu as pltpu

F32 = jnp.float32
BF16 = jnp.bfloat16
LOGITS_PAD = 128  # lane-dense logits slab width


# ----------------------------------------------------------------------------
# Config (mirrors the fields StageModel.forward touches)
# ----------------------------------------------------------------------------
class Config:
    batch_size = 2
    pad_size = 8                # sequence length
    hidden_size = 32
    num_heads = 4
    intermediate_size = 64
    side_hidden_size = 8        # ladder-side reduction of hidden_size
    side_num_heads = 1
    side_intermediate_size = 16
    num_layers_per_stage = 2
    num_classes = 3
    vocab_size = 50
    type_vocab_size = 2
    layer_norm_eps = 1e-12
    is_first_stage = False
    is_last_stage = True


# ----------------------------------------------------------------------------
# In-kernel helpers (pure functions on values, traced inside the kernel)
# ----------------------------------------------------------------------------
def _mm(x, w):
    """2-D matmul; casts the activation to the (bf16) weight dtype, f32 acc."""
    return jnp.dot(x.astype(w.dtype), w, preferred_element_type=F32)


def _gelu(x):
    # TODO(synk): tanh-approximate GELU; exact erf GELU differs by <~1e-3/elem.
    return 0.5 * x * (1.0 + jnp.tanh(0.7978845608028654 * (x + 0.044715 * x * x * x)))


def _add_ln(x, res, g, b, eps):
    y = x + res
    mean = jnp.mean(y, axis=-1, keepdims=True)
    yc = y - mean
    var = jnp.mean(yc * yc, axis=-1, keepdims=True)
    return yc * jax.lax.rsqrt(var + eps) * g + b


def _ffn(x, wi, bi, wp, bp):
    h = _mm(x, wi) + bi
    return _mm(_gelu(h), wp) + bp


def _split_heads(x2, nheads, hdim):
    # (S, nheads*hdim) -> (nheads, S, hdim) via static lane slices stacked on a
    # new leading (matmul-batch) axis; no broadcast materialization.
    if nheads == 1:
        return x2[None]
    return jnp.stack([x2[:, h * hdim:(h + 1) * hdim] for h in range(nheads)],
                     axis=0)


def _merge_heads(x3, nheads):
    # (nheads, S, hdim) -> (S, nheads*hdim) concat-heads along lanes.
    if nheads == 1:
        return x3[0]
    return jnp.concatenate([x3[h] for h in range(nheads)], axis=-1)


def _attention(x, bias, wqkv, bqkv, wo, bo, *, nheads, hdim, use_mask):
    """Multi-head self-attention on one batch element.

    x    : (S, Hx) f32 activations
    bias : (1, 1, S) additive key mask (only read when use_mask)
    wqkv : (Hx, 3*Hx_heads) bf16 packed [all Q heads | all K heads | all V heads]
           (a real checkpoint must be repacked to this head-major order)
    wo   : (Hx_heads, Hx) bf16 packed output projection
    """
    dh = nheads * hdim
    qkv = _mm(x, wqkv) + bqkv                      # one lane-dense (S,3*dh) matmul
    scale = 1.0 / (hdim ** 0.5)                    # folded into q
    q = _split_heads(qkv[:, 0 * dh:1 * dh] * scale, nheads, hdim)
    k = _split_heads(qkv[:, 1 * dh:2 * dh], nheads, hdim)
    v = _split_heads(qkv[:, 2 * dh:3 * dh], nheads, hdim)

    s = jnp.einsum("hqd,hkd->hqk", q.astype(BF16), k.astype(BF16),
                   preferred_element_type=F32)     # (nh, S, S)
    if use_mask:                                   # statically skipped when mask=None
        s = s + bias[...]
    s = s - jnp.max(s, axis=-1, keepdims=True)
    p = jnp.exp(s)
    p = p * pl.reciprocal(jnp.sum(p, axis=-1, keepdims=True), approx=True)

    ctx = jnp.einsum("hqk,hkd->hqd", p.astype(BF16), v.astype(BF16),
                     preferred_element_type=F32)   # (nh, S, hd)
    ctx2 = _merge_heads(ctx, nheads)               # (S, dh)
    return _mm(ctx2, wo) + bo                      # single (S,dh)@(dh,Hx) matmul


# ----------------------------------------------------------------------------
# Fused layer-stack kernel: grid = (batch, num_layers); weights stacked [L,...]
# and double-buffered along the layer axis; state carried in resident outputs;
# last-stage head fused into the final layer iteration.
# ----------------------------------------------------------------------------
_MAIN_KEYS = ("wqkv", "bqkv", "wo", "bo", "ln1_g", "ln1_b",
              "wi", "bi", "wp", "bp", "ln2_g", "ln2_b")
_SIDE_KEYS = ("down_w", "down_b") + _MAIN_KEYS
_HEAD_KEYS = ("up_w", "up_b", "pool_w", "pool_b", "fc_w", "fc_b")


def _stack_kernel(*refs, nh, snh, hd, shd, eps, use_mask, with_head):
    it = iter(refs)
    h_in, s_in = next(it), next(it)
    bias_ref = next(it) if use_mask else None
    mu_ref = next(it)
    mp = {k: next(it) for k in _MAIN_KEYS}
    sp = {k: next(it) for k in _SIDE_KEYS}
    hp = {k: next(it) for k in _HEAD_KEYS} if with_head else None
    h_out, s_out = next(it), next(it)
    logits_ref = next(it) if with_head else None

    l = pl.program_id(1)

    @pl.when(l == 0)
    def _():                                   # seed the resident carry blocks
        h_out[...] = h_in[...]
        s_out[...] = s_in[...]

    bias = bias_ref[...] if use_mask else None

    # ---- frozen-backbone encoder layer -------------------------------------
    h = h_out[0]                               # (S, H) carried in output VMEM
    attn = _attention(h, bias, mp["wqkv"][0], mp["bqkv"][0], mp["wo"][0],
                      mp["bo"][0], nheads=nh, hdim=hd, use_mask=use_mask)
    h2 = _add_ln(attn, h, mp["ln1_g"][0], mp["ln1_b"][0], eps)
    h3 = _add_ln(_ffn(h2, mp["wi"][0], mp["bi"][0], mp["wp"][0], mp["bp"][0]),
                 h2, mp["ln2_g"][0], mp["ln2_b"][0], eps)
    h_out[0] = h3

    # ---- ladder-side gate (downsample mix) + side encoder layer ------------
    mu = mu_ref[l]                             # scalar ladder gate from SMEM
    down = _mm(h3, sp["down_w"][0]) + sp["down_b"][0]
    s_new = mu * s_out[0] + (1.0 - mu) * down
    s_attn = _attention(s_new, bias, sp["wqkv"][0], sp["bqkv"][0], sp["wo"][0],
                        sp["bo"][0], nheads=snh, hdim=shd, use_mask=use_mask)
    s2 = _add_ln(s_attn, s_new, sp["ln1_g"][0], sp["ln1_b"][0], eps)
    s3 = _add_ln(_ffn(s2, sp["wi"][0], sp["bi"][0], sp["wp"][0], sp["bp"][0]),
                 s2, sp["ln2_g"][0], sp["ln2_b"][0], eps)
    s_out[0] = s3

    # ---- last-stage head fused into the final layer iteration --------------
    if with_head:
        @pl.when(l == pl.num_programs(1) - 1)
        def _():
            cls_h = h3[0:1, :]                 # (1, H) [CLS] row
            cls_s = s3[0:1, :]                 # (1, r)
            up = _mm(cls_s, hp["up_w"][...]) + hp["up_b"][...]
            pooled = jnp.tanh(_mm(cls_h + up, hp["pool_w"][...])
                              + hp["pool_b"][...])
            logits = _mm(pooled, hp["fc_w"][...]) + hp["fc_b"][...]
            logits_ref[0] = logits.astype(logits_ref.dtype)


# ----------------------------------------------------------------------------
# First-stage: no-residual embedding LayerNorm fused with side-init projection
# ----------------------------------------------------------------------------
def _embed_kernel(emb_ref, g_ref, b_ref, sw_ref, sb_ref, h_ref, s_ref, *, eps):
    x = emb_ref[...]
    mean = jnp.mean(x, axis=-1, keepdims=True)
    xc = x - mean
    var = jnp.mean(xc * xc, axis=-1, keepdims=True)
    h = xc * jax.lax.rsqrt(var + eps) * g_ref[...] + b_ref[...]
    h_ref[...] = h
    s_ref[...] = _mm(h, sw_ref[...]) + sb_ref[...]


# ----------------------------------------------------------------------------
# Deterministic parameter init (packed 2-D, head-major QKV; bf16 weights)
# ----------------------------------------------------------------------------
def init_params(cfg, key):
    H, I = cfg.hidden_size, cfg.intermediate_size
    r, rI = cfg.side_hidden_size, cfg.side_intermediate_size
    L = cfg.num_layers_per_stage

    keys = iter(jax.random.split(key, 64))

    def w(shape, dtype=BF16):
        return (jax.random.normal(next(keys), shape, F32) * 0.02).astype(dtype)

    zeros = lambda s: jnp.zeros(s, F32)
    ones = lambda s: jnp.ones(s, F32)

    main = dict(
        # QKV packed [all Q heads | all K heads | all V heads] along out lanes.
        wqkv=w((L, H, 3 * H)), bqkv=zeros((L, 1, 3 * H)),
        wo=w((L, H, H)), bo=zeros((L, 1, H)),
        ln1_g=ones((L, 1, H)), ln1_b=zeros((L, 1, H)),
        wi=w((L, H, I)), bi=zeros((L, 1, I)),
        wp=w((L, I, H)), bp=zeros((L, 1, H)),
        ln2_g=ones((L, 1, H)), ln2_b=zeros((L, 1, H)),
    )
    side = dict(
        down_w=w((L, H, r)), down_b=zeros((L, 1, r)),
        wqkv=w((L, r, 3 * r)), bqkv=zeros((L, 1, 3 * r)),
        wo=w((L, r, r)), bo=zeros((L, 1, r)),
        ln1_g=ones((L, 1, r)), ln1_b=zeros((L, 1, r)),
        wi=w((L, r, rI)), bi=zeros((L, 1, rI)),
        wp=w((L, rI, r)), bp=zeros((L, 1, r)),
        ln2_g=ones((L, 1, r)), ln2_b=zeros((L, 1, r)),
        mu=jnp.full((L,), 0.5, F32),          # sigmoid(0) ladder gate (SMEM)
    )
    emb = dict(
        word=w((cfg.vocab_size, H), F32),
        pos=w((cfg.pad_size, H), F32),
        type=w((cfg.type_vocab_size, H), F32),
        ln_g=ones((1, H)), ln_b=zeros((1, H)),
        side_w=w((H, r), F32), side_b=zeros((1, r)),
    )
    fc_w = jnp.zeros((H, LOGITS_PAD), F32).at[:, :cfg.num_classes].set(
        jax.random.normal(next(keys), (H, cfg.num_classes), F32) * 0.02)
    head = dict(
        up_w=w((r, H), F32), up_b=zeros((1, H)),
        pool_w=w((H, H), F32), pool_b=zeros((1, H)),
        fc_w=fc_w, fc_b=zeros((1, LOGITS_PAD)),
    )
    return dict(main=main, side=side, emb=emb, head=head)


# ----------------------------------------------------------------------------
# StageModel
# ----------------------------------------------------------------------------
class StageModelPallas:
    # TODO(synk): mark_only_side_as_trainable masks gradients only; it is a
    # no-op for the forward pass and therefore not modelled here.
    def __init__(self, cfg, params):
        self.cfg = cfg
        self.p = params

    def _run_stack(self, h, s, att_bias, *, with_head):
        cfg, p = self.cfg, self.p
        B, S = cfg.batch_size, cfg.pad_size
        H, r = cfg.hidden_size, cfg.side_hidden_size
        L = cfg.num_layers_per_stage
        main, side, head = p["main"], p["side"], p["head"]
        use_mask = att_bias is not None

        def state_spec(last):
            return pl.BlockSpec((1, S, last), lambda b, l: (b, 0, 0))

        def layer_spec(shape):
            zeros = (0,) * (len(shape) - 1)
            return pl.BlockSpec((1,) + tuple(shape[1:]),
                                lambda b, l, _z=zeros: (l,) + _z)

        def fixed_spec(shape):
            zeros = (0,) * len(shape)
            return pl.BlockSpec(tuple(shape), lambda b, l, _z=zeros: _z)

        operands = [h, s]
        in_specs = [state_spec(H), state_spec(r)]
        if use_mask:
            operands.append(att_bias)                       # (B, 1, S)
            in_specs.append(pl.BlockSpec((1, 1, S), lambda b, l: (b, 0, 0)))
        operands.append(side["mu"])
        in_specs.append(pl.BlockSpec(memory_space=pltpu.MemorySpace.SMEM))
        for k in _MAIN_KEYS:
            operands.append(main[k]); in_specs.append(layer_spec(main[k].shape))
        for k in _SIDE_KEYS:
            operands.append(side[k]); in_specs.append(layer_spec(side[k].shape))
        if with_head:
            for k in _HEAD_KEYS:
                operands.append(head[k]); in_specs.append(fixed_spec(head[k].shape))

        out_shapes = [jax.ShapeDtypeStruct((B, S, H), F32),
                      jax.ShapeDtypeStruct((B, S, r), F32)]
        out_specs = [state_spec(H), state_spec(r)]
        if with_head:
            out_shapes.append(jax.ShapeDtypeStruct((B, 1, LOGITS_PAD), F32))
            out_specs.append(pl.BlockSpec((1, 1, LOGITS_PAD),
                                          lambda b, l: (b, 0, 0)))

        kernel = functools.partial(
            _stack_kernel, nh=cfg.num_heads, snh=cfg.side_num_heads,
            hd=H // cfg.num_heads, shd=r // cfg.side_num_heads,
            eps=cfg.layer_norm_eps, use_mask=use_mask, with_head=with_head)

        return pl.pallas_call(
            kernel,
            out_shape=tuple(out_shapes),
            grid=(B, L),
            in_specs=in_specs,
            out_specs=tuple(out_specs),
            compiler_params=pltpu.CompilerParams(
                dimension_semantics=("parallel", "arbitrary"),
                vmem_limit_bytes=48 * 1024 * 1024),
        )(*operands)

    def _embed(self, emb2d):
        cfg, ep = self.cfg, self.p["emb"]
        B, S = cfg.batch_size, cfg.pad_size
        H, r = cfg.hidden_size, cfg.side_hidden_size
        M = B * S

        def fixed(shape):
            zeros = (0,) * len(shape)
            return pl.BlockSpec(tuple(shape), lambda i, _z=zeros: _z)

        return pl.pallas_call(
            functools.partial(_embed_kernel, eps=cfg.layer_norm_eps),
            out_shape=(jax.ShapeDtypeStruct((M, H), F32),
                       jax.ShapeDtypeStruct((M, r), F32)),
            grid=(1,),
            in_specs=[fixed((M, H)), fixed((1, H)), fixed((1, H)),
                      fixed((H, r)), fixed((1, r))],
            out_specs=(fixed((M, H)), fixed((M, r))),
            compiler_params=pltpu.CompilerParams(
                vmem_limit_bytes=48 * 1024 * 1024),
        )(emb2d, ep["ln_g"], ep["ln_b"], ep["side_w"], ep["side_b"])

    def __call__(self, x, side=None):
        cfg, p = self.cfg, self.p
        B, S = cfg.batch_size, cfg.pad_size
        H, r = cfg.hidden_size, cfg.side_hidden_size

        if cfg.is_first_stage:
            # x is (context, seq_len, mask) — mirrors x[0], x[2] in torch code.
            context, mask = x[0], x[2]
            att_bias = (1.0 - mask.astype(F32).reshape(B, 1, S)) * -10000.0
            # Embedding-table gather stays in plain JAX glue; token_type_ids is
            # None in the torch code -> type row 0 for every token.
            emb = (p["emb"]["word"][context]
                   + p["emb"]["pos"][None, :S, :]
                   + p["emb"]["type"][0][None, None, :])
            h2d, s2d = self._embed(emb.reshape(B * S, H))
            h_o, s_o = self._run_stack(h2d.reshape(B, S, H),
                                       s2d.reshape(B, S, r),
                                       att_bias, with_head=False)
            return h_o, s_o

        # middle / last stages: attention_mask=None in the torch code ->
        # the mask add is statically skipped inside the kernel.
        if cfg.is_last_stage:
            _, _, logits_pad = self._run_stack(x, side, None, with_head=True)
            return logits_pad[:, 0, :cfg.num_classes]

        h_o, s_o = self._run_stack(x, side, None, with_head=False)
        return h_o, s_o


# ----------------------------------------------------------------------------
# main
# ----------------------------------------------------------------------------
if __name__ == "__main__":
    cfg = Config()
    key = jax.random.PRNGKey(0)
    pkey, xkey, skey = jax.random.split(key, 3)

    params = init_params(cfg, pkey)

    B, S = cfg.batch_size, cfg.pad_size
    H, r = cfg.hidden_size, cfg.side_hidden_size

    # Last-stage inputs: hidden state from previous stage + side hidden state.
    x = jax.random.normal(xkey, (B, S, H), F32)
    side = jax.random.normal(skey, (B, S, r), F32)

    fwd = jax.jit(lambda xx, ss: StageModelPallas(cfg, params)(xx, ss))
    out = jax.block_until_ready(fwd(x, side))          # (B, num_classes) logits

    assert out.shape == (B, cfg.num_classes)
    assert bool(jnp.all(jnp.isfinite(out)))
    print("KERNEL_OK")
</pallas_src>

<mosaic_0001>
module attributes {stable_mosaic.version = 11 : i64} {
  func.func @_stack_kernel(%arg0: i32, %arg1: i32, %arg2: memref<1x8x32xf32, #tpu.memory_space<vmem>>, %arg3: memref<1x8x8xf32, #tpu.memory_space<vmem>>, %arg4: memref<2xf32, #tpu.memory_space<smem>>, %arg5: memref<1x32x96xbf16, #tpu.memory_space<vmem>>, %arg6: memref<1x1x96xf32, #tpu.memory_space<vmem>>, %arg7: memref<1x32x32xbf16, #tpu.memory_space<vmem>>, %arg8: memref<1x1x32xf32, #tpu.memory_space<vmem>>, %arg9: memref<1x1x32xf32, #tpu.memory_space<vmem>>, %arg10: memref<1x1x32xf32, #tpu.memory_space<vmem>>, %arg11: memref<1x32x64xbf16, #tpu.memory_space<vmem>>, %arg12: memref<1x1x64xf32, #tpu.memory_space<vmem>>, %arg13: memref<1x64x32xbf16, #tpu.memory_space<vmem>>, %arg14: memref<1x1x32xf32, #tpu.memory_space<vmem>>, %arg15: memref<1x1x32xf32, #tpu.memory_space<vmem>>, %arg16: memref<1x1x32xf32, #tpu.memory_space<vmem>>, %arg17: memref<1x32x8xbf16, #tpu.memory_space<vmem>>, %arg18: memref<1x1x8xf32, #tpu.memory_space<vmem>>, %arg19: memref<1x8x24xbf16, #tpu.memory_space<vmem>>, %arg20: memref<1x1x24xf32, #tpu.memory_space<vmem>>, %arg21: memref<1x8x8xbf16, #tpu.memory_space<vmem>>, %arg22: memref<1x1x8xf32, #tpu.memory_space<vmem>>, %arg23: memref<1x1x8xf32, #tpu.memory_space<vmem>>, %arg24: memref<1x1x8xf32, #tpu.memory_space<vmem>>, %arg25: memref<1x8x16xbf16, #tpu.memory_space<vmem>>, %arg26: memref<1x1x16xf32, #tpu.memory_space<vmem>>, %arg27: memref<1x16x8xbf16, #tpu.memory_space<vmem>>, %arg28: memref<1x1x8xf32, #tpu.memory_space<vmem>>, %arg29: memref<1x1x8xf32, #tpu.memory_space<vmem>>, %arg30: memref<1x1x8xf32, #tpu.memory_space<vmem>>, %arg31: memref<8x32xf32, #tpu.memory_space<vmem>>, %arg32: memref<1x32xf32, #tpu.memory_space<vmem>>, %arg33: memref<32x32xf32, #tpu.memory_space<vmem>>, %arg34: memref<1x32xf32, #tpu.memory_space<vmem>>, %arg35: memref<32x128xf32, #tpu.memory_space<vmem>>, %arg36: memref<1x128xf32, #tpu.memory_space<vmem>>, %arg37: memref<1x8x32xf32, #tpu.memory_space<vmem>>, %arg38: memref<1x8x8xf32, #tpu.memory_space<vmem>>, %arg39: memref<1x1x128xf32, #tpu.memory_space<vmem>>) attributes {dimension_semantics = [#tpu.dimension_semantics<parallel>, #tpu.dimension_semantics<arbitrary>], iteration_bounds = array<i64: 2, 2>, scalar_prefetch = 0 : i64, scratch_operands = 0 : i64, tpu.core_type = #tpu.core_type<tc>, window_params = [{transform_indices = @transform_0, window_bounds = array<i64: 1, 8, 32>}, {transform_indices = @transform_1, window_bounds = array<i64: 1, 8, 8>}, {transform_indices = @transform_2, window_bounds = array<i64: 2>}, {transform_indices = @transform_3, window_bounds = array<i64: 1, 32, 96>}, {transform_indices = @transform_4, window_bounds = array<i64: 1, 1, 96>}, {transform_indices = @transform_5, window_bounds = array<i64: 1, 32, 32>}, {transform_indices = @transform_6, window_bounds = array<i64: 1, 1, 32>}, {transform_indices = @transform_7, window_bounds = array<i64: 1, 1, 32>}, {transform_indices = @transform_8, window_bounds = array<i64: 1, 1, 32>}, {transform_indices = @transform_9, window_bounds = array<i64: 1, 32, 64>}, {transform_indices = @transform_10, window_bounds = array<i64: 1, 1, 64>}, {transform_indices = @transform_11, window_bounds = array<i64: 1, 64, 32>}, {transform_indices = @transform_12, window_bounds = array<i64: 1, 1, 32>}, {transform_indices = @transform_13, window_bounds = array<i64: 1, 1, 32>}, {transform_indices = @transform_14, window_bounds = array<i64: 1, 1, 32>}, {transform_indices = @transform_15, window_bounds = array<i64: 1, 32, 8>}, {transform_indices = @transform_16, window_bounds = array<i64: 1, 1, 8>}, {transform_indices = @transform_17, window_bounds = array<i64: 1, 8, 24>}, {transform_indices = @transform_18, window_bounds = array<i64: 1, 1, 24>}, {transform_indices = @transform_19, window_bounds = array<i64: 1, 8, 8>}, {transform_indices = @transform_20, window_bounds = array<i64: 1, 1, 8>}, {transform_indices = @transform_21, window_bounds = array<i64: 1, 1, 8>}, {transform_indices = @transform_22, window_bounds = array<i64: 1, 1, 8>}, {transform_indices = @transform_23, window_bounds = array<i64: 1, 8, 16>}, {transform_indices = @transform_24, window_bounds = array<i64: 1, 1, 16>}, {transform_indices = @transform_25, window_bounds = array<i64: 1, 16, 8>}, {transform_indices = @transform_26, window_bounds = array<i64: 1, 1, 8>}, {transform_indices = @transform_27, window_bounds = array<i64: 1, 1, 8>}, {transform_indices = @transform_28, window_bounds = array<i64: 1, 1, 8>}, {pipeline_mode = #tpu.pipeline_mode<synchronous>, transform_indices = @transform_29, window_bounds = array<i64: 8, 32>}, {pipeline_mode = #tpu.pipeline_mode<synchronous>, transform_indices = @transform_30, window_bounds = array<i64: 1, 32>}, {pipeline_mode = #tpu.pipeline_mode<synchronous>, transform_indices = @transform_31, window_bounds = array<i64: 32, 32>}, {pipeline_mode = #tpu.pipeline_mode<synchronous>, transform_indices = @transform_32, window_bounds = array<i64: 1, 32>}, {pipeline_mode = #tpu.pipeline_mode<synchronous>, transform_indices = @transform_33, window_bounds = array<i64: 32, 128>}, {pipeline_mode = #tpu.pipeline_mode<synchronous>, transform_indices = @transform_34, window_bounds = array<i64: 1, 128>}, {transform_indices = @transform_35, window_bounds = array<i64: 1, 8, 32>}, {transform_indices = @transform_36, window_bounds = array<i64: 1, 8, 8>}, {transform_indices = @transform_37, window_bounds = array<i64: 1, 1, 128>}]} {
    %c0_i32 = arith.constant 0 : i32
    %0 = arith.cmpi eq, %arg1, %c0_i32 : i32
    %1 = arith.extui %0 : i1 to i32
    %c0_i32_0 = arith.constant 0 : i32
    %2 = arith.cmpi ne, %1, %c0_i32_0 : i32
    scf.if %2 {
      %c0_138 = arith.constant 0 : index
      %c0_139 = arith.constant 0 : index
      %c0_140 = arith.constant 0 : index
      %304 = vector.load %arg2[%c0_138, %c0_139, %c0_140] : memref<1x8x32xf32, #tpu.memory_space<vmem>>, vector<1x8x32xf32>
      %c0_141 = arith.constant 0 : index
      %c0_142 = arith.constant 0 : index
      %c0_143 = arith.constant 0 : index
      %305 = vector.load %arg37[%c0_141, %c0_142, %c0_143] : memref<1x8x32xf32, #tpu.memory_space<vmem>>, vector<1x8x32xf32>
      tpu.vector_store %arg37[%c0_141, %c0_142, %c0_143], %304 {strides = array<i32>} : memref<1x8x32xf32, #tpu.memory_space<vmem>>, vector<1x8x32xf32>,
      %c0_144 = arith.constant 0 : index
      %c0_145 = arith.constant 0 : index
      %c0_146 = arith.constant 0 : index
      %306 = vector.load %arg3[%c0_144, %c0_145, %c0_146] : memref<1x8x8xf32, #tpu.memory_space<vmem>>, vector<1x8x8xf32>
      %c0_147 = arith.constant 0 : index
      %c0_148 = arith.constant 0 : index
      %c0_149 = arith.constant 0 : index
      %307 = vector.load %arg38[%c0_147, %c0_148, %c0_149] : memref<1x8x8xf32, #tpu.memory_space<vmem>>, vector<1x8x8xf32>
      tpu.vector_store %arg38[%c0_147, %c0_148, %c0_149], %306 {strides = array<i32>} : memref<1x8x8xf32, #tpu.memory_space<vmem>>, vector<1x8x8xf32>,
    } else {
    }
    %c0 = arith.constant 0 : index
    %c0_1 = arith.constant 0 : index
    %c0_2 = arith.constant 0 : index
    %3 = vector.load %arg37[%c0, %c0_1, %c0_2] : memref<1x8x32xf32, #tpu.memory_space<vmem>>, vector<1x8x32xf32>
    %4 = vector.shape_cast %3 : vector<1x8x32xf32> to vector<8x32xf32>
    %c0_3 = arith.constant 0 : index
    %c0_4 = arith.constant 0 : index
    %c0_5 = arith.constant 0 : index
    %5 = vector.load %arg5[%c0_3, %c0_4, %c0_5] : memref<1x32x96xbf16, #tpu.memory_space<vmem>>, vector<1x32x96xbf16>
    %6 = vector.shape_cast %5 : vector<1x32x96xbf16> to vector<32x96xbf16>
    %c0_6 = arith.constant 0 : index
    %c0_7 = arith.constant 0 : index
    %c0_8 = arith.constant 0 : index
    %7 = vector.load %arg6[%c0_6, %c0_7, %c0_8] : memref<1x1x96xf32, #tpu.memory_space<vmem>>, vector<1x1x96xf32>
    %8 = vector.shape_cast %7 : vector<1x1x96xf32> to vector<1x96xf32>
    %c0_9 = arith.constant 0 : index
    %c0_10 = arith.constant 0 : index
    %c0_11 = arith.constant 0 : index
    %9 = vector.load %arg7[%c0_9, %c0_10, %c0_11] : memref<1x32x32xbf16, #tpu.memory_space<vmem>>, vector<1x32x32xbf16>
    %10 = vector.shape_cast %9 : vector<1x32x32xbf16> to vector<32x32xbf16>
    %c0_12 = arith.constant 0 : index
    %c0_13 = arith.constant 0 : index
    %c0_14 = arith.constant 0 : index
    %11 = vector.load %arg8[%c0_12, %c0_13, %c0_14] : memref<1x1x32xf32, #tpu.memory_space<vmem>>, vector<1x1x32xf32>
    %12 = vector.shape_cast %11 : vector<1x1x32xf32> to vector<1x32xf32>
    %13 = arith.truncf %4 : vector<8x32xf32> to vector<8x32xbf16>
    %cst = arith.constant dense<0.000000e+00> : vector<8x96xf32>
    %14 = tpu.matmul %13, %6, %cst {dimension_numbers = #tpu.dot_dimension_numbers<[1], [0], [0], [1], [0, 0, 1, 1], [], []>} : vector<8x32xbf16>, vector<32x96xbf16>, vector<8x96xf32> -> vector<8x96xf32>
    %15 = vector.broadcast %8 : vector<1x96xf32> to vector<8x96xf32>
    %16 = arith.addf %14, %15 : vector<8x96xf32>
    %17 = vector.extract_strided_slice %16 {offsets = [0, 0], sizes = [8, 32], strides = [1, 1]} : vector<8x96xf32> to vector<8x32xf32>
    %cst_15 = arith.constant 0.353553385 : f32
    %18 = vector.broadcast %cst_15 : f32 to vector<8x32xf32>
    %19 = arith.mulf %17, %18 : vector<8x32xf32>
    %20 = vector.extract_strided_slice %19 {offsets = [0, 0], sizes = [8, 8], strides = [1, 1]} : vector<8x32xf32> to vector<8x8xf32>
    %21 = vector.extract_strided_slice %19 {offsets = [0, 8], sizes = [8, 8], strides = [1, 1]} : vector<8x32xf32> to vector<8x8xf32>
    %22 = vector.extract_strided_slice %19 {offsets = [0, 16], sizes = [8, 8], strides = [1, 1]} : vector<8x32xf32> to vector<8x8xf32>
    %23 = vector.extract_strided_slice %19 {offsets = [0, 24], sizes = [8, 8], strides = [1, 1]} : vector<8x32xf32> to vector<8x8xf32>
    %24 = vector.shape_cast %20 : vector<8x8xf32> to vector<1x8x8xf32>
    %25 = vector.shape_cast %21 : vector<8x8xf32> to vector<1x8x8xf32>
    %26 = vector.shape_cast %22 : vector<8x8xf32> to vector<1x8x8xf32>
    %27 = vector.shape_cast %23 : vector<8x8xf32> to vector<1x8x8xf32>
    %28 = tpu.concatenate %24, %25, %26, %27 in 0 : vector<1x8x8xf32>, vector<1x8x8xf32>, vector<1x8x8xf32>, vector<1x8x8xf32> -> vector<4x8x8xf32>
    %29 = vector.extract_strided_slice %16 {offsets = [0, 32], sizes = [8, 32], strides = [1, 1]} : vector<8x96xf32> to vector<8x32xf32>
    %30 = vector.extract_strided_slice %29 {offsets = [0, 0], sizes = [8, 8], strides = [1, 1]} : vector<8x32xf32> to vector<8x8xf32>
    %31 = vector.extract_strided_slice %29 {offsets = [0, 8], sizes = [8, 8], strides = [1, 1]} : vector<8x32xf32> to vector<8x8xf32>
    %32 = vector.extract_strided_slice %29 {offsets = [0, 16], sizes = [8, 8], strides = [1, 1]} : vector<8x32xf32> to vector<8x8xf32>
    %33 = vector.extract_strided_slice %29 {offsets = [0, 24], sizes = [8, 8], strides = [1, 1]} : vector<8x32xf32> to vector<8x8xf32>
    %34 = vector.shape_cast %30 : vector<8x8xf32> to vector<1x8x8xf32>
    %35 = vector.shape_cast %31 : vector<8x8xf32> to vector<1x8x8xf32>
    %36 = vector.shape_cast %32 : vector<8x8xf32> to vector<1x8x8xf32>
    %37 = vector.shape_cast %33 : vector<8x8xf32> to vector<1x8x8xf32>
    %38 = tpu.concatenate %34, %35, %36, %37 in 0 : vector<1x8x8xf32>, vector<1x8x8xf32>, vector<1x8x8xf32>, vector<1x8x8xf32> -> vector<4x8x8xf32>
    %39 = vector.extract_strided_slice %16 {offsets = [0, 64], sizes = [8, 32], strides = [1, 1]} : vector<8x96xf32> to vector<8x32xf32>
    %40 = vector.extract_strided_slice %39 {offsets = [0, 0], sizes = [8, 8], strides = [1, 1]} : vector<8x32xf32> to vector<8x8xf32>
    %41 = vector.extract_strided_slice %39 {offsets = [0, 8], sizes = [8, 8], strides = [1, 1]} : vector<8x32xf32> to vector<8x8xf32>
    %42 = vector.extract_strided_slice %39 {offsets = [0, 16], sizes = [8, 8], strides = [1, 1]} : vector<8x32xf32> to vector<8x8xf32>
    %43 = vector.extract_strided_slice %39 {offsets = [0, 24], sizes = [8, 8], strides = [1, 1]} : vector<8x32xf32> to vector<8x8xf32>
    %44 = vector.shape_cast %40 : vector<8x8xf32> to vector<1x8x8xf32>
    %45 = vector.shape_cast %41 : vector<8x8xf32> to vector<1x8x8xf32>
    %46 = vector.shape_cast %42 : vector<8x8xf32> to vector<1x8x8xf32>
    %47 = vector.shape_cast %43 : vector<8x8xf32> to vector<1x8x8xf32>
    %48 = tpu.concatenate %44, %45, %46, %47 in 0 : vector<1x8x8xf32>, vector<1x8x8xf32>, vector<1x8x8xf32>, vector<1x8x8xf32> -> vector<4x8x8xf32>
    %49 = arith.truncf %28 : vector<4x8x8xf32> to vector<4x8x8xbf16>
    %50 = arith.truncf %38 : vector<4x8x8xf32> to vector<4x8x8xbf16>
    "tpu.trace_start"() <{level = 10 : i32, message = "hqd,hkd->hqk"}> : () -> ()
    %cst_16 = arith.constant dense<0.000000e+00> : vector<4x8x8xf32>
    %51 = tpu.matmul %49, %50, %cst_16 {dimension_numbers = #tpu.dot_dimension_numbers<[2], [2], [1], [1], [0, 0, 0, 1, 1, 1], [0], [0]>} : vector<4x8x8xbf16>, vector<4x8x8xbf16>, vector<4x8x8xf32> -> vector<4x8x8xf32>
    "tpu.trace_stop"() : () -> ()
    %cst_17 = arith.constant dense<0xFF800000> : vector<4x8xf32>
    %52 = vector.multi_reduction <maximumf>, %51, %cst_17 [2] : vector<4x8x8xf32> to vector<4x8xf32>
    %53 = vector.shape_cast %52 : vector<4x8xf32> to vector<4x8x1xf32>
    %54 = vector.broadcast %53 : vector<4x8x1xf32> to vector<4x8x8xf32>
    %55 = arith.subf %51, %54 : vector<4x8x8xf32>
    %56 = math.exp %55 : vector<4x8x8xf32>
    %cst_18 = arith.constant dense<0.000000e+00> : vector<4x8xf32>
    %57 = vector.multi_reduction <add>, %56, %cst_18 [2] : vector<4x8x8xf32> to vector<4x8xf32>
    %58 = vector.shape_cast %57 : vector<4x8xf32> to vector<4x8x1xf32>
    %59 = tpu.reciprocal %58 {approx = true} : vector<4x8x1xf32> -> vector<4x8x1xf32>
    %60 = vector.broadcast %59 : vector<4x8x1xf32> to vector<4x8x8xf32>
    %61 = arith.mulf %56, %60 : vector<4x8x8xf32>
    %62 = arith.truncf %61 : vector<4x8x8xf32> to vector<4x8x8xbf16>
    %63 = arith.truncf %48 : vector<4x8x8xf32> to vector<4x8x8xbf16>
    "tpu.trace_start"() <{level = 10 : i32, message = "hqk,hkd->hqd"}> : () -> ()
    %cst_19 = arith.constant dense<0.000000e+00> : vector<4x8x8xf32>
    %64 = tpu.matmul %62, %63, %cst_19 {dimension_numbers = #tpu.dot_dimension_numbers<[2], [1], [1], [2], [0, 0, 0, 1, 1, 2], [0], [0]>} : vector<4x8x8xbf16>, vector<4x8x8xbf16>, vector<4x8x8xf32> -> vector<4x8x8xf32>
    "tpu.trace_stop"() : () -> ()
    %65 = vector.extract_strided_slice %64 {offsets = [0, 0, 0], sizes = [1, 8, 8], strides = [1, 1, 1]} : vector<4x8x8xf32> to vector<1x8x8xf32>
    %66 = vector.shape_cast %65 : vector<1x8x8xf32> to vector<8x8xf32>
    %67 = vector.extract_strided_slice %64 {offsets = [1, 0, 0], sizes = [1, 8, 8], strides = [1, 1, 1]} : vector<4x8x8xf32> to vector<1x8x8xf32>
    %68 = vector.shape_cast %67 : vector<1x8x8xf32> to vector<8x8xf32>
    %69 = vector.extract_strided_slice %64 {offsets = [2, 0, 0], sizes = [1, 8, 8], strides = [1, 1, 1]} : vector<4x8x8xf32> to vector<1x8x8xf32>
    %70 = vector.shape_cast %69 : vector<1x8x8xf32> to vector<8x8xf32>
    %71 = vector.extract_strided_slice %64 {offsets = [3, 0, 0], sizes = [1, 8, 8], strides = [1, 1, 1]} : vector<4x8x8xf32> to vector<1x8x8xf32>
    %72 = vector.shape_cast %71 : vector<1x8x8xf32> to vector<8x8xf32>
    %73 = tpu.concatenate %66, %68, %70, %72 in 1 : vector<8x8xf32>, vector<8x8xf32>, vector<8x8xf32>, vector<8x8xf32> -> vector<8x32xf32>
    %74 = arith.truncf %73 : vector<8x32xf32> to vector<8x32xbf16>
    %cst_20 = arith.constant dense<0.000000e+00> : vector<8x32xf32>
    %75 = tpu.matmul %74, %10, %cst_20 {dimension_numbers = #tpu.dot_dimension_numbers<[1], [0], [0], [1], [0, 0, 1, 1], [], []>} : vector<8x32xbf16>, vector<32x32xbf16>, vector<8x32xf32> -> vector<8x32xf32>
    %76 = vector.broadcast %12 : vector<1x32xf32> to vector<8x32xf32>
    %77 = arith.addf %75, %76 : vector<8x32xf32>
    %c0_21 = arith.constant 0 : index
    %c0_22 = arith.constant 0 : index
    %c0_23 = arith.constant 0 : index
    %78 = vector.load %arg9[%c0_21, %c0_22, %c0_23] : memref<1x1x32xf32, #tpu.memory_space<vmem>>, vector<1x1x32xf32>
    %79 = vector.shape_cast %78 : vector<1x1x32xf32> to vector<1x32xf32>
    %c0_24 = arith.constant 0 : index
    %c0_25 = arith.constant 0 : index
    %c0_26 = arith.constant 0 : index
    %80 = vector.load %arg10[%c0_24, %c0_25, %c0_26] : memref<1x1x32xf32, #tpu.memory_space<vmem>>, vector<1x1x32xf32>
    %81 = vector.shape_cast %80 : vector<1x1x32xf32> to vector<1x32xf32>
    %82 = arith.addf %77, %4 : vector<8x32xf32>
    %cst_27 = arith.constant dense<0.000000e+00> : vector<8xf32>
    %83 = vector.multi_reduction <add>, %82, %cst_27 [1] : vector<8x32xf32> to vector<8xf32>
    %84 = vector.shape_cast %83 : vector<8xf32> to vector<8x1xf32>
    %cst_28 = arith.constant 3.200000e+01 : f32
    %85 = vector.broadcast %cst_28 : f32 to vector<8x1xf32>
    %86 = arith.divf %84, %85 : vector<8x1xf32>
    %87 = vector.broadcast %86 : vector<8x1xf32> to vector<8x32xf32>
    %88 = arith.subf %82, %87 : vector<8x32xf32>
    %89 = arith.mulf %88, %88 : vector<8x32xf32>
    %cst_29 = arith.constant dense<0.000000e+00> : vector<8xf32>
    %90 = vector.multi_reduction <add>, %89, %cst_29 [1] : vector<8x32xf32> to vector<8xf32>
    %91 = vector.shape_cast %90 : vector<8xf32> to vector<8x1xf32>
    %cst_30 = arith.constant 3.200000e+01 : f32
    %92 = vector.broadcast %cst_30 : f32 to vector<8x1xf32>
    %93 = arith.divf %91, %92 : vector<8x1xf32>
    %cst_31 = arith.constant 9.99999996E-13 : f32
    %94 = vector.broadcast %cst_31 : f32 to vector<8x1xf32>
    %95 = arith.addf %93, %94 : vector<8x1xf32>
    %96 = math.rsqrt %95 : vector<8x1xf32>
    %97 = vector.broadcast %96 : vector<8x1xf32> to vector<8x32xf32>
    %98 = arith.mulf %88, %97 : vector<8x32xf32>
    %99 = vector.broadcast %79 : vector<1x32xf32> to vector<8x32xf32>
    %100 = arith.mulf %98, %99 : vector<8x32xf32>
    %101 = vector.broadcast %81 : vector<1x32xf32> to vector<8x32xf32>
    %102 = arith.addf %100, %101 : vector<8x32xf32>
    %c0_32 = arith.constant 0 : index
    %c0_33 = arith.constant 0 : index
    %c0_34 = arith.constant 0 : index
    %103 = vector.load %arg11[%c0_32, %c0_33, %c0_34] : memref<1x32x64xbf16, #tpu.memory_space<vmem>>, vector<1x32x64xbf16>
    %104 = vector.shape_cast %103 : vector<1x32x64xbf16> to vector<32x64xbf16>
    %c0_35 = arith.constant 0 : index
    %c0_36 = arith.constant 0 : index
    %c0_37 = arith.constant 0 : index
    %105 = vector.load %arg12[%c0_35, %c0_36, %c0_37] : memref<1x1x64xf32, #tpu.memory_space<vmem>>, vector<1x1x64xf32>
    %106 = vector.shape_cast %105 : vector<1x1x64xf32> to vector<1x64xf32>
    %c0_38 = arith.constant 0 : index
    %c0_39 = arith.constant 0 : index
    %c0_40 = arith.constant 0 : index
    %107 = vector.load %arg13[%c0_38, %c0_39, %c0_40] : memref<1x64x32xbf16, #tpu.memory_space<vmem>>, vector<1x64x32xbf16>
    %108 = vector.shape_cast %107 : vector<1x64x32xbf16> to vector<64x32xbf16>
    %c0_41 = arith.constant 0 : index
    %c0_42 = arith.constant 0 : index
    %c0_43 = arith.constant 0 : index
    %109 = vector.load %arg14[%c0_41, %c0_42, %c0_43] : memref<1x1x32xf32, #tpu.memory_space<vmem>>, vector<1x1x32xf32>
    %110 = vector.shape_cast %109 : vector<1x1x32xf32> to vector<1x32xf32>
    %111 = arith.truncf %102 : vector<8x32xf32> to vector<8x32xbf16>
    %cst_44 = arith.constant dense<0.000000e+00> : vector<8x64xf32>
    %112 = tpu.matmul %111, %104, %cst_44 {dimension_numbers = #tpu.dot_dimension_numbers<[1], [0], [0], [1], [0, 0, 1, 1], [], []>} : vector<8x32xbf16>, vector<32x64xbf16>, vector<8x64xf32> -> vector<8x64xf32>
    %113 = vector.broadcast %106 : vector<1x64xf32> to vector<8x64xf32>
    %114 = arith.addf %112, %113 : vector<8x64xf32>
    %cst_45 = arith.constant 5.000000e-01 : f32
    %115 = vector.broadcast %cst_45 : f32 to vector<8x64xf32>
    %116 = arith.mulf %115, %114 : vector<8x64xf32>
    %cst_46 = arith.constant 4.471500e-02 : f32
    %117 = vector.broadcast %cst_46 : f32 to vector<8x64xf32>
    %118 = arith.mulf %117, %114 : vector<8x64xf32>
    %119 = arith.mulf %118, %114 : vector<8x64xf32>
    %120 = arith.mulf %119, %114 : vector<8x64xf32>
    %121 = arith.addf %114, %120 : vector<8x64xf32>
    %cst_47 = arith.constant 0.797884583 : f32
    %122 = vector.broadcast %cst_47 : f32 to vector<8x64xf32>
    %123 = arith.mulf %122, %121 : vector<8x64xf32>
    %124 = math.tanh %123 : vector<8x64xf32>
    %cst_48 = arith.constant 1.000000e+00 : f32
    %125 = vector.broadcast %cst_48 : f32 to vector<8x64xf32>
    %126 = arith.addf %125, %124 : vector<8x64xf32>
    %127 = arith.mulf %116, %126 : vector<8x64xf32>
    %128 = arith.truncf %127 : vector<8x64xf32> to vector<8x64xbf16>
    %cst_49 = arith.constant dense<0.000000e+00> : vector<8x32xf32>
    %129 = tpu.matmul %128, %108, %cst_49 {dimension_numbers = #tpu.dot_dimension_numbers<[1], [0], [0], [1], [0, 0, 1, 1], [], []>} : vector<8x64xbf16>, vector<64x32xbf16>, vector<8x32xf32> -> vector<8x32xf32>
    %130 = vector.broadcast %110 : vector<1x32xf32> to vector<8x32xf32>
    %131 = arith.addf %129, %130 : vector<8x32xf32>
    %c0_50 = arith.constant 0 : index
    %c0_51 = arith.constant 0 : index
    %c0_52 = arith.constant 0 : index
    %132 = vector.load %arg15[%c0_50, %c0_51, %c0_52] : memref<1x1x32xf32, #tpu.memory_space<vmem>>, vector<1x1x32xf32>
    %133 = vector.shape_cast %132 : vector<1x1x32xf32> to vector<1x32xf32>
    %c0_53 = arith.constant 0 : index
    %c0_54 = arith.constant 0 : index
    %c0_55 = arith.constant 0 : index
    %134 = vector.load %arg16[%c0_53, %c0_54, %c0_55] : memref<1x1x32xf32, #tpu.memory_space<vmem>>, vector<1x1x32xf32>
    %135 = vector.shape_cast %134 : vector<1x1x32xf32> to vector<1x32xf32>
    %136 = arith.addf %131, %102 : vector<8x32xf32>
    %cst_56 = arith.constant dense<0.000000e+00> : vector<8xf32>
    %137 = vector.multi_reduction <add>, %136, %cst_56 [1] : vector<8x32xf32> to vector<8xf32>
    %138 = vector.shape_cast %137 : vector<8xf32> to vector<8x1xf32>
    %cst_57 = arith.constant 3.200000e+01 : f32
    %139 = vector.broadcast %cst_57 : f32 to vector<8x1xf32>
    %140 = arith.divf %138, %139 : vector<8x1xf32>
    %141 = vector.broadcast %140 : vector<8x1xf32> to vector<8x32xf32>
    %142 = arith.subf %136, %141 : vector<8x32xf32>
    %143 = arith.mulf %142, %142 : vector<8x32xf32>
    %cst_58 = arith.constant dense<0.000000e+00> : vector<8xf32>
    %144 = vector.multi_reduction <add>, %143, %cst_58 [1] : vector<8x32xf32> to vector<8xf32>
    %145 = vector.shape_cast %144 : vector<8xf32> to vector<8x1xf32>
    %cst_59 = arith.constant 3.200000e+01 : f32
    %146 = vector.broadcast %cst_59 : f32 to vector<8x1xf32>
    %147 = arith.divf %145, %146 : vector<8x1xf32>
    %cst_60 = arith.constant 9.99999996E-13 : f32
    %148 = vector.broadcast %cst_60 : f32 to vector<8x1xf32>
    %149 = arith.addf %147, %148 : vector<8x1xf32>
    %150 = math.rsqrt %149 : vector<8x1xf32>
    %151 = vector.broadcast %150 : vector<8x1xf32> to vector<8x32xf32>
    %152 = arith.mulf %142, %151 : vector<8x32xf32>
    %153 = vector.broadcast %133 : vector<1x32xf32> to vector<8x32xf32>
    %154 = arith.mulf %152, %153 : vector<8x32xf32>
    %155 = vector.broadcast %135 : vector<1x32xf32> to vector<8x32xf32>
    %156 = arith.addf %154, %155 : vector<8x32xf32>
    %c0_61 = arith.constant 0 : index
    %c0_62 = arith.constant 0 : index
    %c0_63 = arith.constant 0 : index
    %157 = vector.load %arg37[%c0_61, %c0_62, %c0_63] : memref<1x8x32xf32, #tpu.memory_space<vmem>>, vector<1x8x32xf32>
    %158 = vector.shape_cast %157 : vector<1x8x32xf32> to vector<8x32xf32>
    %159 = vector.shape_cast %156 : vector<8x32xf32> to vector<1x8x32xf32>
    tpu.vector_store %arg37[%c0_61, %c0_62, %c0_63], %159 {strides = array<i32>} : memref<1x8x32xf32, #tpu.memory_space<vmem>>, vector<1x8x32xf32>,
    %160 = arith.index_cast %arg1 : i32 to index
    %161 = memref.load %arg4[%160] : memref<2xf32, #tpu.memory_space<smem>>
    %c0_64 = arith.constant 0 : index
    %c0_65 = arith.constant 0 : index
    %c0_66 = arith.constant 0 : index
    %162 = vector.load %arg17[%c0_64, %c0_65, %c0_66] : memref<1x32x8xbf16, #tpu.memory_space<vmem>>, vector<1x32x8xbf16>
    %163 = vector.shape_cast %162 : vector<1x32x8xbf16> to vector<32x8xbf16>
    %164 = arith.truncf %156 : vector<8x32xf32> to vector<8x32xbf16>
    %cst_67 = arith.constant dense<0.000000e+00> : vector<8x8xf32>
    %165 = tpu.matmul %164, %163, %cst_67 {dimension_numbers = #tpu.dot_dimension_numbers<[1], [0], [0], [1], [0, 0, 1, 1], [], []>} : vector<8x32xbf16>, vector<32x8xbf16>, vector<8x8xf32> -> vector<8x8xf32>
    %c0_68 = arith.constant 0 : index
    %c0_69 = arith.constant 0 : index
    %c0_70 = arith.constant 0 : index
    %166 = vector.load %arg18[%c0_68, %c0_69, %c0_70] : memref<1x1x8xf32, #tpu.memory_space<vmem>>, vector<1x1x8xf32>
    %167 = vector.shape_cast %166 : vector<1x1x8xf32> to vector<1x8xf32>
    %168 = vector.broadcast %167 : vector<1x8xf32> to vector<8x8xf32>
    %169 = arith.addf %165, %168 : vector<8x8xf32>
    %c0_71 = arith.constant 0 : index
    %c0_72 = arith.constant 0 : index
    %c0_73 = arith.constant 0 : index
    %170 = vector.load %arg38[%c0_71, %c0_72, %c0_73] : memref<1x8x8xf32, #tpu.memory_space<vmem>>, vector<1x8x8xf32>
    %171 = vector.shape_cast %170 : vector<1x8x8xf32> to vector<8x8xf32>
    %172 = vector.broadcast %161 : f32 to vector<8x8xf32>
    %173 = arith.mulf %172, %171 : vector<8x8xf32>
    %cst_74 = arith.constant 1.000000e+00 : f32
    %174 = arith.subf %cst_74, %161 : f32
    %175 = vector.broadcast %174 : f32 to vector<8x8xf32>
    %176 = arith.mulf %175, %169 : vector<8x8xf32>
    %177 = arith.addf %173, %176 : vector<8x8xf32>
    %c0_75 = arith.constant 0 : index
    %c0_76 = arith.constant 0 : index
    %c0_77 = arith.constant 0 : index
    %178 = vector.load %arg19[%c0_75, %c0_76, %c0_77] : memref<1x8x24xbf16, #tpu.memory_space<vmem>>, vector<1x8x24xbf16>
    %179 = vector.shape_cast %178 : vector<1x8x24xbf16> to vector<8x24xbf16>
    %c0_78 = arith.constant 0 : index
    %c0_79 = arith.constant 0 : index
    %c0_80 = arith.constant 0 : index
    %180 = vector.load %arg20[%c0_78, %c0_79, %c0_80] : memref<1x1x24xf32, #tpu.memory_space<vmem>>, vector<1x1x24xf32>
    %181 = vector.shape_cast %180 : vector<1x1x24xf32> to vector<1x24xf32>
    %c0_81 = arith.constant 0 : index
    %c0_82 = arith.constant 0 : index
    %c0_83 = arith.constant 0 : index
    %182 = vector.load %arg21[%c0_81, %c0_82, %c0_83] : memref<1x8x8xbf16, #tpu.memory_space<vmem>>, vector<1x8x8xbf16>
    %183 = vector.shape_cast %182 : vector<1x8x8xbf16> to vector<8x8xbf16>
    %c0_84 = arith.constant 0 : index
    %c0_85 = arith.constant 0 : index
    %c0_86 = arith.constant 0 : index
    %184 = vector.load %arg22[%c0_84, %c0_85, %c0_86] : memref<1x1x8xf32, #tpu.memory_space<vmem>>, vector<1x1x8xf32>
    %185 = vector.shape_cast %184 : vector<1x1x8xf32> to vector<1x8xf32>
    %186 = arith.truncf %177 : vector<8x8xf32> to vector<8x8xbf16>
    %cst_87 = arith.constant dense<0.000000e+00> : vector<8x24xf32>
    %187 = tpu.matmul %186, %179, %cst_87 {dimension_numbers = #tpu.dot_dimension_numbers<[1], [0], [0], [1], [0, 0, 1, 1], [], []>} : vector<8x8xbf16>, vector<8x24xbf16>, vector<8x24xf32> -> vector<8x24xf32>
    %188 = vector.broadcast %181 : vector<1x24xf32> to vector<8x24xf32>
    %189 = arith.addf %187, %188 : vector<8x24xf32>
    %190 = vector.extract_strided_slice %189 {offsets = [0, 0], sizes = [8, 8], strides = [1, 1]} : vector<8x24xf32> to vector<8x8xf32>
    %cst_88 = arith.constant 0.353553385 : f32
    %191 = vector.broadcast %cst_88 : f32 to vector<8x8xf32>
    %192 = arith.mulf %190, %191 : vector<8x8xf32>
    %193 = vector.shape_cast %192 : vector<8x8xf32> to vector<1x8x8xf32>
    %194 = vector.extract_strided_slice %189 {offsets = [0, 8], sizes = [8, 8], strides = [1, 1]} : vector<8x24xf32> to vector<8x8xf32>
    %195 = vector.shape_cast %194 : vector<8x8xf32> to vector<1x8x8xf32>
    %196 = vector.extract_strided_slice %189 {offsets = [0, 16], sizes = [8, 8], strides = [1, 1]} : vector<8x24xf32> to vector<8x8xf32>
    %197 = vector.shape_cast %196 : vector<8x8xf32> to vector<1x8x8xf32>
    %198 = arith.truncf %193 : vector<1x8x8xf32> to vector<1x8x8xbf16>
    %199 = arith.truncf %195 : vector<1x8x8xf32> to vector<1x8x8xbf16>
    "tpu.trace_start"() <{level = 10 : i32, message = "hqd,hkd->hqk"}> : () -> ()
    %cst_89 = arith.constant dense<0.000000e+00> : vector<1x8x8xf32>
    %200 = tpu.matmul %198, %199, %cst_89 {dimension_numbers = #tpu.dot_dimension_numbers<[2], [2], [1], [1], [0, 0, 0, 1, 1, 1], [0], [0]>} : vector<1x8x8xbf16>, vector<1x8x8xbf16>, vector<1x8x8xf32> -> vector<1x8x8xf32>
    "tpu.trace_stop"() : () -> ()
    %cst_90 = arith.constant dense<0xFF800000> : vector<1x8xf32>
    %201 = vector.multi_reduction <maximumf>, %200, %cst_90 [2] : vector<1x8x8xf32> to vector<1x8xf32>
    %202 = vector.shape_cast %201 : vector<1x8xf32> to vector<1x8x1xf32>
    %203 = vector.broadcast %202 : vector<1x8x1xf32> to vector<1x8x8xf32>
    %204 = arith.subf %200, %203 : vector<1x8x8xf32>
    %205 = math.exp %204 : vector<1x8x8xf32>
    %cst_91 = arith.constant dense<0.000000e+00> : vector<1x8xf32>
    %206 = vector.multi_reduction <add>, %205, %cst_91 [2] : vector<1x8x8xf32> to vector<1x8xf32>
    %207 = vector.shape_cast %206 : vector<1x8xf32> to vector<1x8x1xf32>
    %208 = tpu.reciprocal %207 {approx = true} : vector<1x8x1xf32> -> vector<1x8x1xf32>
    %209 = vector.broadcast %208 : vector<1x8x1xf32> to vector<1x8x8xf32>
    %210 = arith.mulf %205, %209 : vector<1x8x8xf32>
    %211 = arith.truncf %210 : vector<1x8x8xf32> to vector<1x8x8xbf16>
    %212 = arith.truncf %197 : vector<1x8x8xf32> to vector<1x8x8xbf16>
    "tpu.trace_start"() <{level = 10 : i32, message = "hqk,hkd->hqd"}> : () -> ()
    %cst_92 = arith.constant dense<0.000000e+00> : vector<1x8x8xf32>
    %213 = tpu.matmul %211, %212, %cst_92 {dimension_numbers = #tpu.dot_dimension_numbers<[2], [1], [1], [2], [0, 0, 0, 1, 1, 2], [0], [0]>} : vector<1x8x8xbf16>, vector<1x8x8xbf16>, vector<1x8x8xf32> -> vector<1x8x8xf32>
    "tpu.trace_stop"() : () -> ()
    %214 = vector.shape_cast %213 : vector<1x8x8xf32> to vector<8x8xf32>
    %215 = arith.truncf %214 : vector<8x8xf32> to vector<8x8xbf16>
    %cst_93 = arith.constant dense<0.000000e+00> : vector<8x8xf32>
    %216 = tpu.matmul %215, %183, %cst_93 {dimension_numbers = #tpu.dot_dimension_numbers<[1], [0], [0], [1], [0, 0, 1, 1], [], []>} : vector<8x8xbf16>, vector<8x8xbf16>, vector<8x8xf32> -> vector<8x8xf32>
    %217 = vector.broadcast %185 : vector<1x8xf32> to vector<8x8xf32>
    %218 = arith.addf %216, %217 : vector<8x8xf32>
    %c0_94 = arith.constant 0 : index
    %c0_95 = arith.constant 0 : index
    %c0_96 = arith.constant 0 : index
    %219 = vector.load %arg23[%c0_94, %c0_95, %c0_96] : memref<1x1x8xf32, #tpu.memory_space<vmem>>, vector<1x1x8xf32>
    %220 = vector.shape_cast %219 : vector<1x1x8xf32> to vector<1x8xf32>
    %c0_97 = arith.constant 0 : index
    %c0_98 = arith.constant 0 : index
    %c0_99 = arith.constant 0 : index
    %221 = vector.load %arg24[%c0_97, %c0_98, %c0_99] : memref<1x1x8xf32, #tpu.memory_space<vmem>>, vector<1x1x8xf32>
    %222 = vector.shape_cast %221 : vector<1x1x8xf32> to vector<1x8xf32>
    %223 = arith.addf %218, %177 : vector<8x8xf32>
    %cst_100 = arith.constant dense<0.000000e+00> : vector<8xf32>
    %224 = vector.multi_reduction <add>, %223, %cst_100 [1] : vector<8x8xf32> to vector<8xf32>
    %225 = vector.shape_cast %224 : vector<8xf32> to vector<8x1xf32>
    %cst_101 = arith.constant 8.000000e+00 : f32
    %226 = vector.broadcast %cst_101 : f32 to vector<8x1xf32>
    %227 = arith.divf %225, %226 : vector<8x1xf32>
    %228 = vector.broadcast %227 : vector<8x1xf32> to vector<8x8xf32>
    %229 = arith.subf %223, %228 : vector<8x8xf32>
    %230 = arith.mulf %229, %229 : vector<8x8xf32>
    %cst_102 = arith.constant dense<0.000000e+00> : vector<8xf32>
    %231 = vector.multi_reduction <add>, %230, %cst_102 [1] : vector<8x8xf32> to vector<8xf32>
    %232 = vector.shape_cast %231 : vector<8xf32> to vector<8x1xf32>
    %cst_103 = arith.constant 8.000000e+00 : f32
    %233 = vector.broadcast %cst_103 : f32 to vector<8x1xf32>
    %234 = arith.divf %232, %233 : vector<8x1xf32>
    %cst_104 = arith.constant 9.99999996E-13 : f32
    %235 = vector.broadcast %cst_104 : f32 to vector<8x1xf32>
    %236 = arith.addf %234, %235 : vector<8x1xf32>
    %237 = math.rsqrt %236 : vector<8x1xf32>
    %238 = vector.broadcast %237 : vector<8x1xf32> to vector<8x8xf32>
    %239 = arith.mulf %229, %238 : vector<8x8xf32>
    %240 = vector.broadcast %220 : vector<1x8xf32> to vector<8x8xf32>
    %241 = arith.mulf %239, %240 : vector<8x8xf32>
    %242 = vector.broadcast %222 : vector<1x8xf32> to vector<8x8xf32>
    %243 = arith.addf %241, %242 : vector<8x8xf32>
    %c0_105 = arith.constant 0 : index
    %c0_106 = arith.constant 0 : index
    %c0_107 = arith.constant 0 : index
    %244 = vector.load %arg25[%c0_105, %c0_106, %c0_107] : memref<1x8x16xbf16, #tpu.memory_space<vmem>>, vector<1x8x16xbf16>
    %245 = vector.shape_cast %244 : vector<1x8x16xbf16> to vector<8x16xbf16>
    %c0_108 = arith.constant 0 : index
    %c0_109 = arith.constant 0 : index
    %c0_110 = arith.constant 0 : index
    %246 = vector.load %arg26[%c0_108, %c0_109, %c0_110] : memref<1x1x16xf32, #tpu.memory_space<vmem>>, vector<1x1x16xf32>
    %247 = vector.shape_cast %246 : vector<1x1x16xf32> to vector<1x16xf32>
    %c0_111 = arith.constant 0 : index
    %c0_112 = arith.constant 0 : index
    %c0_113 = arith.constant 0 : index
    %248 = vector.load %arg27[%c0_111, %c0_112, %c0_113] : memref<1x16x8xbf16, #tpu.memory_space<vmem>>, vector<1x16x8xbf16>
    %249 = vector.shape_cast %248 : vector<1x16x8xbf16> to vector<16x8xbf16>
    %c0_114 = arith.constant 0 : index
    %c0_115 = arith.constant 0 : index
    %c0_116 = arith.constant 0 : index
    %250 = vector.load %arg28[%c0_114, %c0_115, %c0_116] : memref<1x1x8xf32, #tpu.memory_space<vmem>>, vector<1x1x8xf32>
    %251 = vector.shape_cast %250 : vector<1x1x8xf32> to vector<1x8xf32>
    %252 = arith.truncf %243 : vector<8x8xf32> to vector<8x8xbf16>
    %cst_117 = arith.constant dense<0.000000e+00> : vector<8x16xf32>
    %253 = tpu.matmul %252, %245, %cst_117 {dimension_numbers = #tpu.dot_dimension_numbers<[1], [0], [0], [1], [0, 0, 1, 1], [], []>} : vector<8x8xbf16>, vector<8x16xbf16>, vector<8x16xf32> -> vector<8x16xf32>
    %254 = vector.broadcast %247 : vector<1x16xf32> to vector<8x16xf32>
    %255 = arith.addf %253, %254 : vector<8x16xf32>
    %cst_118 = arith.constant 5.000000e-01 : f32
    %256 = vector.broadcast %cst_118 : f32 to vector<8x16xf32>
    %257 = arith.mulf %256, %255 : vector<8x16xf32>
    %cst_119 = arith.constant 4.471500e-02 : f32
    %258 = vector.broadcast %cst_119 : f32 to vector<8x16xf32>
    %259 = arith.mulf %258, %255 : vector<8x16xf32>
    %260 = arith.mulf %259, %255 : vector<8x16xf32>
    %261 = arith.mulf %260, %255 : vector<8x16xf32>
    %262 = arith.addf %255, %261 : vector<8x16xf32>
    %cst_120 = arith.constant 0.797884583 : f32
    %263 = vector.broadcast %cst_120 : f32 to vector<8x16xf32>
    %264 = arith.mulf %263, %262 : vector<8x16xf32>
    %265 = math.tanh %264 : vector<8x16xf32>
    %cst_121 = arith.constant 1.000000e+00 : f32
    %266 = vector.broadcast %cst_121 : f32 to vector<8x16xf32>
    %267 = arith.addf %266, %265 : vector<8x16xf32>
    %268 = arith.mulf %257, %267 : vector<8x16xf32>
    %269 = arith.truncf %268 : vector<8x16xf32> to vector<8x16xbf16>
    %cst_122 = arith.constant dense<0.000000e+00> : vector<8x8xf32>
    %270 = tpu.matmul %269, %249, %cst_122 {dimension_numbers = #tpu.dot_dimension_numbers<[1], [0], [0], [1], [0, 0, 1, 1], [], []>} : vector<8x16xbf16>, vector<16x8xbf16>, vector<8x8xf32> -> vector<8x8xf32>
    %271 = vector.broadcast %251 : vector<1x8xf32> to vector<8x8xf32>
    %272 = arith.addf %270, %271 : vector<8x8xf32>
    %c0_123 = arith.constant 0 : index
    %c0_124 = arith.constant 0 : index
    %c0_125 = arith.constant 0 : index
    %273 = vector.load %arg29[%c0_123, %c0_124, %c0_125] : memref<1x1x8xf32, #tpu.memory_space<vmem>>, vector<1x1x8xf32>
    %274 = vector.shape_cast %273 : vector<1x1x8xf32> to vector<1x8xf32>
    %c0_126 = arith.constant 0 : index
    %c0_127 = arith.constant 0 : index
    %c0_128 = arith.constant 0 : index
    %275 = vector.load %arg30[%c0_126, %c0_127, %c0_128] : memref<1x1x8xf32, #tpu.memory_space<vmem>>, vector<1x1x8xf32>
    %276 = vector.shape_cast %275 : vector<1x1x8xf32> to vector<1x8xf32>
    %277 = arith.addf %272, %243 : vector<8x8xf32>
    %cst_129 = arith.constant dense<0.000000e+00> : vector<8xf32>
    %278 = vector.multi_reduction <add>, %277, %cst_129 [1] : vector<8x8xf32> to vector<8xf32>
    %279 = vector.shape_cast %278 : vector<8xf32> to vector<8x1xf32>
    %cst_130 = arith.constant 8.000000e+00 : f32
    %280 = vector.broadcast %cst_130 : f32 to vector<8x1xf32>
    %281 = arith.divf %279, %280 : vector<8x1xf32>
    %282 = vector.broadcast %281 : vector<8x1xf32> to vector<8x8xf32>
    %283 = arith.subf %277, %282 : vector<8x8xf32>
    %284 = arith.mulf %283, %283 : vector<8x8xf32>
    %cst_131 = arith.constant dense<0.000000e+00> : vector<8xf32>
    %285 = vector.multi_reduction <add>, %284, %cst_131 [1] : vector<8x8xf32> to vector<8xf32>
    %286 = vector.shape_cast %285 : vector<8xf32> to vector<8x1xf32>
    %cst_132 = arith.constant 8.000000e+00 : f32
    %287 = vector.broadcast %cst_132 : f32 to vector<8x1xf32>
    %288 = arith.divf %286, %287 : vector<8x1xf32>
    %cst_133 = arith.constant 9.99999996E-13 : f32
    %289 = vector.broadcast %cst_133 : f32 to vector<8x1xf32>
    %290 = arith.addf %288, %289 : vector<8x1xf32>
    %291 = math.rsqrt %290 : vector<8x1xf32>
    %292 = vector.broadcast %291 : vector<8x1xf32> to vector<8x8xf32>
    %293 = arith.mulf %283, %292 : vector<8x8xf32>
    %294 = vector.broadcast %274 : vector<1x8xf32> to vector<8x8xf32>
    %295 = arith.mulf %293, %294 : vector<8x8xf32>
    %296 = vector.broadcast %276 : vector<1x8xf32> to vector<8x8xf32>
    %297 = arith.addf %295, %296 : vector<8x8xf32>
    %c0_134 = arith.constant 0 : index
    %c0_135 = arith.constant 0 : index
    %c0_136 = arith.constant 0 : index
    %298 = vector.load %arg38[%c0_134, %c0_135, %c0_136] : memref<1x8x8xf32, #tpu.memory_space<vmem>>, vector<1x8x8xf32>
    %299 = vector.shape_cast %298 : vector<1x8x8xf32> to vector<8x8xf32>
    %300 = vector.shape_cast %297 : vector<8x8xf32> to vector<1x8x8xf32>
    tpu.vector_store %arg38[%c0_134, %c0_135, %c0_136], %300 {strides = array<i32>} : memref<1x8x8xf32, #tpu.memory_space<vmem>>, vector<1x8x8xf32>,
    %c1_i32 = arith.constant 1 : i32
    %301 = arith.cmpi eq, %arg1, %c1_i32 : i32
    %302 = arith.extui %301 : i1 to i32
    %c0_i32_137 = arith.constant 0 : i32
    %303 = arith.cmpi ne, %302, %c0_i32_137 : i32
    scf.if %303 {
      %304 = vector.extract_strided_slice %156 {offsets = [0, 0], sizes = [1, 32], strides = [1, 1]} : vector<8x32xf32> to vector<1x32xf32>
      %305 = vector.extract_strided_slice %297 {offsets = [0, 0], sizes = [1, 8], strides = [1, 1]} : vector<8x8xf32> to vector<1x8xf32>
      %c0_138 = arith.constant 0 : index
      %c0_139 = arith.constant 0 : index
      %306 = vector.load %arg31[%c0_138, %c0_139] : memref<8x32xf32, #tpu.memory_space<vmem>>, vector<8x32xf32>
      %cst_140 = arith.constant dense<0.000000e+00> : vector<1x32xf32>
      %307 = tpu.matmul %305, %306, %cst_140 {dimension_numbers = #tpu.dot_dimension_numbers<[1], [0], [0], [1], [0, 0, 1, 1], [], []>} : vector<1x8xf32>, vector<8x32xf32>, vector<1x32xf32> -> vector<1x32xf32>
      %c0_141 = arith.constant 0 : index
      %c0_142 = arith.constant 0 : index
      %308 = vector.load %arg32[%c0_141, %c0_142] : memref<1x32xf32, #tpu.memory_space<vmem>>, vector<1x32xf32>
      %309 = arith.addf %307, %308 : vector<1x32xf32>
      %310 = arith.addf %304, %309 : vector<1x32xf32>
      %c0_143 = arith.constant 0 : index
      %c0_144 = arith.constant 0 : index
      %311 = vector.load %arg33[%c0_143, %c0_144] : memref<32x32xf32, #tpu.memory_space<vmem>>, vector<32x32xf32>
      %cst_145 = arith.constant dense<0.000000e+00> : vector<1x32xf32>
      %312 = tpu.matmul %310, %311, %cst_145 {dimension_numbers = #tpu.dot_dimension_numbers<[1], [0], [0], [1], [0, 0, 1, 1], [], []>} : vector<1x32xf32>, vector<32x32xf32>, vector<1x32xf32> -> vector<1x32xf32>
      %c0_146 = arith.constant 0 : index
      %c0_147 = arith.constant 0 : index
      %313 = vector.load %arg34[%c0_146, %c0_147] : memref<1x32xf32, #tpu.memory_space<vmem>>, vector<1x32xf32>
      %314 = arith.addf %312, %313 : vector<1x32xf32>
      %315 = math.tanh %314 : vector<1x32xf32>
      %c0_148 = arith.constant 0 : index
      %c0_149 = arith.constant 0 : index
      %316 = vector.load %arg35[%c0_148, %c0_149] : memref<32x128xf32, #tpu.memory_space<vmem>>, vector<32x128xf32>
      %cst_150 = arith.constant dense<0.000000e+00> : vector<1x128xf32>
      %317 = tpu.matmul %315, %316, %cst_150 {dimension_numbers = #tpu.dot_dimension_numbers<[1], [0], [0], [1], [0, 0, 1, 1], [], []>} : vector<1x32xf32>, vector<32x128xf32>, vector<1x128xf32> -> vector<1x128xf32>
      %c0_151 = arith.constant 0 : index
      %c0_152 = arith.constant 0 : index
      %318 = vector.load %arg36[%c0_151, %c0_152] : memref<1x128xf32, #tpu.memory_space<vmem>>, vector<1x128xf32>
      %319 = arith.addf %317, %318 : vector<1x128xf32>
      %c0_153 = arith.constant 0 : index
      %c0_154 = arith.constant 0 : index
      %c0_155 = arith.constant 0 : index
      %320 = vector.load %arg39[%c0_153, %c0_154, %c0_155] : memref<1x1x128xf32, #tpu.memory_space<vmem>>, vector<1x1x128xf32>
      %321 = vector.shape_cast %320 : vector<1x1x128xf32> to vector<1x128xf32>
      %322 = vector.shape_cast %319 : vector<1x128xf32> to vector<1x1x128xf32>
      tpu.vector_store %arg39[%c0_153, %c0_154, %c0_155], %322 {strides = array<i32>} : memref<1x1x128xf32, #tpu.memory_space<vmem>>, vector<1x1x128xf32>,
    } else {
    }
    return
  }
  func.func @transform_0(%arg0: i32, %arg1: i32) -> (i32, i32, i32) {
    %c0_i32 = arith.constant 0 : i32
    %c0_i32_0 = arith.constant 0 : i32
    %c0_i32_1 = arith.constant 0 : i32
    return %arg0, %c0_i32, %c0_i32_0 : i32, i32, i32
  }
  func.func @transform_1(%arg0: i32, %arg1: i32) -> (i32, i32, i32) {
    %c0_i32 = arith.constant 0 : i32
    %c0_i32_0 = arith.constant 0 : i32
    %c0_i32_1 = arith.constant 0 : i32
    return %arg0, %c0_i32, %c0_i32_0 : i32, i32, i32
  }
  func.func @transform_2(%arg0: i32, %arg1: i32) -> i32 {
    %c0_i32 = arith.constant 0 : i32
    %c0_i32_0 = arith.constant 0 : i32
    return %c0_i32 : i32
  }
  func.func @transform_3(%arg0: i32, %arg1: i32) -> (i32, i32, i32) {
    %c0_i32 = arith.constant 0 : i32
    %c0_i32_0 = arith.constant 0 : i32
    %c0_i32_1 = arith.constant 0 : i32
    return %arg1, %c0_i32, %c0_i32_0 : i32, i32, i32
  }
  func.func @transform_4(%arg0: i32, %arg1: i32) -> (i32, i32, i32) {
    %c0_i32 = arith.constant 0 : i32
    %c0_i32_0 = arith.constant 0 : i32
    %c0_i32_1 = arith.constant 0 : i32
    return %arg1, %c0_i32, %c0_i32_0 : i32, i32, i32
  }
  func.func @transform_5(%arg0: i32, %arg1: i32) -> (i32, i32, i32) {
    %c0_i32 = arith.constant 0 : i32
    %c0_i32_0 = arith.constant 0 : i32
    %c0_i32_1 = arith.constant 0 : i32
    return %arg1, %c0_i32, %c0_i32_0 : i32, i32, i32
  }
  func.func @transform_6(%arg0: i32, %arg1: i32) -> (i32, i32, i32) {
    %c0_i32 = arith.constant 0 : i32
    %c0_i32_0 = arith.constant 0 : i32
    %c0_i32_1 = arith.constant 0 : i32
    return %arg1, %c0_i32, %c0_i32_0 : i32, i32, i32
  }
  func.func @transform_7(%arg0: i32, %arg1: i32) -> (i32, i32, i32) {
    %c0_i32 = arith.constant 0 : i32
    %c0_i32_0 = arith.constant 0 : i32
    %c0_i32_1 = arith.constant 0 : i32
    return %arg1, %c0_i32, %c0_i32_0 : i32, i32, i32
  }
  func.func @transform_8(%arg0: i32, %arg1: i32) -> (i32, i32, i32) {
    %c0_i32 = arith.constant 0 : i32
    %c0_i32_0 = arith.constant 0 : i32
    %c0_i32_1 = arith.constant 0 : i32
    return %arg1, %c0_i32, %c0_i32_0 : i32, i32, i32
  }
  func.func @transform_9(%arg0: i32, %arg1: i32) -> (i32, i32, i32) {
    %c0_i32 = arith.constant 0 : i32
    %c0_i32_0 = arith.constant 0 : i32
    %c0_i32_1 = arith.constant 0 : i32
    return %arg1, %c0_i32, %c0_i32_0 : i32, i32, i32
  }
  func.func @transform_10(%arg0: i32, %arg1: i32) -> (i32, i32, i32) {
    %c0_i32 = arith.constant 0 : i32
    %c0_i32_0 = arith.constant 0 : i32
    %c0_i32_1 = arith.constant 0 : i32
    return %arg1, %c0_i32, %c0_i32_0 : i32, i32, i32
  }
  func.func @transform_11(%arg0: i32, %arg1: i32) -> (i32, i32, i32) {
    %c0_i32 = arith.constant 0 : i32
    %c0_i32_0 = arith.constant 0 : i32
    %c0_i32_1 = arith.constant 0 : i32
    return %arg1, %c0_i32, %c0_i32_0 : i32, i32, i32
  }
  func.func @transform_12(%arg0: i32, %arg1: i32) -> (i32, i32, i32) {
    %c0_i32 = arith.constant 0 : i32
    %c0_i32_0 = arith.constant 0 : i32
    %c0_i32_1 = arith.constant 0 : i32
    return %arg1, %c0_i32, %c0_i32_0 : i32, i32, i32
  }
  func.func @transform_13(%arg0: i32, %arg1: i32) -> (i32, i32, i32) {
    %c0_i32 = arith.constant 0 : i32
    %c0_i32_0 = arith.constant 0 : i32
    %c0_i32_1 = arith.constant 0 : i32
    return %arg1, %c0_i32, %c0_i32_0 : i32, i32, i32
  }
  func.func @transform_14(%arg0: i32, %arg1: i32) -> (i32, i32, i32) {
    %c0_i32 = arith.constant 0 : i32
    %c0_i32_0 = arith.constant 0 : i32
    %c0_i32_1 = arith.constant 0 : i32
    return %arg1, %c0_i32, %c0_i32_0 : i32, i32, i32
  }
  func.func @transform_15(%arg0: i32, %arg1: i32) -> (i32, i32, i32) {
    %c0_i32 = arith.constant 0 : i32
    %c0_i32_0 = arith.constant 0 : i32
    %c0_i32_1 = arith.constant 0 : i32
    return %arg1, %c0_i32, %c0_i32_0 : i32, i32, i32
  }
  func.func @transform_16(%arg0: i32, %arg1: i32) -> (i32, i32, i32) {
    %c0_i32 = arith.constant 0 : i32
    %c0_i32_0 = arith.constant 0 : i32
    %c0_i32_1 = arith.constant 0 : i32
    return %arg1, %c0_i32, %c0_i32_0 : i32, i32, i32
  }
  func.func @transform_17(%arg0: i32, %arg1: i32) -> (i32, i32, i32) {
    %c0_i32 = arith.constant 0 : i32
    %c0_i32_0 = arith.constant 0 : i32
    %c0_i32_1 = arith.constant 0 : i32
    return %arg1, %c0_i32, %c0_i32_0 : i32, i32, i32
  }
  func.func @transform_18(%arg0: i32, %arg1: i32) -> (i32, i32, i32) {
    %c0_i32 = arith.constant 0 : i32
    %c0_i32_0 = arith.constant 0 : i32
    %c0_i32_1 = arith.constant 0 : i32
    return %arg1, %c0_i32, %c0_i32_0 : i32, i32, i32
  }
  func.func @transform_19(%arg0: i32, %arg1: i32) -> (i32, i32, i32) {
    %c0_i32 = arith.constant 0 : i32
    %c0_i32_0 = arith.constant 0 : i32
    %c0_i32_1 = arith.constant 0 : i32
    return %arg1, %c0_i32, %c0_i32_0 : i32, i32, i32
  }
  func.func @transform_20(%arg0: i32, %arg1: i32) -> (i32, i32, i32) {
    %c0_i32 = arith.constant 0 : i32
    %c0_i32_0 = arith.constant 0 : i32
    %c0_i32_1 = arith.constant 0 : i32
    return %arg1, %c0_i32, %c0_i32_0 : i32, i32, i32
  }
  func.func @transform_21(%arg0: i32, %arg1: i32) -> (i32, i32, i32) {
    %c0_i32 = arith.constant 0 : i32
    %c0_i32_0 = arith.constant 0 : i32
    %c0_i32_1 = arith.constant 0 : i32
    return %arg1, %c0_i32, %c0_i32_0 : i32, i32, i32
  }
  func.func @transform_22(%arg0: i32, %arg1: i32) -> (i32, i32, i32) {
    %c0_i32 = arith.constant 0 : i32
    %c0_i32_0 = arith.constant 0 : i32
    %c0_i32_1 = arith.constant 0 : i32
    return %arg1, %c0_i32, %c0_i32_0 : i32, i32, i32
  }
  func.func @transform_23(%arg0: i32, %arg1: i32) -> (i32, i32, i32) {
    %c0_i32 = arith.constant 0 : i32
    %c0_i32_0 = arith.constant 0 : i32
    %c0_i32_1 = arith.constant 0 : i32
    return %arg1, %c0_i32, %c0_i32_0 : i32, i32, i32
  }
  func.func @transform_24(%arg0: i32, %arg1: i32) -> (i32, i32, i32) {
    %c0_i32 = arith.constant 0 : i32
    %c0_i32_0 = arith.constant 0 : i32
    %c0_i32_1 = arith.constant 0 : i32
    return %arg1, %c0_i32, %c0_i32_0 : i32, i32, i32
  }
  func.func @transform_25(%arg0: i32, %arg1: i32) -> (i32, i32, i32) {
    %c0_i32 = arith.constant 0 : i32
    %c0_i32_0 = arith.constant 0 : i32
    %c0_i32_1 = arith.constant 0 : i32
    return %arg1, %c0_i32, %c0_i32_0 : i32, i32, i32
  }
  func.func @transform_26(%arg0: i32, %arg1: i32) -> (i32, i32, i32) {
    %c0_i32 = arith.constant 0 : i32
    %c0_i32_0 = arith.constant 0 : i32
    %c0_i32_1 = arith.constant 0 : i32
    return %arg1, %c0_i32, %c0_i32_0 : i32, i32, i32
  }
  func.func @transform_27(%arg0: i32, %arg1: i32) -> (i32, i32, i32) {
    %c0_i32 = arith.constant 0 : i32
    %c0_i32_0 = arith.constant 0 : i32
    %c0_i32_1 = arith.constant 0 : i32
    return %arg1, %c0_i32, %c0_i32_0 : i32, i32, i32
  }
  func.func @transform_28(%arg0: i32, %arg1: i32) -> (i32, i32, i32) {
    %c0_i32 = arith.constant 0 : i32
    %c0_i32_0 = arith.constant 0 : i32
    %c0_i32_1 = arith.constant 0 : i32
    return %arg1, %c0_i32, %c0_i32_0 : i32, i32, i32
  }
  func.func @transform_29(%arg0: i32, %arg1: i32) -> (i32, i32) {
    %c0_i32 = arith.constant 0 : i32
    %c0_i32_0 = arith.constant 0 : i32
    %c0_i32_1 = arith.constant 0 : i32
    return %c0_i32, %c0_i32_0 : i32, i32
  }
  func.func @transform_30(%arg0: i32, %arg1: i32) -> (i32, i32) {
    %c0_i32 = arith.constant 0 : i32
    %c0_i32_0 = arith.constant 0 : i32
    %c0_i32_1 = arith.constant 0 : i32
    return %c0_i32, %c0_i32_0 : i32, i32
  }
  func.func @transform_31(%arg0: i32, %arg1: i32) -> (i32, i32) {
    %c0_i32 = arith.constant 0 : i32
    %c0_i32_0 = arith.constant 0 : i32
    %c0_i32_1 = arith.constant 0 : i32
    return %c0_i32, %c0_i32_0 : i32, i32
  }
  func.func @transform_32(%arg0: i32, %arg1: i32) -> (i32, i32) {
    %c0_i32 = arith.constant 0 : i32
    %c0_i32_0 = arith.constant 0 : i32
    %c0_i32_1 = arith.constant 0 : i32
    return %c0_i32, %c0_i32_0 : i32, i32
  }
  func.func @transform_33(%arg0: i32, %arg1: i32) -> (i32, i32) {
    %c0_i32 = arith.constant 0 : i32
    %c0_i32_0 = arith.constant 0 : i32
    %c0_i32_1 = arith.constant 0 : i32
    return %c0_i32, %c0_i32_0 : i32, i32
  }
  func.func @transform_34(%arg0: i32, %arg1: i32) -> (i32, i32) {
    %c0_i32 = arith.constant 0 : i32
    %c0_i32_0 = arith.constant 0 : i32
    %c0_i32_1 = arith.constant 0 : i32
    return %c0_i32, %c0_i32_0 : i32, i32
  }
  func.func @transform_35(%arg0: i32, %arg1: i32) -> (i32, i32, i32) {
    %c0_i32 = arith.constant 0 : i32
    %c0_i32_0 = arith.constant 0 : i32
    %c0_i32_1 = arith.constant 0 : i32
    return %arg0, %c0_i32, %c0_i32_0 : i32, i32, i32
  }
  func.func @transform_36(%arg0: i32, %arg1: i32) -> (i32, i32, i32) {
    %c0_i32 = arith.constant 0 : i32
    %c0_i32_0 = arith.constant 0 : i32
    %c0_i32_1 = arith.constant 0 : i32
    return %arg0, %c0_i32, %c0_i32_0 : i32, i32, i32
  }
  func.func @transform_37(%arg0: i32, %arg1: i32) -> (i32, i32, i32) {
    %c0_i32 = arith.constant 0 : i32
    %c0_i32_0 = arith.constant 0 : i32
    %c0_i32_1 = arith.constant 0 : i32
    return %arg0, %c0_i32, %c0_i32_0 : i32, i32, i32
  }
}

</mosaic_0001>

<llo_original>
// kernel: _lambda_.1
$region0: #{_lambda_.1}
  #allocation0 [shape = 'u32[]', space=smem, size = 0x4, offset = 0x4, fixed_abs, tag = 'smem constant byte address 0x4 - core index']
  #allocation1 [shape = 'u32[144,128]{1,0:T(1,128)}', space=vmem, size = 0x12000, scoped, tag = 'internal scratch']
  %s0 = inlined_call_operand.smem [shape: u32[38], index: -1, kind: input, shape index: {}]
  %s1 = sld [smem:[%s0]]
  %s2 = scalar_lea.smem %s0, 1
  %s3 = sld [smem:[%s2]]
  %s4 = scalar_lea.smem %s0, 2
  %s5 = sld [smem:[%s4]]
  %s6 = scalar_lea.smem %s0, 3
  %s7 = sld [smem:[%s6]]
  %s8 = scalar_lea.smem %s0, 4
  %s9 = sld [smem:[%s8]]
  %s10 = scalar_lea.smem %s0, 5
  %s11 = sld [smem:[%s10]]
  %s12 = scalar_lea.smem %s0, 6
  %s13 = sld [smem:[%s12]]
  %s14 = scalar_lea.smem %s0, 7
  %s15 = sld [smem:[%s14]]
  %s16 = scalar_lea.smem %s0, 8
  %s17 = sld [smem:[%s16]]
  %s18 = scalar_lea.smem %s0, 9
  %s19 = sld [smem:[%s18]]
  %s20 = scalar_lea.smem %s0, 10
  %s21 = sld [smem:[%s20]]
  %s22 = scalar_lea.smem %s0, 11
  %s23 = sld [smem:[%s22]]
  %s24 = scalar_lea.smem %s0, 12
  %s25 = sld [smem:[%s24]]
  %s26 = scalar_lea.smem %s0, 13
  %s27 = sld [smem:[%s26]]
  %s28 = scalar_lea.smem %s0, 14
  %s29 = sld [smem:[%s28]]
  %s30 = scalar_lea.smem %s0, 15
  %s31 = sld [smem:[%s30]]
  %s32 = scalar_lea.smem %s0, 16
  %s33 = sld [smem:[%s32]]
  %s34 = scalar_lea.smem %s0, 17
  %s35 = sld [smem:[%s34]]
  %s36 = scalar_lea.smem %s0, 18
  %s37 = sld [smem:[%s36]]
  %s38 = scalar_lea.smem %s0, 19
  %s39 = sld [smem:[%s38]]
  %s40 = scalar_lea.smem %s0, 20
  %s41 = sld [smem:[%s40]]
  %s42 = scalar_lea.smem %s0, 21
  %s43 = sld [smem:[%s42]]
  %s44 = scalar_lea.smem %s0, 22
  %s45 = sld [smem:[%s44]]
  %s46 = scalar_lea.smem %s0, 23
  %s47 = sld [smem:[%s46]]
  %s48 = scalar_lea.smem %s0, 24
  %s49 = sld [smem:[%s48]]
  %s50 = scalar_lea.smem %s0, 25
  %s51 = sld [smem:[%s50]]
  %s52 = scalar_lea.smem %s0, 26
  %s53 = sld [smem:[%s52]]
  %s54 = scalar_lea.smem %s0, 27
  %s55 = sld [smem:[%s54]]
  %s56 = scalar_lea.smem %s0, 28
  %s57 = sld [smem:[%s56]]
  %s58 = scalar_lea.smem %s0, 29
  %s59 = sld [smem:[%s58]]
  %s60 = scalar_lea.smem %s0, 30
  %s61 = sld [smem:[%s60]]
  %s62 = scalar_lea.smem %s0, 31
  %s63 = sld [smem:[%s62]]
  %s64 = scalar_lea.smem %s0, 32
  %s65 = sld [smem:[%s64]]
  %s66 = scalar_lea.smem %s0, 33
  %s67 = sld [smem:[%s66]]
  %s68 = scalar_lea.smem %s0, 34
  %s69 = sld [smem:[%s68]]
  %s70 = scalar_lea.smem %s0, 35
  %s71 = sld [smem:[%s70]]
  %s72 = scalar_lea.smem %s0, 36
  %s73 = sld [smem:[%s72]]
  %s74 = scalar_lea.smem %s0, 37
  %s75 = sld [smem:[%s74]]
  %76 = xla_tuple %s71, %s73, %s75
  %s77 = sld [smem:[#allocation0]]
  $region245: #{_lambda_.1} parent=0
    _
  %s79 = ssub.s32 1, %s77
  %s80 = scalar_select 0, %s79, %s77
  $region1: #{_lambda_.1} parent=0
    #allocation2 [shape = 'u8[8192]{0}', space=vmem, size = 0x2000, scoped, tag = 'input window, operand 1']
    #allocation3 [shape = 's32[2]{0}', space=sflag, size = 0x8, scoped, tag = 'scoped memory for _lambda_.1']
    #allocation4 [shape = 's32[2]{0}', space=sflag, size = 0x8, scoped, tag = 'scoped memory for _lambda_.1']
    #allocation5 [shape = 's32[2]{0}', space=sflag, size = 0x8, scoped, tag = 'scoped memory for _lambda_.1']
    #allocation6 [shape = 'u8[512]{0}', space=smem, size = 0x200, scoped, tag = 'input window, operand 2, single buffered']
    #allocation7 [shape = 'u8[16384]{0}', space=vmem, size = 0x4000, scoped, tag = 'input window, operand 3']
    #allocation8 [shape = 's32[2]{0}', space=sflag, size = 0x8, scoped, tag = 'scoped memory for _lambda_.1']
    #allocation9 [shape = 'u8[16384]{0}', space=vmem, size = 0x4000, scoped, tag = 'input window, operand 5']
    #allocation10 [shape = 'u8[16384]{0}', space=vmem, size = 0x4000, scoped, tag = 'input window, operand 9']
    #allocation11 [shape = 's32[2]{0}', space=sflag, size = 0x8, scoped, tag = 'scoped memory for _lambda_.1']
    #allocation12 [shape = 'u8[4096]{0}', space=vmem, size = 0x1000, scoped, tag = 'input window, operand 17']
    #allocation13 [shape = 'u8[4096]{0}', space=vmem, size = 0x1000, scoped, tag = 'input window, operand 19']
    #allocation14 [shape = 's32[2]{0}', space=sflag, size = 0x8, scoped, tag = 'scoped memory for _lambda_.1']
    #allocation15 [shape = 'u8[4096]{0}', space=vmem, size = 0x1000, scoped, tag = 'input window, operand 23']
    #allocation16 [shape = 'u8[8192]{0}', space=vmem, size = 0x2000, scoped, tag = 'input window, operand 25']
    #allocation17 [shape = 's32[2]{0}', space=sflag, size = 0x8, scoped, tag = 'scoped memory for _lambda_.1']
    #allocation18 [shape = 'u8[4096]{0}', space=vmem, size = 0x1000, scoped, tag = 'input window, operand 29, single buffered']
    #allocation19 [shape = 'u8[16384]{0}', space=vmem, size = 0x4000, scoped, tag = 'input window, operand 31, single buffered']
    #allocation20 [shape = 's32[1]{0}', space=sflag, size = 0x4, scoped, tag = 'scoped memory for _lambda_.1']
    #allocation21 [shape = 'u8[16384]{0}', space=vmem, size = 0x4000, scoped, tag = 'input window, operand 33, single buffered']
    #allocation22 [shape = 'u8[8192]{0}', space=vmem, size = 0x2000, scoped, tag = 'output window, operand 0']
    #allocation23 [shape = 'u8[8192]{0}', space=vmem, size = 0x2000, scoped, tag = 'output window, operand 1']
    #allocation24 [shape = 's32[2]{0}', space=sflag, size = 0x8, scoped, tag = 'scoped memory for _lambda_.1']
    #allocation25 [shape = 'u8[1024]{0}', space=vmem, size = 0x400, scoped, tag = 'output window, operand 2']
    %81 = vsyncpa [#allocation3], 0
    %s82 = scalar_lea.sflag [#allocation3], 1
    %83 = vsyncpa %s82, 0
    %84 = vsyncpa [#allocation5], 0
    %85 = vsyncpa [#allocation8], 0
    %s86 = scalar_lea.sflag [#allocation8], 1
    %87 = vsyncpa %s86, 0
    %88 = vsyncpa [#allocation11], 0
    %s89 = scalar_lea.sflag [#allocation11], 1
    %90 = vsyncpa %s89, 0
    %91 = vsyncpa [#allocation14], 0
    %s92 = scalar_lea.sflag [#allocation14], 1
    %93 = vsyncpa %s92, 0
    %94 = vsyncpa [#allocation17], 0
    %s95 = scalar_lea.sflag [#allocation17], 1
    %96 = vsyncpa %s95, 0
    %97 = vsyncpa [#allocation20], 0
    %98 = vsyncpa [#allocation4], 0
    %s99 = scalar_lea.sflag [#allocation4], 1
    %100 = vsyncpa %s99, 0
    %101 = vsyncpa [#allocation24], 0
    %s102 = scalar_lea.sflag [#allocation24], 1
    %103 = vsyncpa %s102, 0
    loop: start=0, step=1, limit=6
    $region2: #{_lambda_.1} parent=1 // loop_pre_header
      _
    $region3: #{_lambda_.1} parent=1 // loop_header
      %s105 = sphi 0, %s109
      %p106 = scmp.ge.s32.totalorder %s105, 6
      %s112 = sphi 0, %s124
      %s113 = sphi 0, %s120
      %s114 = sphi 0, %s112
      %s115 = sphi 0, %s113
      %s116 = sphi 0, %s114
      %s117 = sphi 0, %s115
      %s127 = sphi 0, %s129
      %s130 = sphi 0, %s127
      %s131 = sphi 0, %s130
      %s147 = sphi 0, %s131
      %s153 = sphi 0, %s155
      %s156 = sphi 0, %s153
      %s157 = sphi 0, %s156
      %s173 = sphi 0, %s157
      %s177 = sphi 0, %s177
      %s179 = sphi 0, %s177
      %s180 = sphi 0, %s179
      %s194 = sphi 0, %s180
      %s200 = sphi 0, %s202
      %s203 = sphi 0, %s200
      %s204 = sphi 0, %s203
      %s220 = sphi 0, %s204
      %s226 = sphi 0, %s228
      %s229 = sphi 0, %s226
      %s230 = sphi 0, %s229
      %s246 = sphi 0, %s230
      %s252 = sphi 0, %s254
      %s255 = sphi 0, %s252
      %s256 = sphi 0, %s255
      %s272 = sphi 0, %s256
      %s278 = sphi 0, %s280
      %s281 = sphi 0, %s278
      %s282 = sphi 0, %s281
      %s298 = sphi 0, %s282
      %s304 = sphi 0, %s306
      %s307 = sphi 0, %s304
      %s308 = sphi 0, %s307
      %s324 = sphi 0, %s308
      %s330 = sphi 0, %s332
      %s333 = sphi 0, %s330
      %s334 = sphi 0, %s333
      %s350 = sphi 0, %s334
      %s356 = sphi 0, %s358
      %s359 = sphi 0, %s356
      %s360 = sphi 0, %s359
      %s376 = sphi 0, %s360
      %s382 = sphi 0, %s384
      %s385 = sphi 0, %s382
      %s386 = sphi 0, %s385
      %s402 = sphi 0, %s386
      %s408 = sphi 0, %s410
      %s411 = sphi 0, %s408
      %s412 = sphi 0, %s411
      %s428 = sphi 0, %s412
      %s434 = sphi 0, %s436
      %s437 = sphi 0, %s434
      %s438 = sphi 0, %s437
      %s454 = sphi 0, %s438
      %s460 = sphi 0, %s462
      %s463 = sphi 0, %s460
      %s464 = sphi 0, %s463
      %s480 = sphi 0, %s464
      %s486 = sphi 0, %s488
      %s489 = sphi 0, %s486
      %s490 = sphi 0, %s489
      %s506 = sphi 0, %s490
      %s512 = sphi 0, %s514
      %s515 = sphi 0, %s512
      %s516 = sphi 0, %s515
      %s532 = sphi 0, %s516
      %s538 = sphi 0, %s540
      %s541 = sphi 0, %s538
      %s542 = sphi 0, %s541
      %s558 = sphi 0, %s542
      %s564 = sphi 0, %s566
      %s567 = sphi 0, %s564
      %s568 = sphi 0, %s567
      %s584 = sphi 0, %s568
      %s590 = sphi 0, %s592
      %s593 = sphi 0, %s590
      %s594 = sphi 0, %s593
      %s610 = sphi 0, %s594
      %s616 = sphi 0, %s618
      %s619 = sphi 0, %s616
      %s620 = sphi 0, %s619
      %s636 = sphi 0, %s620
      %s642 = sphi 0, %s644
      %s645 = sphi 0, %s642
      %s646 = sphi 0, %s645
      %s662 = sphi 0, %s646
      %s668 = sphi 0, %s670
      %s671 = sphi 0, %s668
      %s672 = sphi 0, %s671
      %s688 = sphi 0, %s672
      %s694 = sphi 0, %s696
      %s697 = sphi 0, %s694
      %s698 = sphi 0, %s697
      %s714 = sphi 0, %s698
      %s720 = sphi 0, %s722
      %s723 = sphi 0, %s720
      %s724 = sphi 0, %s723
      %s740 = sphi 0, %s724
      %s746 = sphi 0, %s748
      %s749 = sphi 0, %s746
      %s750 = sphi 0, %s749
      %s766 = sphi 0, %s750
      %s772 = sphi 0, %s774
      %s775 = sphi 0, %s772
      %s776 = sphi 0, %s775
      %s792 = sphi 0, %s776
      %s798 = sphi 0, %s800
      %s801 = sphi 0, %s798
      %s802 = sphi 0, %s801
      %s818 = sphi 0, %s802
      %s824 = sphi 0, %s826
      %s827 = sphi 0, %s824
      %s828 = sphi 0, %s827
      %s844 = sphi 0, %s828
      %s850 = sphi 0, %s852
      %s853 = sphi 0, %s850
      %s854 = sphi 0, %s853
      %s870 = sphi 0, %s854
      %s874 = sphi 0, %s874
      %s876 = sphi 0, %s874
      %s877 = sphi 0, %s876
      %s891 = sphi 0, %s877
      %s895 = sphi 0, %s895
      %s897 = sphi 0, %s895
      %s898 = sphi 0, %s897
      %s912 = sphi 0, %s898
      %s916 = sphi 0, %s916
      %s918 = sphi 0, %s916
      %s919 = sphi 0, %s918
      %s933 = sphi 0, %s919
      %s937 = sphi 0, %s937
      %s939 = sphi 0, %s937
      %s940 = sphi 0, %s939
      %s954 = sphi 0, %s940
      %s958 = sphi 0, %s958
      %s960 = sphi 0, %s958
      %s961 = sphi 0, %s960
      %s975 = sphi 0, %s961
      %s979 = sphi 0, %s979
      %s981 = sphi 0, %s979
      %s982 = sphi 0, %s981
      %s996 = sphi 0, %s982
      %s1002 = sphi 0, %s1004
      %s1005 = sphi 0, %s1002
      %s1006 = sphi 0, %s1005
      %s1022 = sphi 0, %s1006
      %s1028 = sphi 0, %s1030
      %s1031 = sphi 0, %s1028
      %s1032 = sphi 0, %s1031
      %s1048 = sphi 0, %s1032
      %s1054 = sphi 0, %s1056
      %s1057 = sphi 0, %s1054
      %s1058 = sphi 0, %s1057
      %s1074 = sphi 0, %s1058
    $region4: #{_lambda_.1} parent=1 // loop_header_branch
      %108 = sbr.rel (%p106) target = $region8
    $region5: #{_lambda_.1} parent=1 // loop_body
      %s110 = ssub.s32 %s105, 1
      %s111 = ssub.s32 %s105, 2
      %s118 = sadd.s32 1, %s113
      %p119 = scmp.ge.s32.totalorder %s118, 2
      %s120 = scalar_select %p119, 0, %s118
      %s121 = sadd.s32 1, %s112
      %s122 = scalar_select %p119, %s121, %s112
      %p123 = scmp.ge.s32.totalorder %s122, 2
      %s124 = scalar_select %p123, 0, %s122
      %s125 = ssub.s32 %s112, %s124
      %p126 = scmp.eq.s32.totalorder %s125, 0
      %s128 = sadd.s32 %s127, 1
      %s129 = scalar_select %p126, %s127, %s128
      %p132 = pneg %p126
      %p133 = scmp.eq.s32.totalorder %s105, 3
      %p134 = por %p132, %p133
      %p135 = scmp.ne.s32.totalorder %s127, %s130
      %p136 = scmp.eq.s32.totalorder %s105, 0
      %p137 = por %p135, %p136
      %p138 = scmp.ne.s32.totalorder %s127, %s130
      %p139 = scmp.eq.s32.totalorder %s110, 3
      %p140 = por %p138, %p139
      %p141 = scmp.ne.s32.totalorder %s130, %s131
      %p142 = scmp.eq.s32.totalorder %s110, 0
      %p143 = por %p141, %p142
      %p144 = scmp.ne.s32.totalorder %s130, %s131
      %p145 = scmp.eq.s32.totalorder %s111, 3
      %p146 = por %p144, %p145
      %p148 = scmp.ne.s32.totalorder %s131, %s147
      %p149 = scmp.eq.s32.totalorder %s111, 0
      %p150 = por %p148, %p149
      %s151 = ssub.s32 %s112, %s124
      %p152 = scmp.eq.s32.totalorder %s151, 0
      %s154 = sadd.s32 %s153, 1
      %s155 = scalar_select %p152, %s153, %s154
      %p158 = pneg %p152
      %p159 = scmp.eq.s32.totalorder %s105, 3
      %p160 = por %p158, %p159
      %p161 = scmp.ne.s32.totalorder %s153, %s156
      %p162 = scmp.eq.s32.totalorder %s105, 0
      %p163 = por %p161, %p162
      %p164 = scmp.ne.s32.totalorder %s153, %s156
      %p165 = scmp.eq.s32.totalorder %s110, 3
      %p166 = por %p164, %p165
      %p167 = scmp.ne.s32.totalorder %s156, %s157
      %p168 = scmp.eq.s32.totalorder %s110, 0
      %p169 = por %p167, %p168
      %p170 = scmp.ne.s32.totalorder %s156, %s157
      %p171 = scmp.eq.s32.totalorder %s111, 3
      %p172 = por %p170, %p171
      %p174 = scmp.ne.s32.totalorder %s157, %s173
      %p175 = scmp.eq.s32.totalorder %s111, 0
      %p176 = por %p174, %p175
      %s178 = sadd.s32 %s177, 1
      %p181 = scmp.eq.s32.totalorder %s105, 3
      %p182 = scmp.ne.s32.totalorder %s177, %s179
      %p183 = scmp.eq.s32.totalorder %s105, 0
      %p184 = por %p182, %p183
      %p185 = scmp.ne.s32.totalorder %s177, %s179
      %p186 = scmp.eq.s32.totalorder %s110, 3
      %p187 = por %p185, %p186
      %p188 = scmp.ne.s32.totalorder %s179, %s180
      %p189 = scmp.eq.s32.totalorder %s110, 0
      %p190 = por %p188, %p189
      %p191 = scmp.ne.s32.totalorder %s179, %s180
      %p192 = scmp.eq.s32.totalorder %s111, 3
      %p193 = por %p191, %p192
      %p195 = scmp.ne.s32.totalorder %s180, %s194
      %p196 = scmp.eq.s32.totalorder %s111, 0
      %p197 = por %p195, %p196
      %s198 = ssub.s32 %s113, %s120
      %p199 = scmp.eq.s32.totalorder %s198, 0
      %s201 = sadd.s32 %s200, 1
      %s202 = scalar_select %p199, %s200, %s201
      %p205 = pneg %p199
      %p206 = scmp.eq.s32.totalorder %s105, 3
      %p207 = por %p205, %p206
      %p208 = scmp.ne.s32.totalorder %s200, %s203
      %p209 = scmp.eq.s32.totalorder %s105, 0
      %p210 = por %p208, %p209
      %p211 = scmp.ne.s32.totalorder %s200, %s203
      %p212 = scmp.eq.s32.totalorder %s110, 3
      %p213 = por %p211, %p212
      %p214 = scmp.ne.s32.totalorder %s203, %s204
      %p215 = scmp.eq.s32.totalorder %s110, 0
      %p216 = por %p214, %p215
      %p217 = scmp.ne.s32.totalorder %s203, %s204
      %p218 = scmp.eq.s32.totalorder %s111, 3
      %p219 = por %p217, %p218
      %p221 = scmp.ne.s32.totalorder %s204, %s220
      %p222 = scmp.eq.s32.totalorder %s111, 0
      %p223 = por %p221, %p222
      %s224 = ssub.s32 %s113, %s120
      %p225 = scmp.eq.s32.totalorder %s224, 0
      %s227 = sadd.s32 %s226, 1
      %s228 = scalar_select %p225, %s226, %s227
      %p231 = pneg %p225
      %p232 = scmp.eq.s32.totalorder %s105, 3
      %p233 = por %p231, %p232
      %p234 = scmp.ne.s32.totalorder %s226, %s229
      %p235 = scmp.eq.s32.totalorder %s105, 0
      %p236 = por %p234, %p235
      %p237 = scmp.ne.s32.totalorder %s226, %s229
      %p238 = scmp.eq.s32.totalorder %s110, 3
      %p239 = por %p237, %p238
      %p240 = scmp.ne.s32.totalorder %s229, %s230
      %p241 = scmp.eq.s32.totalorder %s110, 0
      %p242 = por %p240, %p241
      %p243 = scmp.ne.s32.totalorder %s229, %s230
      %p244 = scmp.eq.s32.totalorder %s111, 3
      %p245 = por %p243, %p244
      %p247 = scmp.ne.s32.totalorder %s230, %s246
      %p248 = scmp.eq.s32.totalorder %s111, 0
      %p249 = por %p247, %p248
      %s250 = ssub.s32 %s113, %s120
      %p251 = scmp.eq.s32.totalorder %s250, 0
      %s253 = sadd.s32 %s252, 1
      %s254 = scalar_select %p251, %s252, %s253
      %p257 = pneg %p251
      %p258 = scmp.eq.s32.totalorder %s105, 3
      %p259 = por %p257, %p258
      %p260 = scmp.ne.s32.totalorder %s252, %s255
      %p261 = scmp.eq.s32.totalorder %s105, 0
      %p262 = por %p260, %p261
      %p263 = scmp.ne.s32.totalorder %s252, %s255
      %p264 = scmp.eq.s32.totalorder %s110, 3
      %p265 = por %p263, %p264
      %p266 = scmp.ne.s32.totalorder %s255, %s256
      %p267 = scmp.eq.s32.totalorder %s110, 0
      %p268 = por %p266, %p267
      %p269 = scmp.ne.s32.totalorder %s255, %s256
      %p270 = scmp.eq.s32.totalorder %s111, 3
      %p271 = por %p269, %p270
      %p273 = scmp.ne.s32.totalorder %s256, %s272
      %p274 = scmp.eq.s32.totalorder %s111, 0
      %p275 = por %p273, %p274
      %s276 = ssub.s32 %s113, %s120
      %p277 = scmp.eq.s32.totalorder %s276, 0
      %s279 = sadd.s32 %s278, 1
      %s280 = scalar_select %p277, %s278, %s279
      %p283 = pneg %p277
      %p284 = scmp.eq.s32.totalorder %s105, 3
      %p285 = por %p283, %p284
      %p286 = scmp.ne.s32.totalorder %s278, %s281
      %p287 = scmp.eq.s32.totalorder %s105, 0
      %p288 = por %p286, %p287
      %p289 = scmp.ne.s32.totalorder %s278, %s281
      %p290 = scmp.eq.s32.totalorder %s110, 3
      %p291 = por %p289, %p290
      %p292 = scmp.ne.s32.totalorder %s281, %s282
      %p293 = scmp.eq.s32.totalorder %s110, 0
      %p294 = por %p292, %p293
      %p295 = scmp.ne.s32.totalorder %s281, %s282
      %p296 = scmp.eq.s32.totalorder %s111, 3
      %p297 = por %p295, %p296
      %p299 = scmp.ne.s32.totalorder %s282, %s298
      %p300 = scmp.eq.s32.totalorder %s111, 0
      %p301 = por %p299, %p300
      %s302 = ssub.s32 %s113, %s120
      %p303 = scmp.eq.s32.totalorder %s302, 0
      %s305 = sadd.s32 %s304, 1
      %s306 = scalar_select %p303, %s304, %s305
      %p309 = pneg %p303
      %p310 = scmp.eq.s32.totalorder %s105, 3
      %p311 = por %p309, %p310
      %p312 = scmp.ne.s32.totalorder %s304, %s307
      %p313 = scmp.eq.s32.totalorder %s105, 0
      %p314 = por %p312, %p313
      %p315 = scmp.ne.s32.totalorder %s304, %s307
      %p316 = scmp.eq.s32.totalorder %s110, 3
      %p317 = por %p315, %p316
      %p318 = scmp.ne.s32.totalorder %s307, %s308
      %p319 = scmp.eq.s32.totalorder %s110, 0
      %p320 = por %p318, %p319
      %p321 = scmp.ne.s32.totalorder %s307, %s308
      %p322 = scmp.eq.s32.totalorder %s111, 3
      %p323 = por %p321, %p322
      %p325 = scmp.ne.s32.totalorder %s308, %s324
      %p326 = scmp.eq.s32.totalorder %s111, 0
      %p327 = por %p325, %p326
      %s328 = ssub.s32 %s113, %s120
      %p329 = scmp.eq.s32.totalorder %s328, 0
      %s331 = sadd.s32 %s330, 1
      %s332 = scalar_select %p329, %s330, %s331
      %p335 = pneg %p329
      %p336 = scmp.eq.s32.totalorder %s105, 3
      %p337 = por %p335, %p336
      %p338 = scmp.ne.s32.totalorder %s330, %s333
      %p339 = scmp.eq.s32.totalorder %s105, 0
      %p340 = por %p338, %p339
      %p341 = scmp.ne.s32.totalorder %s330, %s333
      %p342 = scmp.eq.s32.totalorder %s110, 3
      %p343 = por %p341, %p342
      %p344 = scmp.ne.s32.totalorder %s333, %s334
      %p345 = scmp.eq.s32.totalorder %s110, 0
      %p346 = por %p344, %p345
      %p347 = scmp.ne.s32.totalorder %s333, %s334
      %p348 = scmp.eq.s32.totalorder %s111, 3
      %p349 = por %p347, %p348
      %p351 = scmp.ne.s32.totalorder %s334, %s350
      %p352 = scmp.eq.s32.totalorder %s111, 0
      %p353 = por %p351, %p352
      %s354 = ssub.s32 %s113, %s120
      %p355 = scmp.eq.s32.totalorder %s354, 0
      %s357 = sadd.s32 %s356, 1
      %s358 = scalar_select %p355, %s356, %s357
      %p361 = pneg %p355
      %p362 = scmp.eq.s32.totalorder %s105, 3
      %p363 = por %p361, %p362
      %p364 = scmp.ne.s32.totalorder %s356, %s359
      %p365 = scmp.eq.s32.totalorder %s105, 0
      %p366 = por %p364, %p365
      %p367 = scmp.ne.s32.totalorder %s356, %s359
      %p368 = scmp.eq.s32.totalorder %s110, 3
      %p369 = por %p367, %p368
      %p370 = scmp.ne.s32.totalorder %s359, %s360
      %p371 = scmp.eq.s32.totalorder %s110, 0
      %p372 = por %p370, %p371
      %p373 = scmp.ne.s32.totalorder %s359, %s360
      %p374 = scmp.eq.s32.totalorder %s111, 3
      %p375 = por %p373, %p374
      %p377 = scmp.ne.s32.totalorder %s360, %s376
      %p378 = scmp.eq.s32.totalorder %s111, 0
      %p379 = por %p377, %p378
      %s380 = ssub.s32 %s113, %s120
      %p381 = scmp.eq.s32.totalorder %s380, 0
      %s383 = sadd.s32 %s382, 1
      %s384 = scalar_select %p381, %s382, %s383
      %p387 = pneg %p381
      %p388 = scmp.eq.s32.totalorder %s105, 3
      %p389 = por %p387, %p388
      %p390 = scmp.ne.s32.totalorder %s382, %s385
      %p391 = scmp.eq.s32.totalorder %s105, 0
      %p392 = por %p390, %p391
      %p393 = scmp.ne.s32.totalorder %s382, %s385
      %p394 = scmp.eq.s32.totalorder %s110, 3
      %p395 = por %p393, %p394
      %p396 = scmp.ne.s32.totalorder %s385, %s386
      %p397 = scmp.eq.s32.totalorder %s110, 0
      %p398 = por %p396, %p397
      %p399 = scmp.ne.s32.totalorder %s385, %s386
      %p400 = scmp.eq.s32.totalorder %s111, 3
      %p401 = por %p399, %p400
      %p403 = scmp.ne.s32.totalorder %s386, %s402
      %p404 = scmp.eq.s32.totalorder %s111, 0
      %p405 = por %p403, %p404
      %s406 = ssub.s32 %s113, %s120
      %p407 = scmp.eq.s32.totalorder %s406, 0
      %s409 = sadd.s32 %s408, 1
      %s410 = scalar_select %p407, %s408, %s409
      %p413 = pneg %p407
      %p414 = scmp.eq.s32.totalorder %s105, 3
      %p415 = por %p413, %p414
      %p416 = scmp.ne.s32.totalorder %s408, %s411
      %p417 = scmp.eq.s32.totalorder %s105, 0
      %p418 = por %p416, %p417
      %p419 = scmp.ne.s32.totalorder %s408, %s411
      %p420 = scmp.eq.s32.totalorder %s110, 3
      %p421 = por %p419, %p420
      %p422 = scmp.ne.s32.totalorder %s411, %s412
      %p423 = scmp.eq.s32.totalorder %s110, 0
      %p424 = por %p422, %p423
      %p425 = scmp.ne.s32.totalorder %s411, %s412
      %p426 = scmp.eq.s32.totalorder %s111, 3
      %p427 = por %p425, %p426
      %p429 = scmp.ne.s32.totalorder %s412, %s428
      %p430 = scmp.eq.s32.totalorder %s111, 0
      %p431 = por %p429, %p430
      %s432 = ssub.s32 %s113, %s120
      %p433 = scmp.eq.s32.totalorder %s432, 0
      %s435 = sadd.s32 %s434, 1
      %s436 = scalar_select %p433, %s434, %s435
      %p439 = pneg %p433
      %p440 = scmp.eq.s32.totalorder %s105, 3
      %p441 = por %p439, %p440
      %p442 = scmp.ne.s32.totalorder %s434, %s437
      %p443 = scmp.eq.s32.totalorder %s105, 0
      %p444 = por %p442, %p443
      %p445 = scmp.ne.s32.totalorder %s434, %s437
      %p446 = scmp.eq.s32.totalorder %s110, 3
      %p447 = por %p445, %p446
      %p448 = scmp.ne.s32.totalorder %s437, %s438
      %p449 = scmp.eq.s32.totalorder %s110, 0
      %p450 = por %p448, %p449
      %p451 = scmp.ne.s32.totalorder %s437, %s438
      %p452 = scmp.eq.s32.totalorder %s111, 3
      %p453 = por %p451, %p452
      %p455 = scmp.ne.s32.totalorder %s438, %s454
      %p456 = scmp.eq.s32.totalorder %s111, 0
      %p457 = por %p455, %p456
      %s458 = ssub.s32 %s113, %s120
      %p459 = scmp.eq.s32.totalorder %s458, 0
      %s461 = sadd.s32 %s460, 1
      %s462 = scalar_select %p459, %s460, %s461
      %p465 = pneg %p459
      %p466 = scmp.eq.s32.totalorder %s105, 3
      %p467 = por %p465, %p466
      %p468 = scmp.ne.s32.totalorder %s460, %s463
      %p469 = scmp.eq.s32.totalorder %s105, 0
      %p470 = por %p468, %p469
      %p471 = scmp.ne.s32.totalorder %s460, %s463
      %p472 = scmp.eq.s32.totalorder %s110, 3
      %p473 = por %p471, %p472
      %p474 = scmp.ne.s32.totalorder %s463, %s464
      %p475 = scmp.eq.s32.totalorder %s110, 0
      %p476 = por %p474, %p475
      %p477 = scmp.ne.s32.totalorder %s463, %s464
      %p478 = scmp.eq.s32.totalorder %s111, 3
      %p479 = por %p477, %p478
      %p481 = scmp.ne.s32.totalorder %s464, %s480
      %p482 = scmp.eq.s32.totalorder %s111, 0
      %p483 = por %p481, %p482
      %s484 = ssub.s32 %s113, %s120
      %p485 = scmp.eq.s32.totalorder %s484, 0
      %s487 = sadd.s32 %s486, 1
      %s488 = scalar_select %p485, %s486, %s487
      %p491 = pneg %p485
      %p492 = scmp.eq.s32.totalorder %s105, 3
      %p493 = por %p491, %p492
      %p494 = scmp.ne.s32.totalorder %s486, %s489
      %p495 = scmp.eq.s32.totalorder %s105, 0
      %p496 = por %p494, %p495
      %p497 = scmp.ne.s32.totalorder %s486, %s489
      %p498 = scmp.eq.s32.totalorder %s110, 3
      %p499 = por %p497, %p498
      %p500 = scmp.ne.s32.totalorder %s489, %s490
      %p501 = scmp.eq.s32.totalorder %s110, 0
      %p502 = por %p500, %p501
      %p503 = scmp.ne.s32.totalorder %s489, %s490
      %p504 = scmp.eq.s32.totalorder %s111, 3
      %p505 = por %p503, %p504
      %p507 = scmp.ne.s32.totalorder %s490, %s506
      %p508 = scmp.eq.s32.totalorder %s111, 0
      %p509 = por %p507, %p508
      %s510 = ssub.s32 %s113, %s120
      %p511 = scmp.eq.s32.totalorder %s510, 0
      %s513 = sadd.s32 %s512, 1
      %s514 = scalar_select %p511, %s512, %s513
      %p517 = pneg %p511
      %p518 = scmp.eq.s32.totalorder %s105, 3
      %p519 = por %p517, %p518
      %p520 = scmp.ne.s32.totalorder %s512, %s515
      %p521 = scmp.eq.s32.totalorder %s105, 0
      %p522 = por %p520, %p521
      %p523 = scmp.ne.s32.totalorder %s512, %s515
      %p524 = scmp.eq.s32.totalorder %s110, 3
      %p525 = por %p523, %p524
      %p526 = scmp.ne.s32.totalorder %s515, %s516
      %p527 = scmp.eq.s32.totalorder %s110, 0
      %p528 = por %p526, %p527
      %p529 = scmp.ne.s32.totalorder %s515, %s516
      %p530 = scmp.eq.s32.totalorder %s111, 3
      %p531 = por %p529, %p530
      %p533 = scmp.ne.s32.totalorder %s516, %s532
      %p534 = scmp.eq.s32.totalorder %s111, 0
      %p535 = por %p533, %p534
      %s536 = ssub.s32 %s113, %s120
      %p537 = scmp.eq.s32.totalorder %s536, 0
      %s539 = sadd.s32 %s538, 1
      %s540 = scalar_select %p537, %s538, %s539
      %p543 = pneg %p537
      %p544 = scmp.eq.s32.totalorder %s105, 3
      %p545 = por %p543, %p544
      %p546 = scmp.ne.s32.totalorder %s538, %s541
      %p547 = scmp.eq.s32.totalorder %s105, 0
      %p548 = por %p546, %p547
      %p549 = scmp.ne.s32.totalorder %s538, %s541
      %p550 = scmp.eq.s32.totalorder %s110, 3
      %p551 = por %p549, %p550
      %p552 = scmp.ne.s32.totalorder %s541, %s542
      %p553 = scmp.eq.s32.totalorder %s110, 0
      %p554 = por %p552, %p553
      %p555 = scmp.ne.s32.totalorder %s541, %s542
      %p556 = scmp.eq.s32.totalorder %s111, 3
      %p557 = por %p555, %p556
      %p559 = scmp.ne.s32.totalorder %s542, %s558
      %p560 = scmp.eq.s32.totalorder %s111, 0
      %p561 = por %p559, %p560
      %s562 = ssub.s32 %s113, %s120
      %p563 = scmp.eq.s32.totalorder %s562, 0
      %s565 = sadd.s32 %s564, 1
      %s566 = scalar_select %p563, %s564, %s565
      %p569 = pneg %p563
      %p570 = scmp.eq.s32.totalorder %s105, 3
      %p571 = por %p569, %p570
      %p572 = scmp.ne.s32.totalorder %s564, %s567
      %p573 = scmp.eq.s32.totalorder %s105, 0
      %p574 = por %p572, %p573
      %p575 = scmp.ne.s32.totalorder %s564, %s567
      %p576 = scmp.eq.s32.totalorder %s110, 3
      %p577 = por %p575, %p576
      %p578 = scmp.ne.s32.totalorder %s567, %s568
      %p579 = scmp.eq.s32.totalorder %s110, 0
      %p580 = por %p578, %p579
      %p581 = scmp.ne.s32.totalorder %s567, %s568
      %p582 = scmp.eq.s32.totalorder %s111, 3
      %p583 = por %p581, %p582
      %p585 = scmp.ne.s32.totalorder %s568, %s584
      %p586 = scmp.eq.s32.totalorder %s111, 0
      %p587 = por %p585, %p586
      %s588 = ssub.s32 %s113, %s120
      %p589 = scmp.eq.s32.totalorder %s588, 0
      %s591 = sadd.s32 %s590, 1
      %s592 = scalar_select %p589, %s590, %s591
      %p595 = pneg %p589
      %p596 = scmp.eq.s32.totalorder %s105, 3
      %p597 = por %p595, %p596
      %p598 = scmp.ne.s32.totalorder %s590, %s593
      %p599 = scmp.eq.s32.totalorder %s105, 0
      %p600 = por %p598, %p599
      %p601 = scmp.ne.s32.totalorder %s590, %s593
      %p602 = scmp.eq.s32.totalorder %s110, 3
      %p603 = por %p601, %p602
      %p604 = scmp.ne.s32.totalorder %s593, %s594
      %p605 = scmp.eq.s32.totalorder %s110, 0
      %p606 = por %p604, %p605
      %p607 = scmp.ne.s32.totalorder %s593, %s594
      %p608 = scmp.eq.s32.totalorder %s111, 3
      %p609 = por %p607, %p608
      %p611 = scmp.ne.s32.totalorder %s594, %s610
      %p612 = scmp.eq.s32.totalorder %s111, 0
      %p613 = por %p611, %p612
      %s614 = ssub.s32 %s113, %s120
      %p615 = scmp.eq.s32.totalorder %s614, 0
      %s617 = sadd.s32 %s616, 1
      %s618 = scalar_select %p615, %s616, %s617
      %p621 = pneg %p615
      %p622 = scmp.eq.s32.totalorder %s105, 3
      %p623 = por %p621, %p622
      %p624 = scmp.ne.s32.totalorder %s616, %s619
      %p625 = scmp.eq.s32.totalorder %s105, 0
      %p626 = por %p624, %p625
      %p627 = scmp.ne.s32.totalorder %s616, %s619
      %p628 = scmp.eq.s32.totalorder %s110, 3
      %p629 = por %p627, %p628
      %p630 = scmp.ne.s32.totalorder %s619, %s620
      %p631 = scmp.eq.s32.totalorder %s110, 0
      %p632 = por %p630, %p631
      %p633 = scmp.ne.s32.totalorder %s619, %s620
      %p634 = scmp.eq.s32.totalorder %s111, 3
      %p635 = por %p633, %p634
      %p637 = scmp.ne.s32.totalorder %s620, %s636
      %p638 = scmp.eq.s32.totalorder %s111, 0
      %p639 = por %p637, %p638
      %s640 = ssub.s32 %s113, %s120
      %p641 = scmp.eq.s32.totalorder %s640, 0
      %s643 = sadd.s32 %s642, 1
      %s644 = scalar_select %p641, %s642, %s643
      %p647 = pneg %p641
      %p648 = scmp.eq.s32.totalorder %s105, 3
      %p649 = por %p647, %p648
      %p650 = scmp.ne.s32.totalorder %s642, %s645
      %p651 = scmp.eq.s32.totalorder %s105, 0
      %p652 = por %p650, %p651
      %p653 = scmp.ne.s32.totalorder %s642, %s645
      %p654 = scmp.eq.s32.totalorder %s110, 3
      %p655 = por %p653, %p654
      %p656 = scmp.ne.s32.totalorder %s645, %s646
      %p657 = scmp.eq.s32.totalorder %s110, 0
      %p658 = por %p656, %p657
      %p659 = scmp.ne.s32.totalorder %s645, %s646
      %p660 = scmp.eq.s32.totalorder %s111, 3
      %p661 = por %p659, %p660
      %p663 = scmp.ne.s32.totalorder %s646, %s662
      %p664 = scmp.eq.s32.totalorder %s111, 0
      %p665 = por %p663, %p664
      %s666 = ssub.s32 %s113, %s120
      %p667 = scmp.eq.s32.totalorder %s666, 0
      %s669 = sadd.s32 %s668, 1
      %s670 = scalar_select %p667, %s668, %s669
      %p673 = pneg %p667
      %p674 = scmp.eq.s32.totalorder %s105, 3
      %p675 = por %p673, %p674
      %p676 = scmp.ne.s32.totalorder %s668, %s671
      %p677 = scmp.eq.s32.totalorder %s105, 0
      %p678 = por %p676, %p677
      %p679 = scmp.ne.s32.totalorder %s668, %s671
      %p680 = scmp.eq.s32.totalorder %s110, 3
      %p681 = por %p679, %p680
      %p682 = scmp.ne.s32.totalorder %s671, %s672
      %p683 = scmp.eq.s32.totalorder %s110, 0
      %p684 = por %p682, %p683
      %p685 = scmp.ne.s32.totalorder %s671, %s672
      %p686 = scmp.eq.s32.totalorder %s111, 3
      %p687 = por %p685, %p686
      %p689 = scmp.ne.s32.totalorder %s672, %s688
      %p690 = scmp.eq.s32.totalorder %s111, 0
      %p691 = por %p689, %p690
      %s692 = ssub.s32 %s113, %s120
      %p693 = scmp.eq.s32.totalorder %s692, 0
      %s695 = sadd.s32 %s694, 1
      %s696 = scalar_select %p693, %s694, %s695
      %p699 = pneg %p693
      %p700 = scmp.eq.s32.totalorder %s105, 3
      %p701 = por %p699, %p700
      %p702 = scmp.ne.s32.totalorder %s694, %s697
      %p703 = scmp.eq.s32.totalorder %s105, 0
      %p704 = por %p702, %p703
      %p705 = scmp.ne.s32.totalorder %s694, %s697
      %p706 = scmp.eq.s32.totalorder %s110, 3
      %p707 = por %p705, %p706
      %p708 = scmp.ne.s32.totalorder %s697, %s698
      %p709 = scmp.eq.s32.totalorder %s110, 0
      %p710 = por %p708, %p709
      %p711 = scmp.ne.s32.totalorder %s697, %s698
      %p712 = scmp.eq.s32.totalorder %s111, 3
      %p713 = por %p711, %p712
      %p715 = scmp.ne.s32.totalorder %s698, %s714
      %p716 = scmp.eq.s32.totalorder %s111, 0
      %p717 = por %p715, %p716
      %s718 = ssub.s32 %s113, %s120
      %p719 = scmp.eq.s32.totalorder %s718, 0
      %s721 = sadd.s32 %s720, 1
      %s722 = scalar_select %p719, %s720, %s721
      %p725 = pneg %p719
      %p726 = scmp.eq.s32.totalorder %s105, 3
      %p727 = por %p725, %p726
      %p728 = scmp.ne.s32.totalorder %s720, %s723
      %p729 = scmp.eq.s32.totalorder %s105, 0
      %p730 = por %p728, %p729
      %p731 = scmp.ne.s32.totalorder %s720, %s723
      %p732 = scmp.eq.s32.totalorder %s110, 3
      %p733 = por %p731, %p732
      %p734 = scmp.ne.s32.totalorder %s723, %s724
      %p735 = scmp.eq.s32.totalorder %s110, 0
      %p736 = por %p734, %p735
      %p737 = scmp.ne.s32.totalorder %s723, %s724
      %p738 = scmp.eq.s32.totalorder %s111, 3
      %p739 = por %p737, %p738
      %p741 = scmp.ne.s32.totalorder %s724, %s740
      %p742 = scmp.eq.s32.totalorder %s111, 0
      %p743 = por %p741, %p742
      %s744 = ssub.s32 %s113, %s120
      %p745 = scmp.eq.s32.totalorder %s744, 0
      %s747 = sadd.s32 %s746, 1
      %s748 = scalar_select %p745, %s746, %s747
      %p751 = pneg %p745
      %p752 = scmp.eq.s32.totalorder %s105, 3
      %p753 = por %p751, %p752
      %p754 = scmp.ne.s32.totalorder %s746, %s749
      %p755 = scmp.eq.s32.totalorder %s105, 0
      %p756 = por %p754, %p755
      %p757 = scmp.ne.s32.totalorder %s746, %s749
      %p758 = scmp.eq.s32.totalorder %s110, 3
      %p759 = por %p757, %p758
      %p760 = scmp.ne.s32.totalorder %s749, %s750
      %p761 = scmp.eq.s32.totalorder %s110, 0
      %p762 = por %p760, %p761
      %p763 = scmp.ne.s32.totalorder %s749, %s750
      %p764 = scmp.eq.s32.totalorder %s111, 3
      %p765 = por %p763, %p764
      %p767 = scmp.ne.s32.totalorder %s750, %s766
      %p768 = scmp.eq.s32.totalorder %s111, 0
      %p769 = por %p767, %p768
      %s770 = ssub.s32 %s113, %s120
      %p771 = scmp.eq.s32.totalorder %s770, 0
      %s773 = sadd.s32 %s772, 1
      %s774 = scalar_select %p771, %s772, %s773
      %p777 = pneg %p771
      %p778 = scmp.eq.s32.totalorder %s105, 3
      %p779 = por %p777, %p778
      %p780 = scmp.ne.s32.totalorder %s772, %s775
      %p781 = scmp.eq.s32.totalorder %s105, 0
      %p782 = por %p780, %p781
      %p783 = scmp.ne.s32.totalorder %s772, %s775
      %p784 = scmp.eq.s32.totalorder %s110, 3
      %p785 = por %p783, %p784
      %p786 = scmp.ne.s32.totalorder %s775, %s776
      %p787 = scmp.eq.s32.totalorder %s110, 0
      %p788 = por %p786, %p787
      %p789 = scmp.ne.s32.totalorder %s775, %s776
      %p790 = scmp.eq.s32.totalorder %s111, 3
      %p791 = por %p789, %p790
      %p793 = scmp.ne.s32.totalorder %s776, %s792
      %p794 = scmp.eq.s32.totalorder %s111, 0
      %p795 = por %p793, %p794
      %s796 = ssub.s32 %s113, %s120
      %p797 = scmp.eq.s32.totalorder %s796, 0
      %s799 = sadd.s32 %s798, 1
      %s800 = scalar_select %p797, %s798, %s799
      %p803 = pneg %p797
      %p804 = scmp.eq.s32.totalorder %s105, 3
      %p805 = por %p803, %p804
      %p806 = scmp.ne.s32.totalorder %s798, %s801
      %p807 = scmp.eq.s32.totalorder %s105, 0
      %p808 = por %p806, %p807
      %p809 = scmp.ne.s32.totalorder %s798, %s801
      %p810 = scmp.eq.s32.totalorder %s110, 3
      %p811 = por %p809, %p810
      %p812 = scmp.ne.s32.totalorder %s801, %s802
      %p813 = scmp.eq.s32.totalorder %s110, 0
      %p814 = por %p812, %p813
      %p815 = scmp.ne.s32.totalorder %s801, %s802
      %p816 = scmp.eq.s32.totalorder %s111, 3
      %p817 = por %p815, %p816
      %p819 = scmp.ne.s32.totalorder %s802, %s818
      %p820 = scmp.eq.s32.totalorder %s111, 0
      %p821 = por %p819, %p820
      %s822 = ssub.s32 %s113, %s120
      %p823 = scmp.eq.s32.totalorder %s822, 0
      %s825 = sadd.s32 %s824, 1
      %s826 = scalar_select %p823, %s824, %s825
      %p829 = pneg %p823
      %p830 = scmp.eq.s32.totalorder %s105, 3
      %p831 = por %p829, %p830
      %p832 = scmp.ne.s32.totalorder %s824, %s827
      %p833 = scmp.eq.s32.totalorder %s105, 0
      %p834 = por %p832, %p833
      %p835 = scmp.ne.s32.totalorder %s824, %s827
      %p836 = scmp.eq.s32.totalorder %s110, 3
      %p837 = por %p835, %p836
      %p838 = scmp.ne.s32.totalorder %s827, %s828
      %p839 = scmp.eq.s32.totalorder %s110, 0
      %p840 = por %p838, %p839
      %p841 = scmp.ne.s32.totalorder %s827, %s828
      %p842 = scmp.eq.s32.totalorder %s111, 3
      %p843 = por %p841, %p842
      %p845 = scmp.ne.s32.totalorder %s828, %s844
      %p846 = scmp.eq.s32.totalorder %s111, 0
      %p847 = por %p845, %p846
      %s848 = ssub.s32 %s113, %s120
      %p849 = scmp.eq.s32.totalorder %s848, 0
      %s851 = sadd.s32 %s850, 1
      %s852 = scalar_select %p849, %s850, %s851
      %p855 = pneg %p849
      %p856 = scmp.eq.s32.totalorder %s105, 3
      %p857 = por %p855, %p856
      %p858 = scmp.ne.s32.totalorder %s850, %s853
      %p859 = scmp.eq.s32.totalorder %s105, 0
      %p860 = por %p858, %p859
      %p861 = scmp.ne.s32.totalorder %s850, %s853
      %p862 = scmp.eq.s32.totalorder %s110, 3
      %p863 = por %p861, %p862
      %p864 = scmp.ne.s32.totalorder %s853, %s854
      %p865 = scmp.eq.s32.totalorder %s110, 0
      %p866 = por %p864, %p865
      %p867 = scmp.ne.s32.totalorder %s853, %s854
      %p868 = scmp.eq.s32.totalorder %s111, 3
      %p869 = por %p867, %p868
      %p871 = scmp.ne.s32.totalorder %s854, %s870
      %p872 = scmp.eq.s32.totalorder %s111, 0
      %p873 = por %p871, %p872
      %s875 = sadd.s32 %s874, 1
      %p878 = scmp.eq.s32.totalorder %s105, 3
      %p879 = scmp.ne.s32.totalorder %s874, %s876
      %p880 = scmp.eq.s32.totalorder %s105, 0
      %p881 = por %p879, %p880
      %p882 = scmp.ne.s32.totalorder %s874, %s876
      %p883 = scmp.eq.s32.totalorder %s110, 3
      %p884 = por %p882, %p883
      %p885 = scmp.ne.s32.totalorder %s876, %s877
      %p886 = scmp.eq.s32.totalorder %s110, 0
      %p887 = por %p885, %p886
      %p888 = scmp.ne.s32.totalorder %s876, %s877
      %p889 = scmp.eq.s32.totalorder %s111, 3
      %p890 = por %p888, %p889
      %p892 = scmp.ne.s32.totalorder %s877, %s891
      %p893 = scmp.eq.s32.totalorder %s111, 0
      %p894 = por %p892, %p893
      %s896 = sadd.s32 %s895, 1
      %p899 = scmp.eq.s32.totalorder %s105, 3
      %p900 = scmp.ne.s32.totalorder %s895, %s897
      %p901 = scmp.eq.s32.totalorder %s105, 0
      %p902 = por %p900, %p901
      %p903 = scmp.ne.s32.totalorder %s895, %s897
      %p904 = scmp.eq.s32.totalorder %s110, 3
      %p905 = por %p903, %p904
      %p906 = scmp.ne.s32.totalorder %s897, %s898
      %p907 = scmp.eq.s32.totalorder %s110, 0
      %p908 = por %p906, %p907
      %p909 = scmp.ne.s32.totalorder %s897, %s898
      %p910 = scmp.eq.s32.totalorder %s111, 3
      %p911 = por %p909, %p910
      %p913 = scmp.ne.s32.totalorder %s898, %s912
      %p914 = scmp.eq.s32.totalorder %s111, 0
      %p915 = por %p913, %p914
      %s917 = sadd.s32 %s916, 1
      %p920 = scmp.eq.s32.totalorder %s105, 3
      %p921 = scmp.ne.s32.totalorder %s916, %s918
      %p922 = scmp.eq.s32.totalorder %s105, 0
      %p923 = por %p921, %p922
      %p924 = scmp.ne.s32.totalorder %s916, %s918
      %p925 = scmp.eq.s32.totalorder %s110, 3
      %p926 = por %p924, %p925
      %p927 = scmp.ne.s32.totalorder %s918, %s919
      %p928 = scmp.eq.s32.totalorder %s110, 0
      %p929 = por %p927, %p928
      %p930 = scmp.ne.s32.totalorder %s918, %s919
      %p931 = scmp.eq.s32.totalorder %s111, 3
      %p932 = por %p930, %p931
      %p934 = scmp.ne.s32.totalorder %s919, %s933
      %p935 = scmp.eq.s32.totalorder %s111, 0
      %p936 = por %p934, %p935
      %s938 = sadd.s32 %s937, 1
      %p941 = scmp.eq.s32.totalorder %s105, 3
      %p942 = scmp.ne.s32.totalorder %s937, %s939
      %p943 = scmp.eq.s32.totalorder %s105, 0
      %p944 = por %p942, %p943
      %p945 = scmp.ne.s32.totalorder %s937, %s939
      %p946 = scmp.eq.s32.totalorder %s110, 3
      %p947 = por %p945, %p946
      %p948 = scmp.ne.s32.totalorder %s939, %s940
      %p949 = scmp.eq.s32.totalorder %s110, 0
      %p950 = por %p948, %p949
      %p951 = scmp.ne.s32.totalorder %s939, %s940
      %p952 = scmp.eq.s32.totalorder %s111, 3
      %p953 = por %p951, %p952
      %p955 = scmp.ne.s32.totalorder %s940, %s954
      %p956 = scmp.eq.s32.totalorder %s111, 0
      %p957 = por %p955, %p956
      %s959 = sadd.s32 %s958, 1
      %p962 = scmp.eq.s32.totalorder %s105, 3
      %p963 = scmp.ne.s32.totalorder %s958, %s960
      %p964 = scmp.eq.s32.totalorder %s105, 0
      %p965 = por %p963, %p964
      %p966 = scmp.ne.s32.totalorder %s958, %s960
      %p967 = scmp.eq.s32.totalorder %s110, 3
      %p968 = por %p966, %p967
      %p969 = scmp.ne.s32.totalorder %s960, %s961
      %p970 = scmp.eq.s32.totalorder %s110, 0
      %p971 = por %p969, %p970
      %p972 = scmp.ne.s32.totalorder %s960, %s961
      %p973 = scmp.eq.s32.totalorder %s111, 3
      %p974 = por %p972, %p973
      %p976 = scmp.ne.s32.totalorder %s961, %s975
      %p977 = scmp.eq.s32.totalorder %s111, 0
      %p978 = por %p976, %p977
      %s980 = sadd.s32 %s979, 1
      %p983 = scmp.eq.s32.totalorder %s105, 3
      %p984 = scmp.ne.s32.totalorder %s979, %s981
      %p985 = scmp.eq.s32.totalorder %s105, 0
      %p986 = por %p984, %p985
      %p987 = scmp.ne.s32.totalorder %s979, %s981
      %p988 = scmp.eq.s32.totalorder %s110, 3
      %p989 = por %p987, %p988
      %p990 = scmp.ne.s32.totalorder %s981, %s982
      %p991 = scmp.eq.s32.totalorder %s110, 0
      %p992 = por %p990, %p991
      %p993 = scmp.ne.s32.totalorder %s981, %s982
      %p994 = scmp.eq.s32.totalorder %s111, 3
      %p995 = por %p993, %p994
      %p997 = scmp.ne.s32.totalorder %s982, %s996
      %p998 = scmp.eq.s32.totalorder %s111, 0
      %p999 = por %p997, %p998
      %s1000 = ssub.s32 %s112, %s124
      %p1001 = scmp.eq.s32.totalorder %s1000, 0
      %s1003 = sadd.s32 %s1002, 1
      %s1004 = scalar_select %p1001, %s1002, %s1003
      %p1007 = pneg %p1001
      %p1008 = scmp.eq.s32.totalorder %s105, 3
      %p1009 = por %p1007, %p1008
      %p1010 = scmp.ne.s32.totalorder %s1002, %s1005
      %p1011 = scmp.eq.s32.totalorder %s105, 0
      %p1012 = por %p1010, %p1011
      %p1013 = scmp.ne.s32.totalorder %s1002, %s1005
      %p1014 = scmp.eq.s32.totalorder %s110, 3
      %p1015 = por %p1013, %p1014
      %p1016 = scmp.ne.s32.totalorder %s1005, %s1006
      %p1017 = scmp.eq.s32.totalorder %s110, 0
      %p1018 = por %p1016, %p1017
      %p1019 = scmp.ne.s32.totalorder %s1005, %s1006
      %p1020 = scmp.eq.s32.totalorder %s111, 3
      %p1021 = por %p1019, %p1020
      %p1023 = scmp.ne.s32.totalorder %s1006, %s1022
      %p1024 = scmp.eq.s32.totalorder %s111, 0
      %p1025 = por %p1023, %p1024
      %s1026 = ssub.s32 %s112, %s124
      %p1027 = scmp.eq.s32.totalorder %s1026, 0
      %s1029 = sadd.s32 %s1028, 1
      %s1030 = scalar_select %p1027, %s1028, %s1029
      %p1033 = pneg %p1027
      %p1034 = scmp.eq.s32.totalorder %s105, 3
      %p1035 = por %p1033, %p1034
      %p1036 = scmp.ne.s32.totalorder %s1028, %s1031
      %p1037 = scmp.eq.s32.totalorder %s105, 0
      %p1038 = por %p1036, %p1037
      %p1039 = scmp.ne.s32.totalorder %s1028, %s1031
      %p1040 = scmp.eq.s32.totalorder %s110, 3
      %p1041 = por %p1039, %p1040
      %p1042 = scmp.ne.s32.totalorder %s1031, %s1032
      %p1043 = scmp.eq.s32.totalorder %s110, 0
      %p1044 = por %p1042, %p1043
      %p1045 = scmp.ne.s32.totalorder %s1031, %s1032
      %p1046 = scmp.eq.s32.totalorder %s111, 3
      %p1047 = por %p1045, %p1046
      %p1049 = scmp.ne.s32.totalorder %s1032, %s1048
      %p1050 = scmp.eq.s32.totalorder %s111, 0
      %p1051 = por %p1049, %p1050
      %s1052 = ssub.s32 %s112, %s124
      %p1053 = scmp.eq.s32.totalorder %s1052, 0
      %s1055 = sadd.s32 %s1054, 1
      %s1056 = scalar_select %p1053, %s1054, %s1055
      %p1059 = pneg %p1053
      %p1060 = scmp.eq.s32.totalorder %s105, 3
      %p1061 = por %p1059, %p1060
      %p1062 = scmp.ne.s32.totalorder %s1054, %s1057
      %p1063 = scmp.eq.s32.totalorder %s105, 0
      %p1064 = por %p1062, %p1063
      %p1065 = scmp.ne.s32.totalorder %s1054, %s1057
      %p1066 = scmp.eq.s32.totalorder %s110, 3
      %p1067 = por %p1065, %p1066
      %p1068 = scmp.ne.s32.totalorder %s1057, %s1058
      %p1069 = scmp.eq.s32.totalorder %s110, 0
      %p1070 = por %p1068, %p1069
      %p1071 = scmp.ne.s32.totalorder %s1057, %s1058
      %p1072 = scmp.eq.s32.totalorder %s111, 3
      %p1073 = por %p1071, %p1072
      %p1075 = scmp.ne.s32.totalorder %s1058, %s1074
      %p1076 = scmp.eq.s32.totalorder %s111, 0
      %p1077 = por %p1075, %p1076
      %p1078 = scmp.le.s32.totalorder 1, %s105
      %p1079 = scmp.lt.s32.totalorder %s105, 5
      %p1080 = pnand %p1078, %p1079
      %p1081 = pneg %p1080
      // Predicated region
      $region9: #{_lambda_.1} parent=5 // pred_check
        _
      $region10: #{_lambda_.1} parent=5 // pred_check_branch
        %1083 = sbr.rel (%p1080) target = $region12
      $region11: #{_lambda_.1} parent=5 // pred_region
        %s1084 = ssub.s32 %s105, 1
        // Predicated region
        $region13: #{_lambda_.1} parent=11 // pred_check
          %p1085 = pneg %p190
        $region14: #{_lambda_.1} parent=11 // pred_check_branch
          %1087 = sbr.rel (%p1085) target = $region16
        $region15: #{_lambda_.1} parent=11 // pred_region
          %s1089 = ssub.s32 16, 16
          %1090 = vsyncadd [#allocation5], %s1089
          %s1092 = sshll.u32 %s5, 4
          %s1093 = int_to_ptr.vmem [resolvable:$true] %s1092
          %1095 = dma.vmem_to_smem %s1093, 16, [#allocation6], [#allocation5]
        $region16: #{_lambda_.1} parent=11 // pred_fallthru
          _
        // Predicated region
        $region17: #{_lambda_.1} parent=11 // pred_check
          %p1096 = pneg %p887
        $region18: #{_lambda_.1} parent=11 // pred_check_branch
          %1098 = sbr.rel (%p1096) target = $region20
        $region19: #{_lambda_.1} parent=11 // pred_region
          %s1100 = ssub.s32 128, 128
          %1101 = vsyncadd [#allocation17], %s1100
          %s1103 = sshll.u32 [#allocation18], 4
          %s1104 = int_to_ptr.vmem [resolvable:$true] %s1103
          %1106 = dma.hbm_to_vmem [thread:$0]  %s59, 128, %s1104, [#allocation17]
        $region20: #{_lambda_.1} parent=11 // pred_fallthru
          _
        // Predicated region
        $region21: #{_lambda_.1} parent=11 // pred_check
          %p1107 = pneg %p908
        $region22: #{_lambda_.1} parent=11 // pred_check_branch
          %1109 = sbr.rel (%p1107) target = $region24
        $region23: #{_lambda_.1} parent=11 // pred_region
          _
        $region24: #{_lambda_.1} parent=11 // pred_fallthru
          _
        // Predicated region
        $region25: #{_lambda_.1} parent=11 // pred_check
          %p1110 = pneg %p929
        $region26: #{_lambda_.1} parent=11 // pred_check_branch
          %1112 = sbr.rel (%p1110) target = $region28
        $region27: #{_lambda_.1} parent=11 // pred_region
          %s1114 = ssub.s32 512, 512
          %1115 = vsyncadd [#allocation20], %s1114
          %s1116 = sshll.u32 [#allocation19], 4
          %s1117 = int_to_ptr.vmem [resolvable:$true] %s1116
          %1122 = dma.hbm_to_vmem [thread:$0]  %s63, 512, %s1117, [#allocation20], 128, 128, 8
        $region28: #{_lambda_.1} parent=11 // pred_fallthru
          _
        // Predicated region
        $region29: #{_lambda_.1} parent=11 // pred_check
          %p1123 = pneg %p950
        $region30: #{_lambda_.1} parent=11 // pred_check_branch
          %1125 = sbr.rel (%p1123) target = $region32
        $region31: #{_lambda_.1} parent=11 // pred_region
          _
        $region32: #{_lambda_.1} parent=11 // pred_fallthru
          _
        // Predicated region
        $region33: #{_lambda_.1} parent=11 // pred_check
          %p1126 = pneg %p971
        $region34: #{_lambda_.1} parent=11 // pred_check_branch
          %1128 = sbr.rel (%p1126) target = $region36
        $region35: #{_lambda_.1} parent=11 // pred_region
          %s1130 = ssub.s32 512, 512
          %1131 = vsyncadd [#allocation20], %s1130
          %s1132 = sshll.u32 [#allocation21], 4
          %s1133 = int_to_ptr.vmem [resolvable:$true] %s1132
          %1138 = dma.hbm_to_vmem [thread:$0]  %s67, 512, %s1133, [#allocation20], 128, 128, 8
        $region36: #{_lambda_.1} parent=11 // pred_fallthru
          _
        // Predicated region
        $region37: #{_lambda_.1} parent=11 // pred_check
          %p1139 = pneg %p992
        $region38: #{_lambda_.1} parent=11 // pred_check_branch
          %1141 = sbr.rel (%p1139) target = $region40
        $region39: #{_lambda_.1} parent=11 // pred_region
          _
        $region40: #{_lambda_.1} parent=11 // pred_fallthru
          _
      $region12: #{_lambda_.1} parent=5 // pred_fallthru
        _
      %p1142 = scmp.lt.s32.totalorder %s105, 4
      // Predicated region
      $region41: #{_lambda_.1} parent=5 // pred_check
        %p1143 = pneg %p1142
      $region42: #{_lambda_.1} parent=5 // pred_check_branch
        %1145 = sbr.rel (%p1143) target = $region44
      $region43: #{_lambda_.1} parent=5 // pred_region
        // Predicated region
        $region45: #{_lambda_.1} parent=43 // pred_check
          %p1146 = pneg %p137
        $region46: #{_lambda_.1} parent=43 // pred_check_branch
          %1148 = sbr.rel (%p1146) target = $region48
        $region47: #{_lambda_.1} parent=43 // pred_region
          %p1149 = scmp.lt.s32.totalorder %s112, 1
          %s1150 = scalar_select %p1149, %s112, 1
          %s1151 = smul.addr %s1150, 8
          %s1152 = scalar_lea.vmem %s1, %s1151
        $region48: #{_lambda_.1} parent=43 // pred_fallthru
          _
        // Predicated region
        $region49: #{_lambda_.1} parent=43 // pred_check
          %p1153 = pneg %p163
        $region50: #{_lambda_.1} parent=43 // pred_check_branch
          %1155 = sbr.rel (%p1153) target = $region52
        $region51: #{_lambda_.1} parent=43 // pred_region
          %s1156 = sand.u32 %s153, 1
          %s1157 = scalar_lea.sflag [#allocation3], %s1156
          %s1158 = sand.u32 %s153, 1
          %s1159 = smul.addr %s1158, 8
          %s1160 = scalar_lea.vmem [#allocation2], %s1159
          %s1162 = ssub.s32 128, 128
          %1163 = vsyncadd %s1157, %s1162
          %s1164 = smul.addr %s112, 128
          %s1165 = scalar_lea.hbm %s3, %s1164
          %s1167 = sshll.u32 %s1160, 4
          %s1168 = int_to_ptr.vmem [resolvable:$true] %s1167
          %1170 = dma.hbm_to_vmem [thread:$0]  %s1165, 128, %s1168, %s1157
        $region52: #{_lambda_.1} parent=43 // pred_fallthru
          _
        // Predicated region
        $region53: #{_lambda_.1} parent=43 // pred_check
          %p1171 = pneg %p210
        $region54: #{_lambda_.1} parent=43 // pred_check_branch
          %1173 = sbr.rel (%p1171) target = $region56
        $region55: #{_lambda_.1} parent=43 // pred_region
          %s1174 = sand.u32 %s105, 1
          %s1175 = scalar_lea.sflag [#allocation8], %s1174
          %s1176 = sand.u32 %s200, 1
          %s1177 = smul.addr %s1176, 16
          %s1178 = scalar_lea.vmem [#allocation7], %s1177
          %s1180 = ssub.s32 256, 256
          %1181 = vsyncadd %s1175, %s1180
          %s1182 = smul.addr %s113, 4
          %s1183 = smul.addr %s1182, 64
          %s1184 = scalar_lea.hbm %s7, %s1183
          %s1185 = sshll.u32 %s1178, 4
          %s1186 = int_to_ptr.vmem [resolvable:$true] %s1185
          %1191 = dma.hbm_to_vmem [thread:$0]  %s1184, 256, %s1186, %s1175, 64, 64, 4
        $region56: #{_lambda_.1} parent=43 // pred_fallthru
          _
        // Predicated region
        $region57: #{_lambda_.1} parent=43 // pred_check
          %p1192 = pneg %p236
        $region58: #{_lambda_.1} parent=43 // pred_check_branch
          %1194 = sbr.rel (%p1192) target = $region60
        $region59: #{_lambda_.1} parent=43 // pred_region
          %p1195 = scmp.lt.s32.totalorder %s113, 1
          %s1196 = scalar_select %p1195, %s113, 1
          %s1197 = scalar_lea.vmem %s9, %s1196
        $region60: #{_lambda_.1} parent=43 // pred_fallthru
          _
        // Predicated region
        $region61: #{_lambda_.1} parent=43 // pred_check
          %p1198 = pneg %p262
        $region62: #{_lambda_.1} parent=43 // pred_check_branch
          %1200 = sbr.rel (%p1198) target = $region64
        $region63: #{_lambda_.1} parent=43 // pred_region
          %s1201 = sand.u32 %s105, 1
          %s1202 = scalar_lea.sflag [#allocation8], %s1201
          %s1203 = sand.u32 %s252, 1
          %s1204 = smul.addr %s1203, 16
          %s1205 = scalar_lea.vmem [#allocation9], %s1204
          %s1207 = ssub.s32 256, 256
          %1208 = vsyncadd %s1202, %s1207
          %s1209 = smul.addr %s113, 4
          %s1210 = smul.addr %s1209, 64
          %s1211 = scalar_lea.hbm %s11, %s1210
          %s1212 = sshll.u32 %s1205, 4
          %s1213 = int_to_ptr.vmem [resolvable:$true] %s1212
          %1218 = dma.hbm_to_vmem [thread:$0]  %s1211, 256, %s1213, %s1202, 64, 64, 4
        $region64: #{_lambda_.1} parent=43 // pred_fallthru
          _
        // Predicated region
        $region65: #{_lambda_.1} parent=43 // pred_check
          %p1219 = pneg %p288
        $region66: #{_lambda_.1} parent=43 // pred_check_branch
          %1221 = sbr.rel (%p1219) target = $region68
        $region67: #{_lambda_.1} parent=43 // pred_region
          %p1222 = scmp.lt.s32.totalorder %s113, 1
          %s1223 = scalar_select %p1222, %s113, 1
          %s1224 = scalar_lea.vmem %s13, %s1223
        $region68: #{_lambda_.1} parent=43 // pred_fallthru
          _
        // Predicated region
        $region69: #{_lambda_.1} parent=43 // pred_check
          %p1225 = pneg %p314
        $region70: #{_lambda_.1} parent=43 // pred_check_branch
          %1227 = sbr.rel (%p1225) target = $region72
        $region71: #{_lambda_.1} parent=43 // pred_region
          %p1228 = scmp.lt.s32.totalorder %s113, 1
          %s1229 = scalar_select %p1228, %s113, 1
          %s1230 = scalar_lea.vmem %s15, %s1229
        $region72: #{_lambda_.1} parent=43 // pred_fallthru
          _
        // Predicated region
        $region73: #{_lambda_.1} parent=43 // pred_check
          %p1231 = pneg %p340
        $region74: #{_lambda_.1} parent=43 // pred_check_branch
          %1233 = sbr.rel (%p1231) target = $region76
        $region75: #{_lambda_.1} parent=43 // pred_region
          %p1234 = scmp.lt.s32.totalorder %s113, 1
          %s1235 = scalar_select %p1234, %s113, 1
          %s1236 = scalar_lea.vmem %s17, %s1235
        $region76: #{_lambda_.1} parent=43 // pred_fallthru
          _
        // Predicated region
        $region77: #{_lambda_.1} parent=43 // pred_check
          %p1237 = pneg %p366
        $region78: #{_lambda_.1} parent=43 // pred_check_branch
          %1239 = sbr.rel (%p1237) target = $region80
        $region79: #{_lambda_.1} parent=43 // pred_region
          %s1240 = sand.u32 %s105, 1
          %s1241 = scalar_lea.sflag [#allocation11], %s1240
          %s1242 = sand.u32 %s356, 1
          %s1243 = smul.addr %s1242, 16
          %s1244 = scalar_lea.vmem [#allocation10], %s1243
          %s1246 = ssub.s32 256, 256
          %1247 = vsyncadd %s1241, %s1246
          %s1248 = smul.addr %s113, 4
          %s1249 = smul.addr %s1248, 64
          %s1250 = scalar_lea.hbm %s19, %s1249
          %s1251 = sshll.u32 %s1244, 4
          %s1252 = int_to_ptr.vmem [resolvable:$true] %s1251
          %1257 = dma.hbm_to_vmem [thread:$0]  %s1250, 256, %s1252, %s1241, 64, 64, 4
        $region80: #{_lambda_.1} parent=43 // pred_fallthru
          _
        // Predicated region
        $region81: #{_lambda_.1} parent=43 // pred_check
          %p1258 = pneg %p392
        $region82: #{_lambda_.1} parent=43 // pred_check_branch
          %1260 = sbr.rel (%p1258) target = $region84
        $region83: #{_lambda_.1} parent=43 // pred_region
          %p1261 = scmp.lt.s32.totalorder %s113, 1
          %s1262 = scalar_select %p1261, %s113, 1
          %s1263 = scalar_lea.vmem %s21, %s1262
        $region84: #{_lambda_.1} parent=43 // pred_fallthru
          _
        // Predicated region
        $region85: #{_lambda_.1} parent=43 // pred_check
          %p1264 = pneg %p418
        $region86: #{_lambda_.1} parent=43 // pred_check_branch
          %1266 = sbr.rel (%p1264) target = $region88
        $region87: #{_lambda_.1} parent=43 // pred_region
          %p1267 = scmp.lt.s32.totalorder %s113, 1
          %s1268 = scalar_select %p1267, %s113, 1
          %s1269 = smul.addr %s1268, 8
          %s1270 = smul.addr %s1269, 4
          %s1271 = scalar_lea.vmem %s23, %s1270
        $region88: #{_lambda_.1} parent=43 // pred_fallthru
          _
        // Predicated region
        $region89: #{_lambda_.1} parent=43 // pred_check
          %p1272 = pneg %p444
        $region90: #{_lambda_.1} parent=43 // pred_check_branch
          %1274 = sbr.rel (%p1272) target = $region92
        $region91: #{_lambda_.1} parent=43 // pred_region
          %p1275 = scmp.lt.s32.totalorder %s113, 1
          %s1276 = scalar_select %p1275, %s113, 1
          %s1277 = scalar_lea.vmem %s25, %s1276
        $region92: #{_lambda_.1} parent=43 // pred_fallthru
          _
        // Predicated region
        $region93: #{_lambda_.1} parent=43 // pred_check
          %p1278 = pneg %p470
        $region94: #{_lambda_.1} parent=43 // pred_check_branch
          %1280 = sbr.rel (%p1278) target = $region96
        $region95: #{_lambda_.1} parent=43 // pred_region
          %p1281 = scmp.lt.s32.totalorder %s113, 1
          %s1282 = scalar_select %p1281, %s113, 1
          %s1283 = scalar_lea.vmem %s27, %s1282
        $region96: #{_lambda_.1} parent=43 // pred_fallthru
          _
        // Predicated region
        $region97: #{_lambda_.1} parent=43 // pred_check
          %p1284 = pneg %p496
        $region98: #{_lambda_.1} parent=43 // pred_check_branch
          %1286 = sbr.rel (%p1284) target = $region100
        $region99: #{_lambda_.1} parent=43 // pred_region
          %p1287 = scmp.lt.s32.totalorder %s113, 1
          %s1288 = scalar_select %p1287, %s113, 1
          %s1289 = scalar_lea.vmem %s29, %s1288
        $region100: #{_lambda_.1} parent=43 // pred_fallthru
          _
        // Predicated region
        $region101: #{_lambda_.1} parent=43 // pred_check
          %p1290 = pneg %p522
        $region102: #{_lambda_.1} parent=43 // pred_check_branch
          %1292 = sbr.rel (%p1290) target = $region104
        $region103: #{_lambda_.1} parent=43 // pred_region
          %p1293 = scmp.lt.s32.totalorder %s113, 1
          %s1294 = scalar_select %p1293, %s113, 1
          %s1295 = smul.addr %s1294, 4
          %s1296 = smul.addr %s1295, 4
          %s1297 = scalar_lea.vmem %s31, %s1296
        $region104: #{_lambda_.1} parent=43 // pred_fallthru
          _
        // Predicated region
        $region105: #{_lambda_.1} parent=43 // pred_check
          %p1298 = pneg %p548
        $region106: #{_lambda_.1} parent=43 // pred_check_branch
          %1300 = sbr.rel (%p1298) target = $region108
        $region107: #{_lambda_.1} parent=43 // pred_region
          %p1301 = scmp.lt.s32.totalorder %s113, 1
          %s1302 = scalar_select %p1301, %s113, 1
          %s1303 = scalar_lea.vmem %s33, %s1302
        $region108: #{_lambda_.1} parent=43 // pred_fallthru
          _
        // Predicated region
        $region109: #{_lambda_.1} parent=43 // pred_check
          %p1304 = pneg %p574
        $region110: #{_lambda_.1} parent=43 // pred_check_branch
          %1306 = sbr.rel (%p1304) target = $region112
        $region111: #{_lambda_.1} parent=43 // pred_region
          %s1307 = sand.u32 %s105, 1
          %s1308 = scalar_lea.sflag [#allocation11], %s1307
          %s1309 = sand.u32 %s564, 1
          %s1310 = smul.addr %s1309, 4
          %s1311 = scalar_lea.vmem [#allocation12], %s1310
          %s1313 = ssub.s32 64, 64
          %1314 = vsyncadd %s1308, %s1313
          %s1315 = smul.addr %s113, 64
          %s1316 = scalar_lea.hbm %s35, %s1315
          %s1318 = sshll.u32 %s1311, 4
          %s1319 = int_to_ptr.vmem [resolvable:$true] %s1318
          %1321 = dma.hbm_to_vmem [thread:$0]  %s1316, 64, %s1319, %s1308
        $region112: #{_lambda_.1} parent=43 // pred_fallthru
          _
        // Predicated region
        $region113: #{_lambda_.1} parent=43 // pred_check
          %p1322 = pneg %p600
        $region114: #{_lambda_.1} parent=43 // pred_check_branch
          %1324 = sbr.rel (%p1322) target = $region116
        $region115: #{_lambda_.1} parent=43 // pred_region
          %p1325 = scmp.lt.s32.totalorder %s113, 1
          %s1326 = scalar_select %p1325, %s113, 1
          %s1327 = scalar_lea.vmem %s37, %s1326
        $region116: #{_lambda_.1} parent=43 // pred_fallthru
          _
        // Predicated region
        $region117: #{_lambda_.1} parent=43 // pred_check
          %p1328 = pneg %p626
        $region118: #{_lambda_.1} parent=43 // pred_check_branch
          %1330 = sbr.rel (%p1328) target = $region120
        $region119: #{_lambda_.1} parent=43 // pred_region
          %s1331 = sand.u32 %s105, 1
          %s1332 = scalar_lea.sflag [#allocation14], %s1331
          %s1333 = sand.u32 %s616, 1
          %s1334 = smul.addr %s1333, 4
          %s1335 = scalar_lea.vmem [#allocation13], %s1334
          %s1337 = ssub.s32 64, 64
          %1338 = vsyncadd %s1332, %s1337
          %s1339 = smul.addr %s113, 64
          %s1340 = scalar_lea.hbm %s39, %s1339
          %s1342 = sshll.u32 %s1335, 4
          %s1343 = int_to_ptr.vmem [resolvable:$true] %s1342
          %1345 = dma.hbm_to_vmem [thread:$0]  %s1340, 64, %s1343, %s1332
        $region120: #{_lambda_.1} parent=43 // pred_fallthru
          _
        // Predicated region
        $region121: #{_lambda_.1} parent=43 // pred_check
          %p1346 = pneg %p652
        $region122: #{_lambda_.1} parent=43 // pred_check_branch
          %1348 = sbr.rel (%p1346) target = $region124
        $region123: #{_lambda_.1} parent=43 // pred_region
          %p1349 = scmp.lt.s32.totalorder %s113, 1
          %s1350 = scalar_select %p1349, %s113, 1
          %s1351 = scalar_lea.vmem %s41, %s1350
        $region124: #{_lambda_.1} parent=43 // pred_fallthru
          _
        // Predicated region
        $region125: #{_lambda_.1} parent=43 // pred_check
          %p1352 = pneg %p678
        $region126: #{_lambda_.1} parent=43 // pred_check_branch
          %1354 = sbr.rel (%p1352) target = $region128
        $region127: #{_lambda_.1} parent=43 // pred_region
          %p1355 = scmp.lt.s32.totalorder %s113, 1
          %s1356 = scalar_select %p1355, %s113, 1
          %s1357 = scalar_lea.vmem %s43, %s1356
        $region128: #{_lambda_.1} parent=43 // pred_fallthru
          _
        // Predicated region
        $region129: #{_lambda_.1} parent=43 // pred_check
          %p1358 = pneg %p704
        $region130: #{_lambda_.1} parent=43 // pred_check_branch
          %1360 = sbr.rel (%p1358) target = $region132
        $region131: #{_lambda_.1} parent=43 // pred_region
          %p1361 = scmp.lt.s32.totalorder %s113, 1
          %s1362 = scalar_select %p1361, %s113, 1
          %s1363 = scalar_lea.vmem %s45, %s1362
        $region132: #{_lambda_.1} parent=43 // pred_fallthru
          _
        // Predicated region
        $region133: #{_lambda_.1} parent=43 // pred_check
          %p1364 = pneg %p730
        $region134: #{_lambda_.1} parent=43 // pred_check_branch
          %1366 = sbr.rel (%p1364) target = $region136
        $region135: #{_lambda_.1} parent=43 // pred_region
          %s1367 = sand.u32 %s105, 1
          %s1368 = scalar_lea.sflag [#allocation14], %s1367
          %s1369 = sand.u32 %s720, 1
          %s1370 = smul.addr %s1369, 4
          %s1371 = scalar_lea.vmem [#allocation15], %s1370
          %s1373 = ssub.s32 64, 64
          %1374 = vsyncadd %s1368, %s1373
          %s1375 = smul.addr %s113, 64
          %s1376 = scalar_lea.hbm %s47, %s1375
          %s1378 = sshll.u32 %s1371, 4
          %s1379 = int_to_ptr.vmem [resolvable:$true] %s1378
          %1381 = dma.hbm_to_vmem [thread:$0]  %s1376, 64, %s1379, %s1368
        $region136: #{_lambda_.1} parent=43 // pred_fallthru
          _
        // Predicated region
        $region137: #{_lambda_.1} parent=43 // pred_check
          %p1382 = pneg %p756
        $region138: #{_lambda_.1} parent=43 // pred_check_branch
          %1384 = sbr.rel (%p1382) target = $region140
        $region139: #{_lambda_.1} parent=43 // pred_region
          %p1385 = scmp.lt.s32.totalorder %s113, 1
          %s1386 = scalar_select %p1385, %s113, 1
          %s1387 = scalar_lea.vmem %s49, %s1386
        $region140: #{_lambda_.1} parent=43 // pred_fallthru
          _
        // Predicated region
        $region141: #{_lambda_.1} parent=43 // pred_check
          %p1388 = pneg %p782
        $region142: #{_lambda_.1} parent=43 // pred_check_branch
          %1390 = sbr.rel (%p1388) target = $region144
        $region143: #{_lambda_.1} parent=43 // pred_region
          %s1391 = sand.u32 %s105, 1
          %s1392 = scalar_lea.sflag [#allocation17], %s1391
          %s1393 = sand.u32 %s772, 1
          %s1394 = smul.addr %s1393, 8
          %s1395 = scalar_lea.vmem [#allocation16], %s1394
          %s1397 = ssub.s32 128, 128
          %1398 = vsyncadd %s1392, %s1397
          %s1399 = smul.addr %s113, 2
          %s1400 = smul.addr %s1399, 64
          %s1401 = scalar_lea.hbm %s51, %s1400
          %s1402 = sshll.u32 %s1395, 4
          %s1403 = int_to_ptr.vmem [resolvable:$true] %s1402
          %1408 = dma.hbm_to_vmem [thread:$0]  %s1401, 128, %s1403, %s1392, 64, 64, 4
        $region144: #{_lambda_.1} parent=43 // pred_fallthru
          _
        // Predicated region
        $region145: #{_lambda_.1} parent=43 // pred_check
          %p1409 = pneg %p808
        $region146: #{_lambda_.1} parent=43 // pred_check_branch
          %1411 = sbr.rel (%p1409) target = $region148
        $region147: #{_lambda_.1} parent=43 // pred_region
          %p1412 = scmp.lt.s32.totalorder %s113, 1
          %s1413 = scalar_select %p1412, %s113, 1
          %s1414 = scalar_lea.vmem %s53, %s1413
        $region148: #{_lambda_.1} parent=43 // pred_fallthru
          _
        // Predicated region
        $region149: #{_lambda_.1} parent=43 // pred_check
          %p1415 = pneg %p834
        $region150: #{_lambda_.1} parent=43 // pred_check_branch
          %1417 = sbr.rel (%p1415) target = $region152
        $region151: #{_lambda_.1} parent=43 // pred_region
          %p1418 = scmp.lt.s32.totalorder %s113, 1
          %s1419 = scalar_select %p1418, %s113, 1
          %s1420 = scalar_lea.vmem %s55, %s1419
        $region152: #{_lambda_.1} parent=43 // pred_fallthru
          _
        // Predicated region
        $region153: #{_lambda_.1} parent=43 // pred_check
          %p1421 = pneg %p860
        $region154: #{_lambda_.1} parent=43 // pred_check_branch
          %1423 = sbr.rel (%p1421) target = $region156
        $region155: #{_lambda_.1} parent=43 // pred_region
          %p1424 = scmp.lt.s32.totalorder %s113, 1
          %s1425 = scalar_select %p1424, %s113, 1
          %s1426 = scalar_lea.vmem %s57, %s1425
        $region156: #{_lambda_.1} parent=43 // pred_fallthru
          _
      $region44: #{_lambda_.1} parent=5 // pred_fallthru
        _
      %p1427 = scmp.le.s32.totalorder 1, %s105
      %p1428 = scmp.lt.s32.totalorder %s105, 5
      %p1429 = pnand %p1427, %p1428
      %p1430 = pneg %p1429
      // Predicated region
      $region157: #{_lambda_.1} parent=5 // pred_check
        _
      $region158: #{_lambda_.1} parent=5 // pred_check_branch
        %1432 = sbr.rel (%p1429) target = $region160
      $region159: #{_lambda_.1} parent=5 // pred_region
        %s1433 = ssub.s32 %s105, 1
        %s1434 = sand.u32 %s156, 1
        %s1435 = scalar_lea.sflag [#allocation3], %s1434
        %s1436 = sand.u32 %s156, 1
        %s1437 = smul.addr %s1436, 8
        %s1438 = scalar_lea.vmem [#allocation2], %s1437
        // Predicated region
        $region161: #{_lambda_.1} parent=159 // pred_check
          %p1439 = pneg %p169
        $region162: #{_lambda_.1} parent=159 // pred_check_branch
          %1441 = sbr.rel (%p1439) target = $region164
        $region163: #{_lambda_.1} parent=159 // pred_region
          %1442 = dma.done %s1435, 128
        $region164: #{_lambda_.1} parent=159 // pred_fallthru
          _
        // Predicated region
        $region165: #{_lambda_.1} parent=159 // pred_check
          %p1443 = pneg %p190
        $region166: #{_lambda_.1} parent=159 // pred_check_branch
          %1445 = sbr.rel (%p1443) target = $region168
        $region167: #{_lambda_.1} parent=159 // pred_region
          %1446 = dma.done [#allocation5], 16
        $region168: #{_lambda_.1} parent=159 // pred_fallthru
          _
        %s1447 = sand.u32 %s110, 1
        %s1448 = scalar_lea.sflag [#allocation8], %s1447
        %s1449 = sand.u32 %s203, 1
        %s1450 = smul.addr %s1449, 16
        %s1451 = scalar_lea.vmem [#allocation7], %s1450
        // Predicated region
        $region169: #{_lambda_.1} parent=159 // pred_check
          %p1452 = pneg %p216
        $region170: #{_lambda_.1} parent=159 // pred_check_branch
          %1454 = sbr.rel (%p1452) target = $region172
        $region171: #{_lambda_.1} parent=159 // pred_region
          %1455 = dma.done %s1448, 256
        $region172: #{_lambda_.1} parent=159 // pred_fallthru
          _
        %s1456 = sand.u32 %s110, 1
        %s1457 = scalar_lea.sflag [#allocation8], %s1456
        %s1458 = sand.u32 %s255, 1
        %s1459 = smul.addr %s1458, 16
        %s1460 = scalar_lea.vmem [#allocation9], %s1459
        // Predicated region
        $region173: #{_lambda_.1} parent=159 // pred_check
          %p1461 = pneg %p268
        $region174: #{_lambda_.1} parent=159 // pred_check_branch
          %1463 = sbr.rel (%p1461) target = $region176
        $region175: #{_lambda_.1} parent=159 // pred_region
          %1464 = dma.done %s1457, 256
        $region176: #{_lambda_.1} parent=159 // pred_fallthru
          _
        %s1465 = sand.u32 %s110, 1
        %s1466 = scalar_lea.sflag [#allocation11], %s1465
        %s1467 = sand.u32 %s359, 1
        %s1468 = smul.addr %s1467, 16
        %s1469 = scalar_lea.vmem [#allocation10], %s1468
        // Predicated region
        $region177: #{_lambda_.1} parent=159 // pred_check
          %p1470 = pneg %p372
        $region178: #{_lambda_.1} parent=159 // pred_check_branch
          %1472 = sbr.rel (%p1470) target = $region180
        $region179: #{_lambda_.1} parent=159 // pred_region
          %1473 = dma.done %s1466, 256
        $region180: #{_lambda_.1} parent=159 // pred_fallthru
          _
        %s1474 = sand.u32 %s110, 1
        %s1475 = scalar_lea.sflag [#allocation11], %s1474
        %s1476 = sand.u32 %s567, 1
        %s1477 = smul.addr %s1476, 4
        %s1478 = scalar_lea.vmem [#allocation12], %s1477
        // Predicated region
        $region181: #{_lambda_.1} parent=159 // pred_check
          %p1479 = pneg %p580
        $region182: #{_lambda_.1} parent=159 // pred_check_branch
          %1481 = sbr.rel (%p1479) target = $region184
        $region183: #{_lambda_.1} parent=159 // pred_region
          %1482 = dma.done %s1475, 64
        $region184: #{_lambda_.1} parent=159 // pred_fallthru
          _
        %s1483 = sand.u32 %s110, 1
        %s1484 = scalar_lea.sflag [#allocation14], %s1483
        %s1485 = sand.u32 %s619, 1
        %s1486 = smul.addr %s1485, 4
        %s1487 = scalar_lea.vmem [#allocation13], %s1486
        // Predicated region
        $region185: #{_lambda_.1} parent=159 // pred_check
          %p1488 = pneg %p632
        $region186: #{_lambda_.1} parent=159 // pred_check_branch
          %1490 = sbr.rel (%p1488) target = $region188
        $region187: #{_lambda_.1} parent=159 // pred_region
          %1491 = dma.done %s1484, 64
        $region188: #{_lambda_.1} parent=159 // pred_fallthru
          _
        %s1492 = sand.u32 %s110, 1
        %s1493 = scalar_lea.sflag [#allocation14], %s1492
        %s1494 = sand.u32 %s723, 1
        %s1495 = smul.addr %s1494, 4
        %s1496 = scalar_lea.vmem [#allocation15], %s1495
        // Predicated region
        $region189: #{_lambda_.1} parent=159 // pred_check
          %p1497 = pneg %p736
        $region190: #{_lambda_.1} parent=159 // pred_check_branch
          %1499 = sbr.rel (%p1497) target = $region192
        $region191: #{_lambda_.1} parent=159 // pred_region
          %1500 = dma.done %s1493, 64
        $region192: #{_lambda_.1} parent=159 // pred_fallthru
          _
        %s1501 = sand.u32 %s110, 1
        %s1502 = scalar_lea.sflag [#allocation17], %s1501
        %s1503 = sand.u32 %s775, 1
        %s1504 = smul.addr %s1503, 8
        %s1505 = scalar_lea.vmem [#allocation16], %s1504
        // Predicated region
        $region193: #{_lambda_.1} parent=159 // pred_check
          %p1506 = pneg %p788
        $region194: #{_lambda_.1} parent=159 // pred_check_branch
          %1508 = sbr.rel (%p1506) target = $region196
        $region195: #{_lambda_.1} parent=159 // pred_region
          %1509 = dma.done %s1502, 128
        $region196: #{_lambda_.1} parent=159 // pred_fallthru
          _
        // Predicated region
        $region197: #{_lambda_.1} parent=159 // pred_check
          %p1510 = pneg %p887
        $region198: #{_lambda_.1} parent=159 // pred_check_branch
          %1512 = sbr.rel (%p1510) target = $region200
        $region199: #{_lambda_.1} parent=159 // pred_region
          %1513 = dma.done [#allocation17], 128
        $region200: #{_lambda_.1} parent=159 // pred_fallthru
          _
        // Predicated region
        $region201: #{_lambda_.1} parent=159 // pred_check
          %p1514 = pneg %p929
        $region202: #{_lambda_.1} parent=159 // pred_check_branch
          %1516 = sbr.rel (%p1514) target = $region204
        $region203: #{_lambda_.1} parent=159 // pred_region
          %1517 = dma.done [#allocation20], 512
        $region204: #{_lambda_.1} parent=159 // pred_fallthru
          _
        // Predicated region
        $region205: #{_lambda_.1} parent=159 // pred_check
          %p1518 = pneg %p971
        $region206: #{_lambda_.1} parent=159 // pred_check_branch
          %1520 = sbr.rel (%p1518) target = $region208
        $region207: #{_lambda_.1} parent=159 // pred_region
          %1521 = dma.done [#allocation20], 512
        $region208: #{_lambda_.1} parent=159 // pred_fallthru
          _
        %1522 = sfence
        %p1523 = scmp.lt.s32.totalorder %s114, 1
        %s1524 = scalar_select %p1523, %s114, 1
        %s1525 = smul.addr %s1524, 8
        %s1526 = scalar_lea.vmem %s1, %s1525
        %p1527 = pneg %p143
        %p1528 = pneg %p140
        %s1529 = sand.u32 %s156, 1
        %s1530 = scalar_lea.sflag [#allocation3], %s1529
        %s1531 = sand.u32 %s156, 1
        %s1532 = smul.addr %s1531, 8
        %s1533 = scalar_lea.vmem [#allocation2], %s1532
        %p1534 = pneg %p169
        %p1535 = pneg %p166
        %p1536 = pneg %p190
        %p1537 = pneg %p187
        %s1538 = sand.u32 %s110, 1
        %s1539 = scalar_lea.sflag [#allocation8], %s1538
        %s1540 = sand.u32 %s203, 1
        %s1541 = smul.addr %s1540, 16
        %s1542 = scalar_lea.vmem [#allocation7], %s1541
        %p1543 = pneg %p216
        %p1544 = pneg %p213
        %p1545 = scmp.lt.s32.totalorder %s115, 1
        %s1546 = scalar_select %p1545, %s115, 1
        %s1547 = scalar_lea.vmem %s9, %s1546
        %p1548 = pneg %p242
        %p1549 = pneg %p239
        %s1550 = sand.u32 %s110, 1
        %s1551 = scalar_lea.sflag [#allocation8], %s1550
        %s1552 = sand.u32 %s255, 1
        %s1553 = smul.addr %s1552, 16
        %s1554 = scalar_lea.vmem [#allocation9], %s1553
        %p1555 = pneg %p268
        %p1556 = pneg %p265
        %p1557 = scmp.lt.s32.totalorder %s115, 1
        %s1558 = scalar_select %p1557, %s115, 1
        %s1559 = scalar_lea.vmem %s13, %s1558
        %p1560 = pneg %p294
        %p1561 = pneg %p291
        %p1562 = scmp.lt.s32.totalorder %s115, 1
        %s1563 = scalar_select %p1562, %s115, 1
        %s1564 = scalar_lea.vmem %s15, %s1563
        %p1565 = pneg %p320
        %p1566 = pneg %p317
        %p1567 = scmp.lt.s32.totalorder %s115, 1
        %s1568 = scalar_select %p1567, %s115, 1
        %s1569 = scalar_lea.vmem %s17, %s1568
        %p1570 = pneg %p346
        %p1571 = pneg %p343
        %s1572 = sand.u32 %s110, 1
        %s1573 = scalar_lea.sflag [#allocation11], %s1572
        %s1574 = sand.u32 %s359, 1
        %s1575 = smul.addr %s1574, 16
        %s1576 = scalar_lea.vmem [#allocation10], %s1575
        %p1577 = pneg %p372
        %p1578 = pneg %p369
        %p1579 = scmp.lt.s32.totalorder %s115, 1
        %s1580 = scalar_select %p1579, %s115, 1
        %s1581 = scalar_lea.vmem %s21, %s1580
        %p1582 = pneg %p398
        %p1583 = pneg %p395
        %p1584 = scmp.lt.s32.totalorder %s115, 1
        %s1585 = scalar_select %p1584, %s115, 1
        %s1586 = smul.addr %s1585, 8
        %s1587 = smul.addr %s1586, 4
        %s1588 = scalar_lea.vmem %s23, %s1587
        %p1589 = pneg %p424
        %p1590 = pneg %p421
        %p1591 = scmp.lt.s32.totalorder %s115, 1
        %s1592 = scalar_select %p1591, %s115, 1
        %s1593 = scalar_lea.vmem %s25, %s1592
        %p1594 = pneg %p450
        %p1595 = pneg %p447
        %p1596 = scmp.lt.s32.totalorder %s115, 1
        %s1597 = scalar_select %p1596, %s115, 1
        %s1598 = scalar_lea.vmem %s27, %s1597
        %p1599 = pneg %p476
        %p1600 = pneg %p473
        %p1601 = scmp.lt.s32.totalorder %s115, 1
        %s1602 = scalar_select %p1601, %s115, 1
        %s1603 = scalar_lea.vmem %s29, %s1602
        %p1604 = pneg %p502
        %p1605 = pneg %p499
        %p1606 = scmp.lt.s32.totalorder %s115, 1
        %s1607 = scalar_select %p1606, %s115, 1
        %s1608 = smul.addr %s1607, 4
        %s1609 = smul.addr %s1608, 4
        %s1610 = scalar_lea.vmem %s31, %s1609
        %p1611 = pneg %p528
        %p1612 = pneg %p525
        %p1613 = scmp.lt.s32.totalorder %s115, 1
        %s1614 = scalar_select %p1613, %s115, 1
        %s1615 = scalar_lea.vmem %s33, %s1614
        %p1616 = pneg %p554
        %p1617 = pneg %p551
        %s1618 = sand.u32 %s110, 1
        %s1619 = scalar_lea.sflag [#allocation11], %s1618
        %s1620 = sand.u32 %s567, 1
        %s1621 = smul.addr %s1620, 4
        %s1622 = scalar_lea.vmem [#allocation12], %s1621
        %p1623 = pneg %p580
        %p1624 = pneg %p577
        %p1625 = scmp.lt.s32.totalorder %s115, 1
        %s1626 = scalar_select %p1625, %s115, 1
        %s1627 = scalar_lea.vmem %s37, %s1626
        %p1628 = pneg %p606
        %p1629 = pneg %p603
        %s1630 = sand.u32 %s110, 1
        %s1631 = scalar_lea.sflag [#allocation14], %s1630
        %s1632 = sand.u32 %s619, 1
        %s1633 = smul.addr %s1632, 4
        %s1634 = scalar_lea.vmem [#allocation13], %s1633
        %p1635 = pneg %p632
        %p1636 = pneg %p629
        %p1637 = scmp.lt.s32.totalorder %s115, 1
        %s1638 = scalar_select %p1637, %s115, 1
        %s1639 = scalar_lea.vmem %s41, %s1638
        %p1640 = pneg %p658
        %p1641 = pneg %p655
        %p1642 = scmp.lt.s32.totalorder %s115, 1
        %s1643 = scalar_select %p1642, %s115, 1
        %s1644 = scalar_lea.vmem %s43, %s1643
        %p1645 = pneg %p684
        %p1646 = pneg %p681
        %p1647 = scmp.lt.s32.totalorder %s115, 1
        %s1648 = scalar_select %p1647, %s115, 1
        %s1649 = scalar_lea.vmem %s45, %s1648
        %p1650 = pneg %p710
        %p1651 = pneg %p707
        %s1652 = sand.u32 %s110, 1
        %s1653 = scalar_lea.sflag [#allocation14], %s1652
        %s1654 = sand.u32 %s723, 1
        %s1655 = smul.addr %s1654, 4
        %s1656 = scalar_lea.vmem [#allocation15], %s1655
        %p1657 = pneg %p736
        %p1658 = pneg %p733
        %p1659 = scmp.lt.s32.totalorder %s115, 1
        %s1660 = scalar_select %p1659, %s115, 1
        %s1661 = scalar_lea.vmem %s49, %s1660
        %p1662 = pneg %p762
        %p1663 = pneg %p759
        %s1664 = sand.u32 %s110, 1
        %s1665 = scalar_lea.sflag [#allocation17], %s1664
        %s1666 = sand.u32 %s775, 1
        %s1667 = smul.addr %s1666, 8
        %s1668 = scalar_lea.vmem [#allocation16], %s1667
        %p1669 = pneg %p788
        %p1670 = pneg %p785
        %p1671 = scmp.lt.s32.totalorder %s115, 1
        %s1672 = scalar_select %p1671, %s115, 1
        %s1673 = scalar_lea.vmem %s53, %s1672
        %p1674 = pneg %p814
        %p1675 = pneg %p811
        %p1676 = scmp.lt.s32.totalorder %s115, 1
        %s1677 = scalar_select %p1676, %s115, 1
        %s1678 = scalar_lea.vmem %s55, %s1677
        %p1679 = pneg %p840
        %p1680 = pneg %p837
        %p1681 = scmp.lt.s32.totalorder %s115, 1
        %s1682 = scalar_select %p1681, %s115, 1
        %s1683 = scalar_lea.vmem %s57, %s1682
        %p1684 = pneg %p866
        %p1685 = pneg %p863
        %p1686 = pneg %p887
        %p1687 = pneg %p884
        %p1688 = pneg %p908
        %p1689 = pneg %p905
        %p1690 = pneg %p929
        %p1691 = pneg %p926
        %p1692 = pneg %p950
        %p1693 = pneg %p947
        %p1694 = pneg %p971
        %p1695 = pneg %p968
        %p1696 = pneg %p992
        %p1697 = pneg %p989
        %p1698 = pneg %p1018
        %p1699 = pneg %p1015
        %s1700 = sand.u32 %s1005, 1
        %s1701 = scalar_lea.sflag [#allocation4], %s1700
        %s1702 = sand.u32 %s1005, 1
        %s1703 = smul.addr %s1702, 8
        %s1704 = scalar_lea.vmem [#allocation22], %s1703
        %p1705 = pneg %p1044
        %p1706 = pneg %p1041
        %s1707 = sand.u32 %s110, 1
        %s1708 = scalar_lea.sflag [#allocation24], %s1707
        %s1709 = sand.u32 %s1031, 1
        %s1710 = smul.addr %s1709, 8
        %s1711 = scalar_lea.vmem [#allocation23], %s1710
        %p1712 = pneg %p1070
        %p1713 = pneg %p1067
        %s1714 = sand.u32 %s110, 1
        %s1715 = scalar_lea.sflag [#allocation24], %s1714
        %s1716 = sand.u32 %s1057, 1
        %s1717 = scalar_lea.vmem [#allocation25], %s1716
        %p1718 = scmp.lt.s32.totalorder %s114, 1
        %s1719 = scalar_select %p1718, %s114, 1
        %s1720 = smul.addr %s1719, 8
        %s1721 = scalar_lea.vmem %s1, %s1720
        %p1722 = scmp.lt.s32.totalorder %s115, 1
        %s1723 = scalar_select %p1722, %s115, 1
        %s1724 = scalar_lea.vmem %s9, %s1723
        %p1725 = scmp.lt.s32.totalorder %s115, 1
        %s1726 = scalar_select %p1725, %s115, 1
        %s1727 = scalar_lea.vmem %s13, %s1726
        %p1728 = scmp.lt.s32.totalorder %s115, 1
        %s1729 = scalar_select %p1728, %s115, 1
        %s1730 = scalar_lea.vmem %s15, %s1729
        %p1731 = scmp.lt.s32.totalorder %s115, 1
        %s1732 = scalar_select %p1731, %s115, 1
        %s1733 = scalar_lea.vmem %s17, %s1732
        %p1734 = scmp.lt.s32.totalorder %s115, 1
        %s1735 = scalar_select %p1734, %s115, 1
        %s1736 = scalar_lea.vmem %s21, %s1735
        %p1737 = scmp.lt.s32.totalorder %s115, 1
        %s1738 = scalar_select %p1737, %s115, 1
        %s1739 = smul.addr %s1738, 8
        %s1740 = smul.addr %s1739, 4
        %s1741 = scalar_lea.vmem %s23, %s1740
        %p1742 = scmp.lt.s32.totalorder %s115, 1
        %s1743 = scalar_select %p1742, %s115, 1
        %s1744 = scalar_lea.vmem %s25, %s1743
        %p1745 = scmp.lt.s32.totalorder %s115, 1
        %s1746 = scalar_select %p1745, %s115, 1
        %s1747 = scalar_lea.vmem %s27, %s1746
        %p1748 = scmp.lt.s32.totalorder %s115, 1
        %s1749 = scalar_select %p1748, %s115, 1
        %s1750 = scalar_lea.vmem %s29, %s1749
        %p1751 = scmp.lt.s32.totalorder %s115, 1
        %s1752 = scalar_select %p1751, %s115, 1
        %s1753 = smul.addr %s1752, 4
        %s1754 = smul.addr %s1753, 4
        %s1755 = scalar_lea.vmem %s31, %s1754
        %p1756 = scmp.lt.s32.totalorder %s115, 1
        %s1757 = scalar_select %p1756, %s115, 1
        %s1758 = scalar_lea.vmem %s33, %s1757
        %p1759 = scmp.lt.s32.totalorder %s115, 1
        %s1760 = scalar_select %p1759, %s115, 1
        %s1761 = scalar_lea.vmem %s37, %s1760
        %p1762 = scmp.lt.s32.totalorder %s115, 1
        %s1763 = scalar_select %p1762, %s115, 1
        %s1764 = scalar_lea.vmem %s41, %s1763
        %p1765 = scmp.lt.s32.totalorder %s115, 1
        %s1766 = scalar_select %p1765, %s115, 1
        %s1767 = scalar_lea.vmem %s43, %s1766
        %p1768 = scmp.lt.s32.totalorder %s115, 1
        %s1769 = scalar_select %p1768, %s115, 1
        %s1770 = scalar_lea.vmem %s45, %s1769
        %p1771 = scmp.lt.s32.totalorder %s115, 1
        %s1772 = scalar_select %p1771, %s115, 1
        %s1773 = scalar_lea.vmem %s49, %s1772
        %p1774 = scmp.lt.s32.totalorder %s115, 1
        %s1775 = scalar_select %p1774, %s115, 1
        %s1776 = scalar_lea.vmem %s53, %s1775
        %p1777 = scmp.lt.s32.totalorder %s115, 1
        %s1778 = scalar_select %p1777, %s115, 1
        %s1779 = scalar_lea.vmem %s55, %s1778
        %p1780 = scmp.lt.s32.totalorder %s115, 1
        %s1781 = scalar_select %p1780, %s115, 1
        %s1782 = scalar_lea.vmem %s57, %s1781
        %p1784 = scmp.eq.s32.totalorder %s115, 0
        // Predicated region
        $region209: #{_lambda_.1} parent=159 // pred_check
          %p1785 = pneg %p1784
        $region210: #{_lambda_.1} parent=159 // pred_check_branch
          %1787 = sbr.rel (%p1785) target = $region212
        $region211: #{_lambda_.1} parent=159 // pred_region
          %v1788 = vld [vmem:[%s1721] sm:$0xff]
          %vm1789 = vcmask 261120
          %1790 = vst.msk [vmem:[%s1704] sm:$0xff] %vm1789, %v1788
          %v1791 = vld [vmem:[%s1438] sm:$0xff]
          %vm1792 = vcmask 64512
          %1793 = vst.msk [vmem:[%s1711] sm:$0xff] %vm1792, %v1791
        $region212: #{_lambda_.1} parent=159 // pred_fallthru
          _
        %v1794 = vld [vmem:[%s1704] sm:$0xff]
        %v1795 = vld [vmem:[%s1451] sm:$0xf]
        %v1796 = vld [vmem:[%s1451 + $0x4] sm:$0xf]
        %v1797 = vld [vmem:[%s1451 + $0x8] sm:$0xf]
        %v1798 = vld [vmem:[%s1451 + $0xc] sm:$0xf]
        %v1799 = vld [vmem:[%s1724] sm:$0x1]
        %v1800 = vld [vmem:[%s1460] sm:$0xf]
        %v1801 = vld [vmem:[%s1460 + $0x4] sm:$0xf]
        %v1802 = vld [vmem:[%s1460 + $0x8] sm:$0xf]
        %v1803 = vld [vmem:[%s1460 + $0xc] sm:$0xf]
        %v1804 = vld [vmem:[%s1727] sm:$0x1]
        %v1805 = vpack.c.bf16 %v1794, %v1794
        %v1807 = vlaneseq
        %v1808 = vshrl.u32 %v1807, 7
        %v1809 = vsub.s32 0, %v1808
        %v1810 = vrot.slane %v1799, %v1809
        %v1816 = vunpack.c.l.b16 %v1795
        %v1817 = vunpack.c.l.b16 %v1796
        %v1818 = vunpack.c.l.b16 %v1797
        %v1819 = vunpack.c.l.b16 %v1798
        %v1820 = vpack.c.b16 %v1817, %v1816
        %v1821 = vpack.c.b16 %v1819, %v1818
        %vm1824 = vcmask 261120
        %v1826 = vsel %vm1824, %v1805, 0
        %1828 = vmatprep.subr.bf16.mxu0 0
        %1829 = vmatpush1.bf16.msra.mxu0 %v1820
        %1830 = vmatprep.subr.bf16.mxu0 0
        %1831 = vmatpush1.bf16.msra.mxu0 %v1821
        %1832 = vmatprep.subr.bf16.mxu0 0
        %1833 = vmatpush1.bf16.msra.mxu0 0
        %1834 = vmatprep.subr.bf16.mxu0 0
        %1835 = vmatpush1.bf16.msra.mxu0 0
        %1836 = vmatprep.subr.bf16.mxu0 0
        %1837 = vmatpush1.bf16.msra.mxu0 0
        %1838 = vmatprep.subr.bf16.mxu0 0
        %1839 = vmatpush1.bf16.msra.mxu0 0
        %1840 = vmatprep.subr.bf16.mxu0 0
        %1841 = vmatpush1.bf16.msra.mxu0 0
        %1842 = vmatprep.subr.bf16.mxu0 0
        %1843 = vmatpush1.bf16.msra.mxu0 0
        %1844 = vmatprep.subr.bf16.mxu0 0
        %1845 = vmatpush1.bf16.msra.mxu0 0
        %1846 = vmatprep.subr.bf16.mxu0 0
        %1847 = vmatpush1.bf16.msra.mxu0 0
        %1848 = vmatprep.subr.bf16.mxu0 0
        %1849 = vmatpush1.bf16.msra.mxu0 0
        %1850 = vmatprep.subr.bf16.mxu0 0
        %1851 = vmatpush1.bf16.msra.mxu0 0
        %1852 = vmatprep.subr.bf16.mxu0 0
        %1853 = vmatpush1.bf16.msra.mxu0 0
        %1854 = vmatprep.subr.bf16.mxu0 0
        %1855 = vmatpush1.bf16.msra.mxu0 0
        %1856 = vmatprep.subr.bf16.mxu0 0
        %1857 = vmatpush1.bf16.msra.mxu0 0
        %1858 = vmatprep.subr.bf16.mxu0 0
        %1859 = vmatpush1.bf16.msra.mxu0 0
        %1860 = vmatprep.mubr.bf16.mxu0 0
        %1861 = vmatmul.mubr.bf16.gmra.mrb[0].mxu0 %v1826
        %v1862 = vpop.f32.mrb[0].mxu0
        %v1863 = vadd.f32 %v1810, %v1862
        %v1864 = vpop.f32.mrb[0].mxu0
        %v1865 = vpop.f32.mrb[0].mxu0
        %v1866 = vpop.f32.mrb[0].mxu0
        %1867 = vdwg.mxu0
        %v1868 = vmul.f32 %v1863, 0.35355338
        %1870 = vrot.lane.b32.xlu0 %v1868, 120
        %v1871 = vpop.permute.xlu0 %1870
        %1873 = vrot.lane.b32.xlu0 %v1868, 112
        %v1874 = vpop.permute.xlu0 %1873
        %1876 = vrot.lane.b32.xlu0 %v1868, 104
        %v1877 = vpop.permute.xlu0 %1876
        %1880 = vrot.lane.b32.xlu0 %v1863, 120
        %v1881 = vpop.permute.xlu0 %1880
        %1883 = vrot.lane.b32.xlu0 %v1863, 112
        %v1884 = vpop.permute.xlu0 %1883
        %1886 = vrot.lane.b32.xlu0 %v1863, 104
        %v1887 = vpop.permute.xlu0 %1886
        %v1889 = vpack.c.bf16 %v1868, %v1868
        %v1890 = vpack.c.bf16 %v1871, %v1871
        %v1891 = vpack.c.bf16 %v1874, %v1874
        %v1892 = vpack.c.bf16 %v1877, %v1877
        %v1893 = vpack.c.bf16 %v1863, %v1863
        %v1894 = vpack.c.bf16 %v1881, %v1881
        %v1895 = vpack.c.bf16 %v1884, %v1884
        %v1896 = vpack.c.bf16 %v1887, %v1887
        %1898 = vrot.lane.b32.xlu0 %v1893, 96
        %v1899 = vpop.permute.xlu0 %1898
        %vm1900 = vcmask 64512
        %v1902 = vsel %vm1900, %v1889, 0
        %v1905 = vsel %vm1900, %v1899, 0
        %1907 = vmatprep.subr.bf16.mxu0 0
        %1908 = vmatpush1.bf16.xpose.msra.mxu0 %v1905
        %1909 = vmatprep.subr.bf16.mxu0 0
        %1910 = vmatpush1.bf16.xpose.msra.mxu0 0
        %1911 = vmatprep.subr.bf16.mxu0 0
        %1912 = vmatpush1.bf16.xpose.msra.mxu0 0
        %1913 = vmatprep.subr.bf16.mxu0 0
        %1914 = vmatpush1.bf16.xpose.msra.mxu0 0
        %1915 = vmatprep.subr.bf16.mxu0 0
        %1916 = vmatpush1.bf16.xpose.msra.mxu0 0
        %1917 = vmatprep.subr.bf16.mxu0 0
        %1918 = vmatpush1.bf16.xpose.msra.mxu0 0
        %1919 = vmatprep.subr.bf16.mxu0 0
        %1920 = vmatpush1.bf16.xpose.msra.mxu0 0
        %1921 = vmatprep.subr.bf16.mxu0 0
        %1922 = vmatpush1.bf16.xpose.msra.mxu0 0
        %1923 = vmatprep.subr.bf16.mxu0 0
        %1924 = vmatpush1.bf16.xpose.msra.mxu0 0
        %1925 = vmatprep.subr.bf16.mxu0 0
        %1926 = vmatpush1.bf16.xpose.msra.mxu0 0
        %1927 = vmatprep.subr.bf16.mxu0 0
        %1928 = vmatpush1.bf16.xpose.msra.mxu0 0
        %1929 = vmatprep.subr.bf16.mxu0 0
        %1930 = vmatpush1.bf16.xpose.msra.mxu0 0
        %1931 = vmatprep.subr.bf16.mxu0 0
        %1932 = vmatpush1.bf16.xpose.msra.mxu0 0
        %1933 = vmatprep.subr.bf16.mxu0 0
        %1934 = vmatpush1.bf16.xpose.msra.mxu0 0
        %1935 = vmatprep.subr.bf16.mxu0 0
        %1936 = vmatpush1.bf16.xpose.msra.mxu0 0
        %1937 = vmatprep.subr.bf16.mxu0 0
        %1938 = vmatpush1.bf16.xpose.msra.mxu0 0
        %1939 = vmatprep.mubr.bf16.mxu0 0
        %1940 = vmatmul.mubr.bf16.gmra.mrb[0].mxu0 %v1902
        %v1941 = vpop.f32.mrb[0].mxu0
        %v1942 = vadd.f32 0.0, %v1941
        %v1943 = vpop.f32.mrb[0].mxu0
        %v1944 = vpop.f32.mrb[0].mxu0
        %v1945 = vpop.f32.mrb[0].mxu0
        %1946 = vdwg.mxu0
        %1948 = vrot.lane.b32.xlu0 %v1894, 96
        %v1949 = vpop.permute.xlu0 %1948
        %v1951 = vsel %vm1900, %v1890, 0
        %v1954 = vsel %vm1900, %v1949, 0
        %1956 = vmatprep.subr.bf16.mxu0 0
        %1957 = vmatpush1.bf16.xpose.msra.mxu0 %v1954
        %1958 = vmatprep.subr.bf16.mxu0 0
        %1959 = vmatpush1.bf16.xpose.msra.mxu0 0
        %1960 = vmatprep.subr.bf16.mxu0 0
        %1961 = vmatpush1.bf16.xpose.msra.mxu0 0
        %1962 = vmatprep.subr.bf16.mxu0 0
        %1963 = vmatpush1.bf16.xpose.msra.mxu0 0
        %1964 = vmatprep.subr.bf16.mxu0 0
        %1965 = vmatpush1.bf16.xpose.msra.mxu0 0
        %1966 = vmatprep.subr.bf16.mxu0 0
        %1967 = vmatpush1.bf16.xpose.msra.mxu0 0
        %1968 = vmatprep.subr.bf16.mxu0 0
        %1969 = vmatpush1.bf16.xpose.msra.mxu0 0
        %1970 = vmatprep.subr.bf16.mxu0 0
        %1971 = vmatpush1.bf16.xpose.msra.mxu0 0
        %1972 = vmatprep.subr.bf16.mxu0 0
        %1973 = vmatpush1.bf16.xpose.msra.mxu0 0
        %1974 = vmatprep.subr.bf16.mxu0 0
        %1975 = vmatpush1.bf16.xpose.msra.mxu0 0
        %1976 = vmatprep.subr.bf16.mxu0 0
        %1977 = vmatpush1.bf16.xpose.msra.mxu0 0
        %1978 = vmatprep.subr.bf16.mxu0 0
        %1979 = vmatpush1.bf16.xpose.msra.mxu0 0
        %1980 = vmatprep.subr.bf16.mxu0 0
        %1981 = vmatpush1.bf16.xpose.msra.mxu0 0
        %1982 = vmatprep.subr.bf16.mxu0 0
        %1983 = vmatpush1.bf16.xpose.msra.mxu0 0
        %1984 = vmatprep.subr.bf16.mxu0 0
        %1985 = vmatpush1.bf16.xpose.msra.mxu0 0
        %1986 = vmatprep.subr.bf16.mxu0 0
        %1987 = vmatpush1.bf16.xpose.msra.mxu0 0
        %1988 = vmatprep.mubr.bf16.mxu0 0
        %1989 = vmatmul.mubr.bf16.gmra.mrb[0].mxu0 %v1951
        %v1990 = vpop.f32.mrb[0].mxu0
        %v1991 = vadd.f32 0.0, %v1990
        %v1992 = vpop.f32.mrb[0].mxu0
        %v1993 = vpop.f32.mrb[0].mxu0
        %v1994 = vpop.f32.mrb[0].mxu0
        %1995 = vdwg.mxu0
        %1997 = vrot.lane.b32.xlu0 %v1895, 96
        %v1998 = vpop.permute.xlu0 %1997
        %v2000 = vsel %vm1900, %v1891, 0
        %v2003 = vsel %vm1900, %v1998, 0
        %2005 = vmatprep.subr.bf16.mxu0 0
        %2006 = vmatpush1.bf16.xpose.msra.mxu0 %v2003
        %2007 = vmatprep.subr.bf16.mxu0 0
        %2008 = vmatpush1.bf16.xpose.msra.mxu0 0
        %2009 = vmatprep.subr.bf16.mxu0 0
        %2010 = vmatpush1.bf16.xpose.msra.mxu0 0
        %2011 = vmatprep.subr.bf16.mxu0 0
        %2012 = vmatpush1.bf16.xpose.msra.mxu0 0
        %2013 = vmatprep.subr.bf16.mxu0 0
        %2014 = vmatpush1.bf16.xpose.msra.mxu0 0
        %2015 = vmatprep.subr.bf16.mxu0 0
        %2016 = vmatpush1.bf16.xpose.msra.mxu0 0
        %2017 = vmatprep.subr.bf16.mxu0 0
        %2018 = vmatpush1.bf16.xpose.msra.mxu0 0
        %2019 = vmatprep.subr.bf16.mxu0 0
        %2020 = vmatpush1.bf16.xpose.msra.mxu0 0
        %2021 = vmatprep.subr.bf16.mxu0 0
        %2022 = vmatpush1.bf16.xpose.msra.mxu0 0
        %2023 = vmatprep.subr.bf16.mxu0 0
        %2024 = vmatpush1.bf16.xpose.msra.mxu0 0
        %2025 = vmatprep.subr.bf16.mxu0 0
        %2026 = vmatpush1.bf16.xpose.msra.mxu0 0
        %2027 = vmatprep.subr.bf16.mxu0 0
        %2028 = vmatpush1.bf16.xpose.msra.mxu0 0
        %2029 = vmatprep.subr.bf16.mxu0 0
        %2030 = vmatpush1.bf16.xpose.msra.mxu0 0
        %2031 = vmatprep.subr.bf16.mxu0 0
        %2032 = vmatpush1.bf16.xpose.msra.mxu0 0
        %2033 = vmatprep.subr.bf16.mxu0 0
        %2034 = vmatpush1.bf16.xpose.msra.mxu0 0
        %2035 = vmatprep.subr.bf16.mxu0 0
        %2036 = vmatpush1.bf16.xpose.msra.mxu0 0
        %2037 = vmatprep.mubr.bf16.mxu0 0
        %2038 = vmatmul.mubr.bf16.gmra.mrb[0].mxu0 %v2000
        %v2039 = vpop.f32.mrb[0].mxu0
        %v2040 = vadd.f32 0.0, %v2039
        %v2041 = vpop.f32.mrb[0].mxu0
        %v2042 = vpop.f32.mrb[0].mxu0
        %v2043 = vpop.f32.mrb[0].mxu0
        %2044 = vdwg.mxu0
        %2046 = vrot.lane.b32.xlu0 %v1896, 96
        %v2047 = vpop.permute.xlu0 %2046
        %v2049 = vsel %vm1900, %v1892, 0
        %v2052 = vsel %vm1900, %v2047, 0
        %2054 = vmatprep.subr.bf16.mxu0 0
        %2055 = vmatpush1.bf16.xpose.msra.mxu0 %v2052
        %2056 = vmatprep.subr.bf16.mxu0 0
        %2057 = vmatpush1.bf16.xpose.msra.mxu0 0
        %2058 = vmatprep.subr.bf16.mxu0 0
        %2059 = vmatpush1.bf16.xpose.msra.mxu0 0
        %2060 = vmatprep.subr.bf16.mxu0 0
        %2061 = vmatpush1.bf16.xpose.msra.mxu0 0
        %2062 = vmatprep.subr.bf16.mxu0 0
        %2063 = vmatpush1.bf16.xpose.msra.mxu0 0
        %2064 = vmatprep.subr.bf16.mxu0 0
        %2065 = vmatpush1.bf16.xpose.msra.mxu0 0
        %2066 = vmatprep.subr.bf16.mxu0 0
        %2067 = vmatpush1.bf16.xpose.msra.mxu0 0
        %2068 = vmatprep.subr.bf16.mxu0 0
        %2069 = vmatpush1.bf16.xpose.msra.mxu0 0
        %2070 = vmatprep.subr.bf16.mxu0 0
        %2071 = vmatpush1.bf16.xpose.msra.mxu0 0
        %2072 = vmatprep.subr.bf16.mxu0 0
        %2073 = vmatpush1.bf16.xpose.msra.mxu0 0
        %2074 = vmatprep.subr.bf16.mxu0 0
        %2075 = vmatpush1.bf16.xpose.msra.mxu0 0
        %2076 = vmatprep.subr.bf16.mxu0 0
        %2077 = vmatpush1.bf16.xpose.msra.mxu0 0
        %2078 = vmatprep.subr.bf16.mxu0 0
        %2079 = vmatpush1.bf16.xpose.msra.mxu0 0
        %2080 = vmatprep.subr.bf16.mxu0 0
        %2081 = vmatpush1.bf16.xpose.msra.mxu0 0
        %2082 = vmatprep.subr.bf16.mxu0 0
        %2083 = vmatpush1.bf16.xpose.msra.mxu0 0
        %2084 = vmatprep.subr.bf16.mxu0 0
        %2085 = vmatpush1.bf16.xpose.msra.mxu0 0
        %2086 = vmatprep.mubr.bf16.mxu0 0
        %2087 = vmatmul.mubr.bf16.gmra.mrb[0].mxu0 %v2049
        %v2088 = vpop.f32.mrb[0].mxu0
        %v2089 = vadd.f32 0.0, %v2088
        %v2090 = vpop.f32.mrb[0].mxu0
        %v2091 = vpop.f32.mrb[0].mxu0
        %v2092 = vpop.f32.mrb[0].mxu0
        %2093 = vdwg.mxu0
        %v2094 = vsel %vm1900, %v1942, -inf
        %2095 = vmax.xlane.f32.xlu0 %v2094
        %v2096 = vpop.xlane.xlu0 %2095
        %v2097 = vsel %vm1900, %v1991, -inf
        %2098 = vmax.xlane.f32.xlu0 %v2097
        %v2099 = vpop.xlane.xlu0 %2098
        %v2100 = vsel %vm1900, %v2040, -inf
        %2101 = vmax.xlane.f32.xlu0 %v2100
        %v2102 = vpop.xlane.xlu0 %2101
        %v2103 = vsel %vm1900, %v2089, -inf
        %2104 = vmax.xlane.f32.xlu0 %v2103
        %v2105 = vpop.xlane.xlu0 %2104
        %v2106 = vsub.f32 %v1942, %v2096
        %v2107 = vsub.f32 %v1991, %v2099
        %v2108 = vsub.f32 %v2040, %v2102
        %v2109 = vsub.f32 %v2089, %v2105
        %v2110 = vmul.f32 %v2106, 1.442695
        %v2111 = vpow.pop %v2110
        %v2112 = vmul.f32 %v2107, 1.442695
        %v2113 = vpow.pop %v2112
        %v2114 = vmul.f32 %v2108, 1.442695
        %v2115 = vpow.pop %v2114
        %v2116 = vmul.f32 %v2109, 1.442695
        %v2117 = vpow.pop %v2116
        %v2118 = vsel %vm1900, %v2111, 0.0
        %2119 = vadd.xlane.f32.xlu0 %v2118
        %v2120 = vpop.xlane.xlu0 %2119
        %v2121 = vsel %vm1900, %v2113, 0.0
        %2122 = vadd.xlane.f32.xlu0 %v2121
        %v2123 = vpop.xlane.xlu0 %2122
        %v2124 = vsel %vm1900, %v2115, 0.0
        %2125 = vadd.xlane.f32.xlu0 %v2124
        %v2126 = vpop.xlane.xlu0 %2125
        %v2127 = vsel %vm1900, %v2117, 0.0
        %2128 = vadd.xlane.f32.xlu0 %v2127
        %v2129 = vpop.xlane.xlu0 %2128
        %v2130 = vrcp.pop %v2120
        %v2131 = vrcp.pop %v2123
        %v2132 = vrcp.pop %v2126
        %v2133 = vrcp.pop %v2129
        %v2134 = vmul.f32 %v2111, %v2130
        %v2135 = vmul.f32 %v2113, %v2131
        %v2136 = vmul.f32 %v2115, %v2132
        %v2137 = vmul.f32 %v2117, %v2133
        %v2138 = vpack.c.bf16 %v2134, %v2134
        %v2139 = vpack.c.bf16 %v2135, %v2135
        %v2140 = vpack.c.bf16 %v2136, %v2136
        %v2141 = vpack.c.bf16 %v2137, %v2137
        %2142 = vrot.lane.b32.xlu0 %v1893, 64
        %v2143 = vpop.permute.xlu0 %2142
        %v2145 = vsel %vm1900, %v2138, 0
        %vm2147 = vcmask 1043456
        %v2149 = vsel %vm2147, %v2143, 0
        %2151 = vmatprep.subr.bf16.mxu0 0
        %2152 = vmatpush1.bf16.msra.mxu0 %v2149
        %2153 = vmatprep.subr.bf16.mxu0 0
        %2154 = vmatpush1.bf16.msra.mxu0 0
        %2155 = vmatprep.subr.bf16.mxu0 0
        %2156 = vmatpush1.bf16.msra.mxu0 0
        %2157 = vmatprep.subr.bf16.mxu0 0
        %2158 = vmatpush1.bf16.msra.mxu0 0
        %2159 = vmatprep.subr.bf16.mxu0 0
        %2160 = vmatpush1.bf16.msra.mxu0 0
        %2161 = vmatprep.subr.bf16.mxu0 0
        %2162 = vmatpush1.bf16.msra.mxu0 0
        %2163 = vmatprep.subr.bf16.mxu0 0
        %2164 = vmatpush1.bf16.msra.mxu0 0
        %2165 = vmatprep.subr.bf16.mxu0 0
        %2166 = vmatpush1.bf16.msra.mxu0 0
        %2167 = vmatprep.subr.bf16.mxu0 0
        %2168 = vmatpush1.bf16.msra.mxu0 0
        %2169 = vmatprep.subr.bf16.mxu0 0
        %2170 = vmatpush1.bf16.msra.mxu0 0
        %2171 = vmatprep.subr.bf16.mxu0 0
        %2172 = vmatpush1.bf16.msra.mxu0 0
        %2173 = vmatprep.subr.bf16.mxu0 0
        %2174 = vmatpush1.bf16.msra.mxu0 0
        %2175 = vmatprep.subr.bf16.mxu0 0
        %2176 = vmatpush1.bf16.msra.mxu0 0
        %2177 = vmatprep.subr.bf16.mxu0 0
        %2178 = vmatpush1.bf16.msra.mxu0 0
        %2179 = vmatprep.subr.bf16.mxu0 0
        %2180 = vmatpush1.bf16.msra.mxu0 0
        %2181 = vmatprep.subr.bf16.mxu0 0
        %2182 = vmatpush1.bf16.msra.mxu0 0
        %2183 = vmatprep.mubr.bf16.mxu0 0
        %2184 = vmatmul.mubr.bf16.gmra.mrb[0].mxu0 %v2145
        %v2185 = vpop.f32.mrb[0].mxu0
        %v2186 = vadd.f32 0.0, %v2185
        %v2187 = vpop.f32.mrb[0].mxu0
        %v2188 = vpop.f32.mrb[0].mxu0
        %v2189 = vpop.f32.mrb[0].mxu0
        %2190 = vdwg.mxu0
        %2191 = vrot.lane.b32.xlu0 %v1894, 64
        %v2192 = vpop.permute.xlu0 %2191
        %v2194 = vsel %vm1900, %v2139, 0
        %v2197 = vsel %vm2147, %v2192, 0
        %2199 = vmatprep.subr.bf16.mxu0 0
        %2200 = vmatpush1.bf16.msra.mxu0 %v2197
        %2201 = vmatprep.subr.bf16.mxu0 0
        %2202 = vmatpush1.bf16.msra.mxu0 0
        %2203 = vmatprep.subr.bf16.mxu0 0
        %2204 = vmatpush1.bf16.msra.mxu0 0
        %2205 = vmatprep.subr.bf16.mxu0 0
        %2206 = vmatpush1.bf16.msra.mxu0 0
        %2207 = vmatprep.subr.bf16.mxu0 0
        %2208 = vmatpush1.bf16.msra.mxu0 0
        %2209 = vmatprep.subr.bf16.mxu0 0
        %2210 = vmatpush1.bf16.msra.mxu0 0
        %2211 = vmatprep.subr.bf16.mxu0 0
        %2212 = vmatpush1.bf16.msra.mxu0 0
        %2213 = vmatprep.subr.bf16.mxu0 0
        %2214 = vmatpush1.bf16.msra.mxu0 0
        %2215 = vmatprep.subr.bf16.mxu0 0
        %2216 = vmatpush1.bf16.msra.mxu0 0
        %2217 = vmatprep.subr.bf16.mxu0 0
        %2218 = vmatpush1.bf16.msra.mxu0 0
        %2219 = vmatprep.subr.bf16.mxu0 0
        %2220 = vmatpush1.bf16.msra.mxu0 0
        %2221 = vmatprep.subr.bf16.mxu0 0
        %2222 = vmatpush1.bf16.msra.mxu0 0
        %2223 = vmatprep.subr.bf16.mxu0 0
        %2224 = vmatpush1.bf16.msra.mxu0 0
        %2225 = vmatprep.subr.bf16.mxu0 0
        %2226 = vmatpush1.bf16.msra.mxu0 0
        %2227 = vmatprep.subr.bf16.mxu0 0
        %2228 = vmatpush1.bf16.msra.mxu0 0
        %2229 = vmatprep.subr.bf16.mxu0 0
        %2230 = vmatpush1.bf16.msra.mxu0 0
        %2231 = vmatprep.mubr.bf16.mxu0 0
        %2232 = vmatmul.mubr.bf16.gmra.mrb[0].mxu0 %v2194
        %v2233 = vpop.f32.mrb[0].mxu0
        %v2234 = vadd.f32 0.0, %v2233
        %v2235 = vpop.f32.mrb[0].mxu0
        %v2236 = vpop.f32.mrb[0].mxu0
        %v2237 = vpop.f32.mrb[0].mxu0
        %2238 = vdwg.mxu0
        %2239 = vrot.lane.b32.xlu0 %v1895, 64
        %v2240 = vpop.permute.xlu0 %2239
        %v2242 = vsel %vm1900, %v2140, 0
        %v2245 = vsel %vm2147, %v2240, 0
        %2247 = vmatprep.subr.bf16.mxu0 0
        %2248 = vmatpush1.bf16.msra.mxu0 %v2245
        %2249 = vmatprep.subr.bf16.mxu0 0
        %2250 = vmatpush1.bf16.msra.mxu0 0
        %2251 = vmatprep.subr.bf16.mxu0 0
        %2252 = vmatpush1.bf16.msra.mxu0 0
        %2253 = vmatprep.subr.bf16.mxu0 0
        %2254 = vmatpush1.bf16.msra.mxu0 0
        %2255 = vmatprep.subr.bf16.mxu0 0
        %2256 = vmatpush1.bf16.msra.mxu0 0
        %2257 = vmatprep.subr.bf16.mxu0 0
        %2258 = vmatpush1.bf16.msra.mxu0 0
        %2259 = vmatprep.subr.bf16.mxu0 0
        %2260 = vmatpush1.bf16.msra.mxu0 0
        %2261 = vmatprep.subr.bf16.mxu0 0
        %2262 = vmatpush1.bf16.msra.mxu0 0
        %2263 = vmatprep.subr.bf16.mxu0 0
        %2264 = vmatpush1.bf16.msra.mxu0 0
        %2265 = vmatprep.subr.bf16.mxu0 0
        %2266 = vmatpush1.bf16.msra.mxu0 0
        %2267 = vmatprep.subr.bf16.mxu0 0
        %2268 = vmatpush1.bf16.msra.mxu0 0
        %2269 = vmatprep.subr.bf16.mxu0 0
        %2270 = vmatpush1.bf16.msra.mxu0 0
        %2271 = vmatprep.subr.bf16.mxu0 0
        %2272 = vmatpush1.bf16.msra.mxu0 0
        %2273 = vmatprep.subr.bf16.mxu0 0
        %2274 = vmatpush1.bf16.msra.mxu0 0
        %2275 = vmatprep.subr.bf16.mxu0 0
        %2276 = vmatpush1.bf16.msra.mxu0 0
        %2277 = vmatprep.subr.bf16.mxu0 0
        %2278 = vmatpush1.bf16.msra.mxu0 0
        %2279 = vmatprep.mubr.bf16.mxu0 0
        %2280 = vmatmul.mubr.bf16.gmra.mrb[0].mxu0 %v2242
        %v2281 = vpop.f32.mrb[0].mxu0
        %v2282 = vadd.f32 0.0, %v2281
        %v2283 = vpop.f32.mrb[0].mxu0
        %v2284 = vpop.f32.mrb[0].mxu0
        %v2285 = vpop.f32.mrb[0].mxu0
        %2286 = vdwg.mxu0
        %2287 = vrot.lane.b32.xlu0 %v1896, 64
        %v2288 = vpop.permute.xlu0 %2287
        %v2290 = vsel %vm1900, %v2141, 0
        %v2293 = vsel %vm2147, %v2288, 0
        %2295 = vmatprep.subr.bf16.mxu0 0
        %2296 = vmatpush1.bf16.msra.mxu0 %v2293
        %2297 = vmatprep.subr.bf16.mxu0 0
        %2298 = vmatpush1.bf16.msra.mxu0 0
        %2299 = vmatprep.subr.bf16.mxu0 0
        %2300 = vmatpush1.bf16.msra.mxu0 0
        %2301 = vmatprep.subr.bf16.mxu0 0
        %2302 = vmatpush1.bf16.msra.mxu0 0
        %2303 = vmatprep.subr.bf16.mxu0 0
        %2304 = vmatpush1.bf16.msra.mxu0 0
        %2305 = vmatprep.subr.bf16.mxu0 0
        %2306 = vmatpush1.bf16.msra.mxu0 0
        %2307 = vmatprep.subr.bf16.mxu0 0
        %2308 = vmatpush1.bf16.msra.mxu0 0
        %2309 = vmatprep.subr.bf16.mxu0 0
        %2310 = vmatpush1.bf16.msra.mxu0 0
        %2311 = vmatprep.subr.bf16.mxu0 0
        %2312 = vmatpush1.bf16.msra.mxu0 0
        %2313 = vmatprep.subr.bf16.mxu0 0
        %2314 = vmatpush1.bf16.msra.mxu0 0
        %2315 = vmatprep.subr.bf16.mxu0 0
        %2316 = vmatpush1.bf16.msra.mxu0 0
        %2317 = vmatprep.subr.bf16.mxu0 0
        %2318 = vmatpush1.bf16.msra.mxu0 0
        %2319 = vmatprep.subr.bf16.mxu0 0
        %2320 = vmatpush1.bf16.msra.mxu0 0
        %2321 = vmatprep.subr.bf16.mxu0 0
        %2322 = vmatpush1.bf16.msra.mxu0 0
        %2323 = vmatprep.subr.bf16.mxu0 0
        %2324 = vmatpush1.bf16.msra.mxu0 0
        %2325 = vmatprep.subr.bf16.mxu0 0
        %2326 = vmatpush1.bf16.msra.mxu0 0
        %2327 = vmatprep.mubr.bf16.mxu0 0
        %2328 = vmatmul.mubr.bf16.gmra.mrb[0].mxu0 %v2290
        %v2329 = vpop.f32.mrb[0].mxu0
        %v2330 = vadd.f32 0.0, %v2329
        %v2331 = vpop.f32.mrb[0].mxu0
        %v2332 = vpop.f32.mrb[0].mxu0
        %v2333 = vpop.f32.mrb[0].mxu0
        %2334 = vdwg.mxu0
        %2336 = vrot.lane.b32.xlu0 %v2234, 8
        %v2337 = vpop.permute.xlu0 %2336
        %2340 = vrot.lane.b32.xlu0 %v2282, 16
        %v2341 = vpop.permute.xlu0 %2340
        %2344 = vrot.lane.b32.xlu0 %v2330, 24
        %v2345 = vpop.permute.xlu0 %2344
        %v2347 = vsel %vm1900, %v2186, %v2337
        %vm2348 = vcmask 130048
        %v2349 = vsel %vm2348, %v2347, %v2341
        %vm2350 = vcmask 195584
        %v2351 = vsel %vm2350, %v2349, %v2345
        %v2352 = vpack.c.bf16 %v2351, %v2351
        %v2354 = vlaneseq
        %v2355 = vshrl.u32 %v2354, 7
        %v2356 = vsub.s32 0, %v2355
        %v2357 = vrot.slane %v1804, %v2356
        %v2363 = vunpack.c.l.b16 %v1800
        %v2364 = vunpack.c.l.b16 %v1801
        %v2365 = vunpack.c.l.b16 %v1802
        %v2366 = vunpack.c.l.b16 %v1803
        %v2367 = vpack.c.b16 %v2364, %v2363
        %v2368 = vpack.c.b16 %v2366, %v2365
        %v2372 = vsel %vm1824, %v2352, 0
        %2374 = vmatprep.subr.bf16.mxu0 0
        %2375 = vmatpush1.bf16.msra.mxu0 %v2367
        %2376 = vmatprep.subr.bf16.mxu0 0
        %2377 = vmatpush1.bf16.msra.mxu0 %v2368
        %2378 = vmatprep.subr.bf16.mxu0 0
        %2379 = vmatpush1.bf16.msra.mxu0 0
        %2380 = vmatprep.subr.bf16.mxu0 0
        %2381 = vmatpush1.bf16.msra.mxu0 0
        %2382 = vmatprep.subr.bf16.mxu0 0
        %2383 = vmatpush1.bf16.msra.mxu0 0
        %2384 = vmatprep.subr.bf16.mxu0 0
        %2385 = vmatpush1.bf16.msra.mxu0 0
        %2386 = vmatprep.subr.bf16.mxu0 0
        %2387 = vmatpush1.bf16.msra.mxu0 0
        %2388 = vmatprep.subr.bf16.mxu0 0
        %2389 = vmatpush1.bf16.msra.mxu0 0
        %2390 = vmatprep.subr.bf16.mxu0 0
        %2391 = vmatpush1.bf16.msra.mxu0 0
        %2392 = vmatprep.subr.bf16.mxu0 0
        %2393 = vmatpush1.bf16.msra.mxu0 0
        %2394 = vmatprep.subr.bf16.mxu0 0
        %2395 = vmatpush1.bf16.msra.mxu0 0
        %2396 = vmatprep.subr.bf16.mxu0 0
        %2397 = vmatpush1.bf16.msra.mxu0 0
        %2398 = vmatprep.subr.bf16.mxu0 0
        %2399 = vmatpush1.bf16.msra.mxu0 0
        %2400 = vmatprep.subr.bf16.mxu0 0
        %2401 = vmatpush1.bf16.msra.mxu0 0
        %2402 = vmatprep.subr.bf16.mxu0 0
        %2403 = vmatpush1.bf16.msra.mxu0 0
        %2404 = vmatprep.subr.bf16.mxu0 0
        %2405 = vmatpush1.bf16.msra.mxu0 0
        %2406 = vmatprep.mubr.bf16.mxu0 0
        %2407 = vmatmul.mubr.bf16.gmra.mrb[0].mxu0 %v2372
        %v2408 = vpop.f32.mrb[0].mxu0
        %v2409 = vadd.f32 %v2357, %v2408
        %v2410 = vpop.f32.mrb[0].mxu0
        %v2411 = vpop.f32.mrb[0].mxu0
        %v2412 = vpop.f32.mrb[0].mxu0
        %2413 = vdwg.mxu0
        %v2414 = vld [vmem:[%s1730] sm:$0x1]
        %v2415 = vld [vmem:[%s1733] sm:$0x1]
        %v2416 = vadd.f32 %v2409, %v1794
        %v2417 = vsel %vm1824, %v2416, 0.0
        %2418 = vadd.xlane.f32.xlu0 %v2417
        %v2419 = vpop.xlane.xlu0 %2418
        %v2420 = vrcp.pop 32.0
        %v2421 = vmul.f32 %v2419, %v2420
        %v2422 = vsub.f32 %v2416, %v2421
        %v2423 = vmul.f32 %v2422, %v2422
        %v2424 = vsel %vm1824, %v2423, 0.0
        %2425 = vadd.xlane.f32.xlu0 %v2424
        %v2426 = vpop.xlane.xlu0 %2425
        %v2427 = vmul.f32 %v2426, %v2420
        %v2428 = vadd.f32 %v2427, 1e-12
        %v2429 = vrsqrt.pop %v2428
        %v2430 = vmul.f32 %v2422, %v2429
        %v2432 = vlaneseq
        %v2433 = vshrl.u32 %v2432, 7
        %v2434 = vsub.s32 0, %v2433
        %v2435 = vrot.slane %v2414, %v2434
        %v2437 = vmul.f32 %v2430, %v2435
        %v2439 = vlaneseq
        %v2440 = vshrl.u32 %v2439, 7
        %v2441 = vsub.s32 0, %v2440
        %v2442 = vrot.slane %v2415, %v2441
        %v2444 = vadd.f32 %v2437, %v2442
        %v2445 = vld [vmem:[%s1469] sm:$0xf]
        %v2446 = vld [vmem:[%s1469 + $0x4] sm:$0xf]
        %v2447 = vld [vmem:[%s1469 + $0x8] sm:$0xf]
        %v2448 = vld [vmem:[%s1469 + $0xc] sm:$0xf]
        %v2449 = vld [vmem:[%s1736] sm:$0x1]
        %v2450 = vld [vmem:[%s1741] sm:$0xf]
        %v2451 = vld [vmem:[%s1741 + $0x4] sm:$0xf]
        %v2452 = vld [vmem:[%s1741 + $0x8] sm:$0xf]
        %v2453 = vld [vmem:[%s1741 + $0xc] sm:$0xf]
        %v2454 = vld [vmem:[%s1741 + $0x10] sm:$0xf]
        %v2455 = vld [vmem:[%s1741 + $0x14] sm:$0xf]
        %v2456 = vld [vmem:[%s1741 + $0x18] sm:$0xf]
        %v2457 = vld [vmem:[%s1741 + $0x1c] sm:$0xf]
        %v2458 = vld [vmem:[%s1744] sm:$0x1]
        %v2459 = vpack.c.bf16 %v2444, %v2444
        %v2461 = vlaneseq
        %v2462 = vshrl.u32 %v2461, 7
        %v2463 = vsub.s32 0, %v2462
        %v2464 = vrot.slane %v2449, %v2463
        %v2470 = vunpack.c.l.b16 %v2445
        %v2471 = vunpack.c.l.b16 %v2446
        %v2472 = vunpack.c.l.b16 %v2447
        %v2473 = vunpack.c.l.b16 %v2448
        %v2474 = vpack.c.b16 %v2471, %v2470
        %v2475 = vpack.c.b16 %v2473, %v2472
        %v2479 = vsel %vm1824, %v2459, 0
        %2481 = vmatprep.subr.bf16.mxu0 0
        %2482 = vmatpush1.bf16.msra.mxu0 %v2474
        %2483 = vmatprep.subr.bf16.mxu0 0
        %2484 = vmatpush1.bf16.msra.mxu0 %v2475
        %2485 = vmatprep.subr.bf16.mxu0 0
        %2486 = vmatpush1.bf16.msra.mxu0 0
        %2487 = vmatprep.subr.bf16.mxu0 0
        %2488 = vmatpush1.bf16.msra.mxu0 0
        %2489 = vmatprep.subr.bf16.mxu0 0
        %2490 = vmatpush1.bf16.msra.mxu0 0
        %2491 = vmatprep.subr.bf16.mxu0 0
        %2492 = vmatpush1.bf16.msra.mxu0 0
        %2493 = vmatprep.subr.bf16.mxu0 0
        %2494 = vmatpush1.bf16.msra.mxu0 0
        %2495 = vmatprep.subr.bf16.mxu0 0
        %2496 = vmatpush1.bf16.msra.mxu0 0
        %2497 = vmatprep.subr.bf16.mxu0 0
        %2498 = vmatpush1.bf16.msra.mxu0 0
        %2499 = vmatprep.subr.bf16.mxu0 0
        %2500 = vmatpush1.bf16.msra.mxu0 0
        %2501 = vmatprep.subr.bf16.mxu0 0
        %2502 = vmatpush1.bf16.msra.mxu0 0
        %2503 = vmatprep.subr.bf16.mxu0 0
        %2504 = vmatpush1.bf16.msra.mxu0 0
        %2505 = vmatprep.subr.bf16.mxu0 0
        %2506 = vmatpush1.bf16.msra.mxu0 0
        %2507 = vmatprep.subr.bf16.mxu0 0
        %2508 = vmatpush1.bf16.msra.mxu0 0
        %2509 = vmatprep.subr.bf16.mxu0 0
        %2510 = vmatpush1.bf16.msra.mxu0 0
        %2511 = vmatprep.subr.bf16.mxu0 0
        %2512 = vmatpush1.bf16.msra.mxu0 0
        %2513 = vmatprep.mubr.bf16.mxu0 0
        %2514 = vmatmul.mubr.bf16.gmra.mrb[0].mxu0 %v2479
        %v2515 = vpop.f32.mrb[0].mxu0
        %v2516 = vadd.f32 %v2464, %v2515
        %v2517 = vpop.f32.mrb[0].mxu0
        %v2518 = vpop.f32.mrb[0].mxu0
        %v2519 = vpop.f32.mrb[0].mxu0
        %2520 = vdwg.mxu0
        %v2521 = vmul.f32 %v2516, 0.5
        %v2522 = vmul.f32 %v2516, 0.044715
        %v2523 = vmul.f32 %v2522, %v2516
        %v2524 = vmul.f32 %v2523, %v2516
        %v2525 = vadd.f32 %v2516, %v2524
        %v2526 = vmul.f32 %v2525, 0.7978846
        %v2527 = vtanh.pop %v2526
        %v2528 = vadd.f32 %v2527, 1.0
        %v2529 = vmul.f32 %v2521, %v2528
        %v2530 = vpack.c.bf16 %v2529, %v2529
        %v2532 = vlaneseq
        %v2533 = vshrl.u32 %v2532, 7
        %v2534 = vsub.s32 0, %v2533
        %v2535 = vrot.slane %v2458, %v2534
        %v2545 = vunpack.c.l.b16 %v2450
        %v2546 = vunpack.c.l.b16 %v2451
        %v2547 = vunpack.c.l.b16 %v2452
        %v2548 = vunpack.c.l.b16 %v2453
        %v2549 = vunpack.c.l.b16 %v2454
        %v2550 = vunpack.c.l.b16 %v2455
        %v2551 = vunpack.c.l.b16 %v2456
        %v2552 = vunpack.c.l.b16 %v2457
        %v2553 = vpack.c.b16 %v2546, %v2545
        %v2554 = vpack.c.b16 %v2548, %v2547
        %v2555 = vpack.c.b16 %v2550, %v2549
        %v2556 = vpack.c.b16 %v2552, %v2551
        %vm2561 = vcmask 523264
        %v2563 = vsel %vm2561, %v2530, 0
        %2565 = vmatprep.subr.bf16.mxu0 0
        %2566 = vmatpush1.bf16.msra.mxu0 %v2553
        %2567 = vmatprep.subr.bf16.mxu0 0
        %2568 = vmatpush1.bf16.msra.mxu0 %v2554
        %2569 = vmatprep.subr.bf16.mxu0 0
        %2570 = vmatpush1.bf16.msra.mxu0 %v2555
        %2571 = vmatprep.subr.bf16.mxu0 0
        %2572 = vmatpush1.bf16.msra.mxu0 %v2556
        %2573 = vmatprep.subr.bf16.mxu0 0
        %2574 = vmatpush1.bf16.msra.mxu0 0
        %2575 = vmatprep.subr.bf16.mxu0 0
        %2576 = vmatpush1.bf16.msra.mxu0 0
        %2577 = vmatprep.subr.bf16.mxu0 0
        %2578 = vmatpush1.bf16.msra.mxu0 0
        %2579 = vmatprep.subr.bf16.mxu0 0
        %2580 = vmatpush1.bf16.msra.mxu0 0
        %2581 = vmatprep.subr.bf16.mxu0 0
        %2582 = vmatpush1.bf16.msra.mxu0 0
        %2583 = vmatprep.subr.bf16.mxu0 0
        %2584 = vmatpush1.bf16.msra.mxu0 0
        %2585 = vmatprep.subr.bf16.mxu0 0
        %2586 = vmatpush1.bf16.msra.mxu0 0
        %2587 = vmatprep.subr.bf16.mxu0 0
        %2588 = vmatpush1.bf16.msra.mxu0 0
        %2589 = vmatprep.subr.bf16.mxu0 0
        %2590 = vmatpush1.bf16.msra.mxu0 0
        %2591 = vmatprep.subr.bf16.mxu0 0
        %2592 = vmatpush1.bf16.msra.mxu0 0
        %2593 = vmatprep.subr.bf16.mxu0 0
        %2594 = vmatpush1.bf16.msra.mxu0 0
        %2595 = vmatprep.subr.bf16.mxu0 0
        %2596 = vmatpush1.bf16.msra.mxu0 0
        %2597 = vmatprep.mubr.bf16.mxu0 0
        %2598 = vmatmul.mubr.bf16.gmra.mrb[0].mxu0 %v2563
        %v2599 = vpop.f32.mrb[0].mxu0
        %v2600 = vadd.f32 %v2535, %v2599
        %v2601 = vpop.f32.mrb[0].mxu0
        %v2602 = vpop.f32.mrb[0].mxu0
        %v2603 = vpop.f32.mrb[0].mxu0
        %2604 = vdwg.mxu0
        %v2605 = vld [vmem:[%s1747] sm:$0x1]
        %v2606 = vld [vmem:[%s1750] sm:$0x1]
        %v2607 = vadd.f32 %v2600, %v2444
        %v2608 = vsel %vm1824, %v2607, 0.0
        %2609 = vadd.xlane.f32.xlu0 %v2608
        %v2610 = vpop.xlane.xlu0 %2609
        %v2611 = vmul.f32 %v2610, %v2420
        %v2612 = vsub.f32 %v2607, %v2611
        %v2613 = vmul.f32 %v2612, %v2612
        %v2614 = vsel %vm1824, %v2613, 0.0
        %2615 = vadd.xlane.f32.xlu0 %v2614
        %v2616 = vpop.xlane.xlu0 %2615
        %v2617 = vmul.f32 %v2616, %v2420
        %v2618 = vadd.f32 %v2617, 1e-12
        %v2619 = vrsqrt.pop %v2618
        %v2620 = vmul.f32 %v2612, %v2619
        %v2622 = vlaneseq
        %v2623 = vshrl.u32 %v2622, 7
        %v2624 = vsub.s32 0, %v2623
        %v2625 = vrot.slane %v2605, %v2624
        %v2627 = vmul.f32 %v2620, %v2625
        %v2629 = vlaneseq
        %v2630 = vshrl.u32 %v2629, 7
        %v2631 = vsub.s32 0, %v2630
        %v2632 = vrot.slane %v2606, %v2631
        %v2634 = vadd.f32 %v2627, %v2632
        %2635 = vst.msk [vmem:[%s1704] sm:$0xff] %vm1824, %v2634
        %s2636 = sld [smem:[#allocation6 + %s115]]
        %v2637 = vld [vmem:[%s1755] sm:$0xf]
        %v2638 = vld [vmem:[%s1755 + $0x4] sm:$0xf]
        %v2639 = vld [vmem:[%s1755 + $0x8] sm:$0xf]
        %v2640 = vld [vmem:[%s1755 + $0xc] sm:$0xf]
        %v2641 = vpack.c.bf16 %v2634, %v2634
        %v2642 = vld [vmem:[%s1758] sm:$0x1]
        %v2644 = vlaneseq
        %v2645 = vshrl.u32 %v2644, 7
        %v2646 = vsub.s32 0, %v2645
        %v2647 = vrot.slane %v2642, %v2646
        %v2653 = vunpack.c.l.b16 %v2637
        %v2654 = vunpack.c.l.b16 %v2638
        %v2655 = vunpack.c.l.b16 %v2639
        %v2656 = vunpack.c.l.b16 %v2640
        %v2657 = vpack.c.b16 %v2654, %v2653
        %v2658 = vpack.c.b16 %v2656, %v2655
        %v2662 = vsel %vm1824, %v2641, 0
        %2664 = vmatprep.subr.bf16.mxu0 0
        %2665 = vmatpush1.bf16.msra.mxu0 %v2657
        %2666 = vmatprep.subr.bf16.mxu0 0
        %2667 = vmatpush1.bf16.msra.mxu0 %v2658
        %2668 = vmatprep.subr.bf16.mxu0 0
        %2669 = vmatpush1.bf16.msra.mxu0 0
        %2670 = vmatprep.subr.bf16.mxu0 0
        %2671 = vmatpush1.bf16.msra.mxu0 0
        %2672 = vmatprep.subr.bf16.mxu0 0
        %2673 = vmatpush1.bf16.msra.mxu0 0
        %2674 = vmatprep.subr.bf16.mxu0 0
        %2675 = vmatpush1.bf16.msra.mxu0 0
        %2676 = vmatprep.subr.bf16.mxu0 0
        %2677 = vmatpush1.bf16.msra.mxu0 0
        %2678 = vmatprep.subr.bf16.mxu0 0
        %2679 = vmatpush1.bf16.msra.mxu0 0
        %2680 = vmatprep.subr.bf16.mxu0 0
        %2681 = vmatpush1.bf16.msra.mxu0 0
        %2682 = vmatprep.subr.bf16.mxu0 0
        %2683 = vmatpush1.bf16.msra.mxu0 0
        %2684 = vmatprep.subr.bf16.mxu0 0
        %2685 = vmatpush1.bf16.msra.mxu0 0
        %2686 = vmatprep.subr.bf16.mxu0 0
        %2687 = vmatpush1.bf16.msra.mxu0 0
        %2688 = vmatprep.subr.bf16.mxu0 0
        %2689 = vmatpush1.bf16.msra.mxu0 0
        %2690 = vmatprep.subr.bf16.mxu0 0
        %2691 = vmatpush1.bf16.msra.mxu0 0
        %2692 = vmatprep.subr.bf16.mxu0 0
        %2693 = vmatpush1.bf16.msra.mxu0 0
        %2694 = vmatprep.subr.bf16.mxu0 0
        %2695 = vmatpush1.bf16.msra.mxu0 0
        %2696 = vmatprep.mubr.bf16.mxu0 0
        %2697 = vmatmul.mubr.bf16.gmra.mrb[0].mxu0 %v2662
        %v2698 = vpop.f32.mrb[0].mxu0
        %v2699 = vadd.f32 %v2647, %v2698
        %v2700 = vpop.f32.mrb[0].mxu0
        %v2701 = vpop.f32.mrb[0].mxu0
        %v2702 = vpop.f32.mrb[0].mxu0
        %2703 = vdwg.mxu0
        %v2704 = vld [vmem:[%s1711] sm:$0xff]
        %v2705 = vstv %s2636
        %v2706 = vmul.f32 %v2705, %v2704
        %s2707 = ssub.f32 1.0, %s2636
        %v2708 = vstv %s2707
        %v2709 = vmul.f32 %v2708, %v2699
        %v2710 = vadd.f32 %v2706, %v2709
        %v2711 = vld [vmem:[%s1478] sm:$0xf]
        %v2712 = vld [vmem:[%s1761] sm:$0x1]
        %v2713 = vld [vmem:[%s1487] sm:$0xf]
        %v2714 = vld [vmem:[%s1764] sm:$0x1]
        %v2715 = vpack.c.bf16 %v2710, %v2710
        %v2717 = vlaneseq
        %v2718 = vshrl.u32 %v2717, 7
        %v2719 = vsub.s32 0, %v2718
        %v2720 = vrot.slane %v2712, %v2719
        %v2723 = vsel %vm1900, %v2715, 0
        %v2726 = vsel %vm2147, %v2711, 0
        %2728 = vmatprep.subr.bf16.mxu0 0
        %2729 = vmatpush1.bf16.msra.mxu0 %v2726
        %2730 = vmatprep.subr.bf16.mxu0 0
        %2731 = vmatpush1.bf16.msra.mxu0 0
        %2732 = vmatprep.subr.bf16.mxu0 0
        %2733 = vmatpush1.bf16.msra.mxu0 0
        %2734 = vmatprep.subr.bf16.mxu0 0
        %2735 = vmatpush1.bf16.msra.mxu0 0
        %2736 = vmatprep.subr.bf16.mxu0 0
        %2737 = vmatpush1.bf16.msra.mxu0 0
        %2738 = vmatprep.subr.bf16.mxu0 0
        %2739 = vmatpush1.bf16.msra.mxu0 0
        %2740 = vmatprep.subr.bf16.mxu0 0
        %2741 = vmatpush1.bf16.msra.mxu0 0
        %2742 = vmatprep.subr.bf16.mxu0 0
        %2743 = vmatpush1.bf16.msra.mxu0 0
        %2744 = vmatprep.subr.bf16.mxu0 0
        %2745 = vmatpush1.bf16.msra.mxu0 0
        %2746 = vmatprep.subr.bf16.mxu0 0
        %2747 = vmatpush1.bf16.msra.mxu0 0
        %2748 = vmatprep.subr.bf16.mxu0 0
        %2749 = vmatpush1.bf16.msra.mxu0 0
        %2750 = vmatprep.subr.bf16.mxu0 0
        %2751 = vmatpush1.bf16.msra.mxu0 0
        %2752 = vmatprep.subr.bf16.mxu0 0
        %2753 = vmatpush1.bf16.msra.mxu0 0
        %2754 = vmatprep.subr.bf16.mxu0 0
        %2755 = vmatpush1.bf16.msra.mxu0 0
        %2756 = vmatprep.subr.bf16.mxu0 0
        %2757 = vmatpush1.bf16.msra.mxu0 0
        %2758 = vmatprep.subr.bf16.mxu0 0
        %2759 = vmatpush1.bf16.msra.mxu0 0
        %2760 = vmatprep.mubr.bf16.mxu0 0
        %2761 = vmatmul.mubr.bf16.gmra.mrb[0].mxu0 %v2723
        %v2762 = vpop.f32.mrb[0].mxu0
        %v2763 = vadd.f32 %v2720, %v2762
        %v2764 = vpop.f32.mrb[0].mxu0
        %v2765 = vpop.f32.mrb[0].mxu0
        %v2766 = vpop.f32.mrb[0].mxu0
        %2767 = vdwg.mxu0
        %v2768 = vmul.f32 %v2763, 0.35355338
        %v2769 = vpack.c.bf16 %v2768, %v2768
        %v2770 = vpack.c.bf16 %v2763, %v2763
        %2772 = vrot.lane.b32.xlu0 %v2770, 120
        %v2773 = vpop.permute.xlu0 %2772
        %v2775 = vsel %vm1900, %v2769, 0
        %v2778 = vsel %vm1900, %v2773, 0
        %2780 = vmatprep.subr.bf16.mxu0 0
        %2781 = vmatpush1.bf16.xpose.msra.mxu0 %v2778
        %2782 = vmatprep.subr.bf16.mxu0 0
        %2783 = vmatpush1.bf16.xpose.msra.mxu0 0
        %2784 = vmatprep.subr.bf16.mxu0 0
        %2785 = vmatpush1.bf16.xpose.msra.mxu0 0
        %2786 = vmatprep.subr.bf16.mxu0 0
        %2787 = vmatpush1.bf16.xpose.msra.mxu0 0
        %2788 = vmatprep.subr.bf16.mxu0 0
        %2789 = vmatpush1.bf16.xpose.msra.mxu0 0
        %2790 = vmatprep.subr.bf16.mxu0 0
        %2791 = vmatpush1.bf16.xpose.msra.mxu0 0
        %2792 = vmatprep.subr.bf16.mxu0 0
        %2793 = vmatpush1.bf16.xpose.msra.mxu0 0
        %2794 = vmatprep.subr.bf16.mxu0 0
        %2795 = vmatpush1.bf16.xpose.msra.mxu0 0
        %2796 = vmatprep.subr.bf16.mxu0 0
        %2797 = vmatpush1.bf16.xpose.msra.mxu0 0
        %2798 = vmatprep.subr.bf16.mxu0 0
        %2799 = vmatpush1.bf16.xpose.msra.mxu0 0
        %2800 = vmatprep.subr.bf16.mxu0 0
        %2801 = vmatpush1.bf16.xpose.msra.mxu0 0
        %2802 = vmatprep.subr.bf16.mxu0 0
        %2803 = vmatpush1.bf16.xpose.msra.mxu0 0
        %2804 = vmatprep.subr.bf16.mxu0 0
        %2805 = vmatpush1.bf16.xpose.msra.mxu0 0
        %2806 = vmatprep.subr.bf16.mxu0 0
        %2807 = vmatpush1.bf16.xpose.msra.mxu0 0
        %2808 = vmatprep.subr.bf16.mxu0 0
        %2809 = vmatpush1.bf16.xpose.msra.mxu0 0
        %2810 = vmatprep.subr.bf16.mxu0 0
        %2811 = vmatpush1.bf16.xpose.msra.mxu0 0
        %2812 = vmatprep.mubr.bf16.mxu0 0
        %2813 = vmatmul.mubr.bf16.gmra.mrb[0].mxu0 %v2775
        %v2814 = vpop.f32.mrb[0].mxu0
        %v2815 = vadd.f32 0.0, %v2814
        %v2816 = vpop.f32.mrb[0].mxu0
        %v2817 = vpop.f32.mrb[0].mxu0
        %v2818 = vpop.f32.mrb[0].mxu0
        %2819 = vdwg.mxu0
        %v2820 = vsel %vm1900, %v2815, -inf
        %2821 = vmax.xlane.f32.xlu0 %v2820
        %v2822 = vpop.xlane.xlu0 %2821
        %v2823 = vsub.f32 %v2815, %v2822
        %v2824 = vmul.f32 %v2823, 1.442695
        %v2825 = vpow.pop %v2824
        %v2826 = vsel %vm1900, %v2825, 0.0
        %2827 = vadd.xlane.f32.xlu0 %v2826
        %v2828 = vpop.xlane.xlu0 %2827
        %v2829 = vrcp.pop %v2828
        %v2830 = vmul.f32 %v2825, %v2829
        %v2831 = vpack.c.bf16 %v2830, %v2830
        %2832 = vrot.lane.b32.xlu0 %v2770, 112
        %v2833 = vpop.permute.xlu0 %2832
        %v2835 = vsel %vm1900, %v2831, 0
        %v2838 = vsel %vm2147, %v2833, 0
        %2840 = vmatprep.subr.bf16.mxu0 0
        %2841 = vmatpush1.bf16.msra.mxu0 %v2838
        %2842 = vmatprep.subr.bf16.mxu0 0
        %2843 = vmatpush1.bf16.msra.mxu0 0
        %2844 = vmatprep.subr.bf16.mxu0 0
        %2845 = vmatpush1.bf16.msra.mxu0 0
        %2846 = vmatprep.subr.bf16.mxu0 0
        %2847 = vmatpush1.bf16.msra.mxu0 0
        %2848 = vmatprep.subr.bf16.mxu0 0
        %2849 = vmatpush1.bf16.msra.mxu0 0
        %2850 = vmatprep.subr.bf16.mxu0 0
        %2851 = vmatpush1.bf16.msra.mxu0 0
        %2852 = vmatprep.subr.bf16.mxu0 0
        %2853 = vmatpush1.bf16.msra.mxu0 0
        %2854 = vmatprep.subr.bf16.mxu0 0
        %2855 = vmatpush1.bf16.msra.mxu0 0
        %2856 = vmatprep.subr.bf16.mxu0 0
        %2857 = vmatpush1.bf16.msra.mxu0 0
        %2858 = vmatprep.subr.bf16.mxu0 0
        %2859 = vmatpush1.bf16.msra.mxu0 0
        %2860 = vmatprep.subr.bf16.mxu0 0
        %2861 = vmatpush1.bf16.msra.mxu0 0
        %2862 = vmatprep.subr.bf16.mxu0 0
        %2863 = vmatpush1.bf16.msra.mxu0 0
        %2864 = vmatprep.subr.bf16.mxu0 0
        %2865 = vmatpush1.bf16.msra.mxu0 0
        %2866 = vmatprep.subr.bf16.mxu0 0
        %2867 = vmatpush1.bf16.msra.mxu0 0
        %2868 = vmatprep.subr.bf16.mxu0 0
        %2869 = vmatpush1.bf16.msra.mxu0 0
        %2870 = vmatprep.subr.bf16.mxu0 0
        %2871 = vmatpush1.bf16.msra.mxu0 0
        %2872 = vmatprep.mubr.bf16.mxu0 0
        %2873 = vmatmul.mubr.bf16.gmra.mrb[0].mxu0 %v2835
        %v2874 = vpop.f32.mrb[0].mxu0
        %v2875 = vadd.f32 0.0, %v2874
        %v2876 = vpop.f32.mrb[0].mxu0
        %v2877 = vpop.f32.mrb[0].mxu0
        %v2878 = vpop.f32.mrb[0].mxu0
        %2879 = vdwg.mxu0
        %v2880 = vpack.c.bf16 %v2875, %v2875
        %v2882 = vlaneseq
        %v2883 = vshrl.u32 %v2882, 7
        %v2884 = vsub.s32 0, %v2883
        %v2885 = vrot.slane %v2714, %v2884
        %v2888 = vsel %vm1900, %v2880, 0
        %v2891 = vsel %vm2147, %v2713, 0
        %2893 = vmatprep.subr.bf16.mxu0 0
        %2894 = vmatpush1.bf16.msra.mxu0 %v2891
        %2895 = vmatprep.subr.bf16.mxu0 0
        %2896 = vmatpush1.bf16.msra.mxu0 0
        %2897 = vmatprep.subr.bf16.mxu0 0
        %2898 = vmatpush1.bf16.msra.mxu0 0
        %2899 = vmatprep.subr.bf16.mxu0 0
        %2900 = vmatpush1.bf16.msra.mxu0 0
        %2901 = vmatprep.subr.bf16.mxu0 0
        %2902 = vmatpush1.bf16.msra.mxu0 0
        %2903 = vmatprep.subr.bf16.mxu0 0
        %2904 = vmatpush1.bf16.msra.mxu0 0
        %2905 = vmatprep.subr.bf16.mxu0 0
        %2906 = vmatpush1.bf16.msra.mxu0 0
        %2907 = vmatprep.subr.bf16.mxu0 0
        %2908 = vmatpush1.bf16.msra.mxu0 0
        %2909 = vmatprep.subr.bf16.mxu0 0
        %2910 = vmatpush1.bf16.msra.mxu0 0
        %2911 = vmatprep.subr.bf16.mxu0 0
        %2912 = vmatpush1.bf16.msra.mxu0 0
        %2913 = vmatprep.subr.bf16.mxu0 0
        %2914 = vmatpush1.bf16.msra.mxu0 0
        %2915 = vmatprep.subr.bf16.mxu0 0
        %2916 = vmatpush1.bf16.msra.mxu0 0
        %2917 = vmatprep.subr.bf16.mxu0 0
        %2918 = vmatpush1.bf16.msra.mxu0 0
        %2919 = vmatprep.subr.bf16.mxu0 0
        %2920 = vmatpush1.bf16.msra.mxu0 0
        %2921 = vmatprep.subr.bf16.mxu0 0
        %2922 = vmatpush1.bf16.msra.mxu0 0
        %2923 = vmatprep.subr.bf16.mxu0 0
        %2924 = vmatpush1.bf16.msra.mxu0 0
        %2925 = vmatprep.mubr.bf16.mxu0 0
        %2926 = vmatmul.mubr.bf16.gmra.mrb[0].mxu0 %v2888
        %v2927 = vpop.f32.mrb[0].mxu0
        %v2928 = vadd.f32 %v2885, %v2927
        %v2929 = vpop.f32.mrb[0].mxu0
        %v2930 = vpop.f32.mrb[0].mxu0
        %v2931 = vpop.f32.mrb[0].mxu0
        %2932 = vdwg.mxu0
        %v2933 = vld [vmem:[%s1767] sm:$0x1]
        %v2934 = vld [vmem:[%s1770] sm:$0x1]
        %v2935 = vadd.f32 %v2928, %v2710
        %v2936 = vsel %vm1900, %v2935, 0.0
        %2937 = vadd.xlane.f32.xlu0 %v2936
        %v2938 = vpop.xlane.xlu0 %2937
        %v2939 = vrcp.pop 8.0
        %v2940 = vmul.f32 %v2938, %v2939
        %v2941 = vsub.f32 %v2935, %v2940
        %v2942 = vmul.f32 %v2941, %v2941
        %v2943 = vsel %vm1900, %v2942, 0.0
        %2944 = vadd.xlane.f32.xlu0 %v2943
        %v2945 = vpop.xlane.xlu0 %2944
        %v2946 = vmul.f32 %v2945, %v2939
        %v2947 = vadd.f32 %v2946, 1e-12
        %v2948 = vrsqrt.pop %v2947
        %v2949 = vmul.f32 %v2941, %v2948
        %v2951 = vlaneseq
        %v2952 = vshrl.u32 %v2951, 7
        %v2953 = vsub.s32 0, %v2952
        %v2954 = vrot.slane %v2933, %v2953
        %v2956 = vmul.f32 %v2949, %v2954
        %v2958 = vlaneseq
        %v2959 = vshrl.u32 %v2958, 7
        %v2960 = vsub.s32 0, %v2959
        %v2961 = vrot.slane %v2934, %v2960
        %v2963 = vadd.f32 %v2956, %v2961
        %v2964 = vld [vmem:[%s1496] sm:$0xf]
        %v2965 = vld [vmem:[%s1773] sm:$0x1]
        %v2966 = vld [vmem:[%s1505] sm:$0xf]
        %v2967 = vld [vmem:[%s1505 + $0x4] sm:$0xf]
        %v2968 = vld [vmem:[%s1776] sm:$0x1]
        %v2969 = vpack.c.bf16 %v2963, %v2963
        %v2971 = vlaneseq
        %v2972 = vshrl.u32 %v2971, 7
        %v2973 = vsub.s32 0, %v2972
        %v2974 = vrot.slane %v2965, %v2973
        %v2977 = vsel %vm1900, %v2969, 0
        %v2980 = vsel %vm2147, %v2964, 0
        %2982 = vmatprep.subr.bf16.mxu0 0
        %2983 = vmatpush1.bf16.msra.mxu0 %v2980
        %2984 = vmatprep.subr.bf16.mxu0 0
        %2985 = vmatpush1.bf16.msra.mxu0 0
        %2986 = vmatprep.subr.bf16.mxu0 0
        %2987 = vmatpush1.bf16.msra.mxu0 0
        %2988 = vmatprep.subr.bf16.mxu0 0
        %2989 = vmatpush1.bf16.msra.mxu0 0
        %2990 = vmatprep.subr.bf16.mxu0 0
        %2991 = vmatpush1.bf16.msra.mxu0 0
        %2992 = vmatprep.subr.bf16.mxu0 0
        %2993 = vmatpush1.bf16.msra.mxu0 0
        %2994 = vmatprep.subr.bf16.mxu0 0
        %2995 = vmatpush1.bf16.msra.mxu0 0
        %2996 = vmatprep.subr.bf16.mxu0 0
        %2997 = vmatpush1.bf16.msra.mxu0 0
        %2998 = vmatprep.subr.bf16.mxu0 0
        %2999 = vmatpush1.bf16.msra.mxu0 0
        %3000 = vmatprep.subr.bf16.mxu0 0
        %3001 = vmatpush1.bf16.msra.mxu0 0
        %3002 = vmatprep.subr.bf16.mxu0 0
        %3003 = vmatpush1.bf16.msra.mxu0 0
        %3004 = vmatprep.subr.bf16.mxu0 0
        %3005 = vmatpush1.bf16.msra.mxu0 0
        %3006 = vmatprep.subr.bf16.mxu0 0
        %3007 = vmatpush1.bf16.msra.mxu0 0
        %3008 = vmatprep.subr.bf16.mxu0 0
        %3009 = vmatpush1.bf16.msra.mxu0 0
        %3010 = vmatprep.subr.bf16.mxu0 0
        %3011 = vmatpush1.bf16.msra.mxu0 0
        %3012 = vmatprep.subr.bf16.mxu0 0
        %3013 = vmatpush1.bf16.msra.mxu0 0
        %3014 = vmatprep.mubr.bf16.mxu0 0
        %3015 = vmatmul.mubr.bf16.gmra.mrb[0].mxu0 %v2977
        %v3016 = vpop.f32.mrb[0].mxu0
        %v3017 = vadd.f32 %v2974, %v3016
        %v3018 = vpop.f32.mrb[0].mxu0
        %v3019 = vpop.f32.mrb[0].mxu0
        %v3020 = vpop.f32.mrb[0].mxu0
        %3021 = vdwg.mxu0
        %v3022 = vmul.f32 %v3017, 0.5
        %v3023 = vmul.f32 %v3017, 0.044715
        %v3024 = vmul.f32 %v3023, %v3017
        %v3025 = vmul.f32 %v3024, %v3017
        %v3026 = vadd.f32 %v3017, %v3025
        %v3027 = vmul.f32 %v3026, 0.7978846
        %v3028 = vtanh.pop %v3027
        %v3029 = vadd.f32 %v3028, 1.0
        %v3030 = vmul.f32 %v3022, %v3029
        %v3031 = vpack.c.bf16 %v3030, %v3030
        %v3033 = vlaneseq
        %v3034 = vshrl.u32 %v3033, 7
        %v3035 = vsub.s32 0, %v3034
        %v3036 = vrot.slane %v2968, %v3035
        %v3040 = vunpack.c.l.b16 %v2966
        %v3041 = vunpack.c.l.b16 %v2967
        %v3042 = vpack.c.b16 %v3041, %v3040
        %v3045 = vsel %vm2348, %v3031, 0
        %3047 = vmatprep.subr.bf16.mxu0 0
        %3048 = vmatpush1.bf16.msra.mxu0 %v3042
        %3049 = vmatprep.subr.bf16.mxu0 0
        %3050 = vmatpush1.bf16.msra.mxu0 0
        %3051 = vmatprep.subr.bf16.mxu0 0
        %3052 = vmatpush1.bf16.msra.mxu0 0
        %3053 = vmatprep.subr.bf16.mxu0 0
        %3054 = vmatpush1.bf16.msra.mxu0 0
        %3055 = vmatprep.subr.bf16.mxu0 0
        %3056 = vmatpush1.bf16.msra.mxu0 0
        %3057 = vmatprep.subr.bf16.mxu0 0
        %3058 = vmatpush1.bf16.msra.mxu0 0
        %3059 = vmatprep.subr.bf16.mxu0 0
        %3060 = vmatpush1.bf16.msra.mxu0 0
        %3061 = vmatprep.subr.bf16.mxu0 0
        %3062 = vmatpush1.bf16.msra.mxu0 0
        %3063 = vmatprep.subr.bf16.mxu0 0
        %3064 = vmatpush1.bf16.msra.mxu0 0
        %3065 = vmatprep.subr.bf16.mxu0 0
        %3066 = vmatpush1.bf16.msra.mxu0 0
        %3067 = vmatprep.subr.bf16.mxu0 0
        %3068 = vmatpush1.bf16.msra.mxu0 0
        %3069 = vmatprep.subr.bf16.mxu0 0
        %3070 = vmatpush1.bf16.msra.mxu0 0
        %3071 = vmatprep.subr.bf16.mxu0 0
        %3072 = vmatpush1.bf16.msra.mxu0 0
        %3073 = vmatprep.subr.bf16.mxu0 0
        %3074 = vmatpush1.bf16.msra.mxu0 0
        %3075 = vmatprep.subr.bf16.mxu0 0
        %3076 = vmatpush1.bf16.msra.mxu0 0
        %3077 = vmatprep.subr.bf16.mxu0 0
        %3078 = vmatpush1.bf16.msra.mxu0 0
        %3079 = vmatprep.mubr.bf16.mxu0 0
        %3080 = vmatmul.mubr.bf16.gmra.mrb[0].mxu0 %v3045
        %v3081 = vpop.f32.mrb[0].mxu0
        %v3082 = vadd.f32 %v3036, %v3081
        %v3083 = vpop.f32.mrb[0].mxu0
        %v3084 = vpop.f32.mrb[0].mxu0
        %v3085 = vpop.f32.mrb[0].mxu0
        %3086 = vdwg.mxu0
        %v3087 = vld [vmem:[%s1779] sm:$0x1]
        %v3088 = vld [vmem:[%s1782] sm:$0x1]
        %v3089 = vadd.f32 %v3082, %v2963
        %v3090 = vsel %vm1900, %v3089, 0.0
        %3091 = vadd.xlane.f32.xlu0 %v3090
        %v3092 = vpop.xlane.xlu0 %3091
        %v3093 = vmul.f32 %v3092, %v2939
        %v3094 = vsub.f32 %v3089, %v3093
        %v3095 = vmul.f32 %v3094, %v3094
        %v3096 = vsel %vm1900, %v3095, 0.0
        %3097 = vadd.xlane.f32.xlu0 %v3096
        %v3098 = vpop.xlane.xlu0 %3097
        %v3099 = vmul.f32 %v3098, %v2939
        %v3100 = vadd.f32 %v3099, 1e-12
        %v3101 = vrsqrt.pop %v3100
        %v3102 = vmul.f32 %v3094, %v3101
        %v3104 = vlaneseq
        %v3105 = vshrl.u32 %v3104, 7
        %v3106 = vsub.s32 0, %v3105
        %v3107 = vrot.slane %v3087, %v3106
        %v3109 = vmul.f32 %v3102, %v3107
        %v3111 = vlaneseq
        %v3112 = vshrl.u32 %v3111, 7
        %v3113 = vsub.s32 0, %v3112
        %v3114 = vrot.slane %v3088, %v3113
        %v3116 = vadd.f32 %v3109, %v3114
        %3117 = vst.msk [vmem:[%s1711] sm:$0xff] %vm1900, %v3116
        %p3118 = scmp.eq.s32.totalorder %s115, 1
        // Predicated region
        $region213: #{_lambda_.1} parent=159 // pred_check
          %p3119 = pneg %p3118
        $region214: #{_lambda_.1} parent=159 // pred_check_branch
          %3121 = sbr.rel (%p3119) target = $region216
        $region215: #{_lambda_.1} parent=159 // pred_region
          %v3122 = vld [vmem:[#allocation18] sm:$0xff]
          %v3123 = vld [vmem:[%s61] sm:$0x1]
          %v3125 = vsel %vm1900, %v3116, 0
          %3127 = vmatprep.subr.mxu0 0.0
          %3128 = vmatpush1.msra.mxu0 %v3122
          %3129 = vmatprep.subr.mxu0 0.0
          %3130 = vmatpush1.msra.mxu0 0.0
          %3131 = vmatprep.subr.mxu0 0.0
          %3132 = vmatpush1.msra.mxu0 0.0
          %3133 = vmatprep.subr.mxu0 0.0
          %3134 = vmatpush1.msra.mxu0 0.0
          %3135 = vmatprep.subr.mxu0 0.0
          %3136 = vmatpush1.msra.mxu0 0.0
          %3137 = vmatprep.subr.mxu0 0.0
          %3138 = vmatpush1.msra.mxu0 0.0
          %3139 = vmatprep.subr.mxu0 0.0
          %3140 = vmatpush1.msra.mxu0 0.0
          %3141 = vmatprep.subr.mxu0 0.0
          %3142 = vmatpush1.msra.mxu0 0.0
          %3143 = vmatprep.subr.mxu0 0.0
          %3144 = vmatpush1.msra.mxu0 0.0
          %3145 = vmatprep.subr.mxu0 0.0
          %3146 = vmatpush1.msra.mxu0 0.0
          %3147 = vmatprep.subr.mxu0 0.0
          %3148 = vmatpush1.msra.mxu0 0.0
          %3149 = vmatprep.subr.mxu0 0.0
          %3150 = vmatpush1.msra.mxu0 0.0
          %3151 = vmatprep.subr.mxu0 0.0
          %3152 = vmatpush1.msra.mxu0 0.0
          %3153 = vmatprep.subr.mxu0 0.0
          %3154 = vmatpush1.msra.mxu0 0.0
          %3155 = vmatprep.subr.mxu0 0.0
          %3156 = vmatpush1.msra.mxu0 0.0
          %3157 = vmatprep.subr.mxu0 0.0
          %3158 = vmatpush1.msra.mxu0 0.0
          %3159 = vmatprep.subr.mxu0 0.0
          %3160 = vmatpush1.msra.mxu0 0.0
          %3161 = vmatprep.subr.mxu0 0.0
          %3162 = vmatpush1.msra.mxu0 0.0
          %3163 = vmatprep.subr.mxu0 0.0
          %3164 = vmatpush1.msra.mxu0 0.0
          %3165 = vmatprep.subr.mxu0 0.0
          %3166 = vmatpush1.msra.mxu0 0.0
          %3167 = vmatprep.subr.mxu0 0.0
          %3168 = vmatpush1.msra.mxu0 0.0
          %3169 = vmatprep.subr.mxu0 0.0
          %3170 = vmatpush1.msra.mxu0 0.0
          %3171 = vmatprep.subr.mxu0 0.0
          %3172 = vmatpush1.msra.mxu0 0.0
          %3173 = vmatprep.subr.mxu0 0.0
          %3174 = vmatpush1.msra.mxu0 0.0
          %3175 = vmatprep.subr.mxu0 0.0
          %3176 = vmatpush1.msra.mxu0 0.0
          %3177 = vmatprep.subr.mxu0 0.0
          %3178 = vmatpush1.msra.mxu0 0.0
          %3179 = vmatprep.subr.mxu0 0.0
          %3180 = vmatpush1.msra.mxu0 0.0
          %3181 = vmatprep.subr.mxu0 0.0
          %3182 = vmatpush1.msra.mxu0 0.0
          %3183 = vmatprep.subr.mxu0 0.0
          %3184 = vmatpush1.msra.mxu0 0.0
          %3185 = vmatprep.subr.mxu0 0.0
          %3186 = vmatpush1.msra.mxu0 0.0
          %3187 = vmatprep.subr.mxu0 0.0
          %3188 = vmatpush1.msra.mxu0 0.0
          %3189 = vmatprep.subr.mxu0 0.0
          %3190 = vmatpush1.msra.mxu0 0.0
          %3191 = vmatprep.mubr.f32.mxu0 0.0
          %3192 = vmatmul.mubr.f32.gmra.mrb[0].mxu0 %v3125
          %v3193 = vpop.f32.mrb[0].mxu0
          %v3194 = vadd.f32 %v3123, %v3193
          %v3195 = vpop.f32.mrb[0].mxu0
          %3196 = vdwg.mxu0
          %v3197 = vadd.f32 %v2634, %v3194
          %v3198 = vld [vmem:[#allocation19] sm:$0xff]
          %v3199 = vld [vmem:[#allocation19 + $0x8] sm:$0xff]
          %v3200 = vld [vmem:[#allocation19 + $0x10] sm:$0xff]
          %v3201 = vld [vmem:[#allocation19 + $0x18] sm:$0xff]
          %v3202 = vld [vmem:[%s65] sm:$0x1]
          %v3204 = vsel %vm1824, %v3197, 0
          %3206 = vmatprep.subr.mxu0 0.0
          %3207 = vmatpush1.msra.mxu0 %v3198
          %3208 = vmatprep.subr.mxu0 0.0
          %3209 = vmatpush1.msra.mxu0 %v3199
          %3210 = vmatprep.subr.mxu0 0.0
          %3211 = vmatpush1.msra.mxu0 %v3200
          %3212 = vmatprep.subr.mxu0 0.0
          %3213 = vmatpush1.msra.mxu0 %v3201
          %3214 = vmatprep.subr.mxu0 0.0
          %3215 = vmatpush1.msra.mxu0 0.0
          %3216 = vmatprep.subr.mxu0 0.0
          %3217 = vmatpush1.msra.mxu0 0.0
          %3218 = vmatprep.subr.mxu0 0.0
          %3219 = vmatpush1.msra.mxu0 0.0
          %3220 = vmatprep.subr.mxu0 0.0
          %3221 = vmatpush1.msra.mxu0 0.0
          %3222 = vmatprep.subr.mxu0 0.0
          %3223 = vmatpush1.msra.mxu0 0.0
          %3224 = vmatprep.subr.mxu0 0.0
          %3225 = vmatpush1.msra.mxu0 0.0
          %3226 = vmatprep.subr.mxu0 0.0
          %3227 = vmatpush1.msra.mxu0 0.0
          %3228 = vmatprep.subr.mxu0 0.0
          %3229 = vmatpush1.msra.mxu0 0.0
          %3230 = vmatprep.subr.mxu0 0.0
          %3231 = vmatpush1.msra.mxu0 0.0
          %3232 = vmatprep.subr.mxu0 0.0
          %3233 = vmatpush1.msra.mxu0 0.0
          %3234 = vmatprep.subr.mxu0 0.0
          %3235 = vmatpush1.msra.mxu0 0.0
          %3236 = vmatprep.subr.mxu0 0.0
          %3237 = vmatpush1.msra.mxu0 0.0
          %3238 = vmatprep.subr.mxu0 0.0
          %3239 = vmatpush1.msra.mxu0 0.0
          %3240 = vmatprep.subr.mxu0 0.0
          %3241 = vmatpush1.msra.mxu0 0.0
          %3242 = vmatprep.subr.mxu0 0.0
          %3243 = vmatpush1.msra.mxu0 0.0
          %3244 = vmatprep.subr.mxu0 0.0
          %3245 = vmatpush1.msra.mxu0 0.0
          %3246 = vmatprep.subr.mxu0 0.0
          %3247 = vmatpush1.msra.mxu0 0.0
          %3248 = vmatprep.subr.mxu0 0.0
          %3249 = vmatpush1.msra.mxu0 0.0
          %3250 = vmatprep.subr.mxu0 0.0
          %3251 = vmatpush1.msra.mxu0 0.0
          %3252 = vmatprep.subr.mxu0 0.0
          %3253 = vmatpush1.msra.mxu0 0.0
          %3254 = vmatprep.subr.mxu0 0.0
          %3255 = vmatpush1.msra.mxu0 0.0
          %3256 = vmatprep.subr.mxu0 0.0
          %3257 = vmatpush1.msra.mxu0 0.0
          %3258 = vmatprep.subr.mxu0 0.0
          %3259 = vmatpush1.msra.mxu0 0.0
          %3260 = vmatprep.subr.mxu0 0.0
          %3261 = vmatpush1.msra.mxu0 0.0
          %3262 = vmatprep.subr.mxu0 0.0
          %3263 = vmatpush1.msra.mxu0 0.0
          %3264 = vmatprep.subr.mxu0 0.0
          %3265 = vmatpush1.msra.mxu0 0.0
          %3266 = vmatprep.subr.mxu0 0.0
          %3267 = vmatpush1.msra.mxu0 0.0
          %3268 = vmatprep.subr.mxu0 0.0
          %3269 = vmatpush1.msra.mxu0 0.0
          %3270 = vmatprep.mubr.f32.mxu0 0.0
          %3271 = vmatmul.mubr.f32.gmra.mrb[0].mxu0 %v3204
          %v3272 = vpop.f32.mrb[0].mxu0
          %v3273 = vadd.f32 %v3202, %v3272
          %v3274 = vpop.f32.mrb[0].mxu0
          %3275 = vdwg.mxu0
          %v3276 = vtanh.pop %v3273
          %v3277 = vld [vmem:[#allocation21] sm:$0xff]
          %v3278 = vld [vmem:[#allocation21 + $0x8] sm:$0xff]
          %v3279 = vld [vmem:[#allocation21 + $0x10] sm:$0xff]
          %v3280 = vld [vmem:[#allocation21 + $0x18] sm:$0xff]
          %v3281 = vld [vmem:[%s69] sm:$0x1]
          %v3283 = vsel %vm1824, %v3276, 0
          %3285 = vmatprep.subr.mxu0 0.0
          %3286 = vmatpush1.msra.mxu0 %v3277
          %3287 = vmatprep.subr.mxu0 0.0
          %3288 = vmatpush1.msra.mxu0 %v3278
          %3289 = vmatprep.subr.mxu0 0.0
          %3290 = vmatpush1.msra.mxu0 %v3279
          %3291 = vmatprep.subr.mxu0 0.0
          %3292 = vmatpush1.msra.mxu0 %v3280
          %3293 = vmatprep.subr.mxu0 0.0
          %3294 = vmatpush1.msra.mxu0 0.0
          %3295 = vmatprep.subr.mxu0 0.0
          %3296 = vmatpush1.msra.mxu0 0.0
          %3297 = vmatprep.subr.mxu0 0.0
          %3298 = vmatpush1.msra.mxu0 0.0
          %3299 = vmatprep.subr.mxu0 0.0
          %3300 = vmatpush1.msra.mxu0 0.0
          %3301 = vmatprep.subr.mxu0 0.0
          %3302 = vmatpush1.msra.mxu0 0.0
          %3303 = vmatprep.subr.mxu0 0.0
          %3304 = vmatpush1.msra.mxu0 0.0
          %3305 = vmatprep.subr.mxu0 0.0
          %3306 = vmatpush1.msra.mxu0 0.0
          %3307 = vmatprep.subr.mxu0 0.0
          %3308 = vmatpush1.msra.mxu0 0.0
          %3309 = vmatprep.subr.mxu0 0.0
          %3310 = vmatpush1.msra.mxu0 0.0
          %3311 = vmatprep.subr.mxu0 0.0
          %3312 = vmatpush1.msra.mxu0 0.0
          %3313 = vmatprep.subr.mxu0 0.0
          %3314 = vmatpush1.msra.mxu0 0.0
          %3315 = vmatprep.subr.mxu0 0.0
          %3316 = vmatpush1.msra.mxu0 0.0
          %3317 = vmatprep.subr.mxu0 0.0
          %3318 = vmatpush1.msra.mxu0 0.0
          %3319 = vmatprep.subr.mxu0 0.0
          %3320 = vmatpush1.msra.mxu0 0.0
          %3321 = vmatprep.subr.mxu0 0.0
          %3322 = vmatpush1.msra.mxu0 0.0
          %3323 = vmatprep.subr.mxu0 0.0
          %3324 = vmatpush1.msra.mxu0 0.0
          %3325 = vmatprep.subr.mxu0 0.0
          %3326 = vmatpush1.msra.mxu0 0.0
          %3327 = vmatprep.subr.mxu0 0.0
          %3328 = vmatpush1.msra.mxu0 0.0
          %3329 = vmatprep.subr.mxu0 0.0
          %3330 = vmatpush1.msra.mxu0 0.0
          %3331 = vmatprep.subr.mxu0 0.0
          %3332 = vmatpush1.msra.mxu0 0.0
          %3333 = vmatprep.subr.mxu0 0.0
          %3334 = vmatpush1.msra.mxu0 0.0
          %3335 = vmatprep.subr.mxu0 0.0
          %3336 = vmatpush1.msra.mxu0 0.0
          %3337 = vmatprep.subr.mxu0 0.0
          %3338 = vmatpush1.msra.mxu0 0.0
          %3339 = vmatprep.subr.mxu0 0.0
          %3340 = vmatpush1.msra.mxu0 0.0
          %3341 = vmatprep.subr.mxu0 0.0
          %3342 = vmatpush1.msra.mxu0 0.0
          %3343 = vmatprep.subr.mxu0 0.0
          %3344 = vmatpush1.msra.mxu0 0.0
          %3345 = vmatprep.subr.mxu0 0.0
          %3346 = vmatpush1.msra.mxu0 0.0
          %3347 = vmatprep.subr.mxu0 0.0
          %3348 = vmatpush1.msra.mxu0 0.0
          %3349 = vmatprep.mubr.f32.mxu0 0.0
          %3350 = vmatmul.mubr.f32.gmra.mrb[0].mxu0 %v3283
          %v3351 = vpop.f32.mrb[0].mxu0
          %v3352 = vadd.f32 %v3281, %v3351
          %v3353 = vpop.f32.mrb[0].mxu0
          %3354 = vdwg.mxu0
          %3355 = vst [vmem:[%s1717] sm:$0x1] %v3352
        $region216: #{_lambda_.1} parent=159 // pred_fallthru
          _
        %s3356 = sand.u32 %s1005, 1
        %s3357 = scalar_lea.sflag [#allocation4], %s3356
        %s3358 = sand.u32 %s1005, 1
        %s3359 = smul.addr %s3358, 8
        %s3360 = scalar_lea.vmem [#allocation22], %s3359
        %s3361 = sand.u32 %s110, 1
        %s3362 = scalar_lea.sflag [#allocation24], %s3361
        %s3363 = sand.u32 %s1031, 1
        %s3364 = smul.addr %s3363, 8
        %s3365 = scalar_lea.vmem [#allocation23], %s3364
        %s3366 = sand.u32 %s110, 1
        %s3367 = scalar_lea.sflag [#allocation24], %s3366
        %s3368 = sand.u32 %s1057, 1
        %s3369 = scalar_lea.vmem [#allocation25], %s3368
        // Predicated region
        $region217: #{_lambda_.1} parent=159 // pred_check
          %p3370 = pneg %p1015
        $region218: #{_lambda_.1} parent=159 // pred_check_branch
          %3372 = sbr.rel (%p3370) target = $region220
        $region219: #{_lambda_.1} parent=159 // pred_region
          %s3374 = ssub.s32 128, 128
          %3375 = vsyncadd %s3357, %s3374
          %s3376 = smul.addr %s114, 128
          %s3377 = scalar_lea.hbm %s71, %s3376
          %s3379 = sshll.u32 %s3360, 4
          %s3380 = int_to_ptr.vmem [resolvable:$true] %s3379
          %3382 = dma.vmem_to_hbm [thread:$0]  %s3380, 128, %s3377, %s3357
        $region220: #{_lambda_.1} parent=159 // pred_fallthru
          _
        // Predicated region
        $region221: #{_lambda_.1} parent=159 // pred_check
          %p3383 = pneg %p1041
        $region222: #{_lambda_.1} parent=159 // pred_check_branch
          %3385 = sbr.rel (%p3383) target = $region224
        $region223: #{_lambda_.1} parent=159 // pred_region
          %s3387 = ssub.s32 128, 128
          %3388 = vsyncadd %s3362, %s3387
          %s3389 = smul.addr %s114, 128
          %s3390 = scalar_lea.hbm %s73, %s3389
          %s3392 = sshll.u32 %s3365, 4
          %s3393 = int_to_ptr.vmem [resolvable:$true] %s3392
          %3395 = dma.vmem_to_hbm [thread:$0]  %s3393, 128, %s3390, %s3362
        $region224: #{_lambda_.1} parent=159 // pred_fallthru
          _
        // Predicated region
        $region225: #{_lambda_.1} parent=159 // pred_check
          %p3396 = pneg %p1067
        $region226: #{_lambda_.1} parent=159 // pred_check_branch
          %3398 = sbr.rel (%p3396) target = $region228
        $region227: #{_lambda_.1} parent=159 // pred_region
          %s3400 = ssub.s32 16, 16
          %3401 = vsyncadd %s3367, %s3400
          %s3402 = smul.addr %s114, 16
          %s3403 = scalar_lea.hbm %s75, %s3402
          %s3405 = sshll.u32 %s3369, 4
          %s3406 = int_to_ptr.vmem [resolvable:$true] %s3405
          %3408 = dma.vmem_to_hbm [thread:$0]  %s3406, 16, %s3403, %s3367
        $region228: #{_lambda_.1} parent=159 // pred_fallthru
          _
      $region160: #{_lambda_.1} parent=5 // pred_fallthru
        _
      %p3409 = scmp.le.s32.totalorder 2, %s105
      // Predicated region
      $region229: #{_lambda_.1} parent=5 // pred_check
        %p3410 = pneg %p3409
      $region230: #{_lambda_.1} parent=5 // pred_check_branch
        %3412 = sbr.rel (%p3410) target = $region232
      $region231: #{_lambda_.1} parent=5 // pred_region
        %s3413 = ssub.s32 %s105, 2
        // Predicated region
        $region233: #{_lambda_.1} parent=231 // pred_check
          %p3414 = pneg %p1021
        $region234: #{_lambda_.1} parent=231 // pred_check_branch
          %3416 = sbr.rel (%p3414) target = $region236
        $region235: #{_lambda_.1} parent=231 // pred_region
          %s3417 = sand.u32 %s1006, 1
          %s3418 = scalar_lea.sflag [#allocation4], %s3417
          %s3419 = sand.u32 %s1006, 1
          %s3420 = smul.addr %s3419, 8
          %s3421 = scalar_lea.vmem [#allocation22], %s3420
          %3422 = dma.done %s3418, 128
        $region236: #{_lambda_.1} parent=231 // pred_fallthru
          _
        // Predicated region
        $region237: #{_lambda_.1} parent=231 // pred_check
          %p3423 = pneg %p1047
        $region238: #{_lambda_.1} parent=231 // pred_check_branch
          %3425 = sbr.rel (%p3423) target = $region240
        $region239: #{_lambda_.1} parent=231 // pred_region
          %s3426 = sand.u32 %s111, 1
          %s3427 = scalar_lea.sflag [#allocation24], %s3426
          %s3428 = sand.u32 %s1032, 1
          %s3429 = smul.addr %s3428, 8
          %s3430 = scalar_lea.vmem [#allocation23], %s3429
          %3431 = dma.done %s3427, 128
        $region240: #{_lambda_.1} parent=231 // pred_fallthru
          _
        // Predicated region
        $region241: #{_lambda_.1} parent=231 // pred_check
          %p3432 = pneg %p1073
        $region242: #{_lambda_.1} parent=231 // pred_check_branch
          %3434 = sbr.rel (%p3432) target = $region244
        $region243: #{_lambda_.1} parent=231 // pred_region
          %s3435 = sand.u32 %s111, 1
          %s3436 = scalar_lea.sflag [#allocation24], %s3435
          %s3437 = sand.u32 %s1058, 1
          %s3438 = scalar_lea.vmem [#allocation25], %s3437
          %3439 = dma.done %s3436, 16
        $region244: #{_lambda_.1} parent=231 // pred_fallthru
          _
      $region232: #{_lambda_.1} parent=5 // pred_fallthru
        _
    $region6: #{_lambda_.1} parent=1 // loop_footer
      %s109 = sadd.s32 1, %s105
    $region7: #{_lambda_.1} parent=1 // loop_footer_branch
      %104 = sbr.rel target = $region3
    $region8: #{_lambda_.1} parent=1 // loop_exit
      _
    %3440 = vsyncpa [#allocation3], 1
    %s3441 = scalar_lea.sflag [#allocation3], 1
    %3442 = vsyncpa %s3441, 1
    %3443 = vsyncpa [#allocation8], 1
    %s3444 = scalar_lea.sflag [#allocation8], 1
    %3445 = vsyncpa %s3444, 1
    %3446 = vsyncpa [#allocation11], 1
    %s3447 = scalar_lea.sflag [#allocation11], 1
    %3448 = vsyncpa %s3447, 1
    %3449 = vsyncpa [#allocation14], 1
    %s3450 = scalar_lea.sflag [#allocation14], 1
    %3451 = vsyncpa %s3450, 1
    %3452 = vsyncpa [#allocation17], 1
    %s3453 = scalar_lea.sflag [#allocation17], 1
    %3454 = vsyncpa %s3453, 1
    %3455 = vsyncpa [#allocation20], 1
    %3456 = vsyncpa [#allocation4], 1
    %s3457 = scalar_lea.sflag [#allocation4], 1
    %3458 = vsyncpa %s3457, 1
    %3459 = vsyncpa [#allocation24], 1
    %s3460 = scalar_lea.sflag [#allocation24], 1
    %3461 = vsyncpa %s3460, 1
    %3462 = vsyncpa [#allocation5], 1
    %s3463 = scalar_lea.sflag [#allocation5], 1
    %3464 = vsyncpa %s3463, 1

</llo_original>
